<compile_context>
chip_gen: v5e
topology: v5e:2x2
jax: 0.10.0
libtpu: 0.0.40
codegen_flags: <defaults>
</compile_context>

<pallas_src>
import functools
import math

import jax
import jax.numpy as jnp
import numpy as np
from jax.experimental import pallas as pl
from jax.experimental.pallas import tpu as pltpu

NUM_HEADS = 4
NHP = 8                        # heads padded to one sublane tile per key-batch block
KSIZE = 7
PAD = KSIZE // 2
NTAPS = KSIZE * KSIZE          # 49
NTAPS_PAD = ((NTAPS + 7) // 8) * 8   # 56 (sublane-aligned tap rows)


def _sigmoid(x):
    # exp lowers to the EUP; safe in f32 (overflow -> inf -> 1/(1+inf)=0).
    return 1.0 / (1.0 + jnp.exp(-x))


# ---------------------------------------------------------------------------
# Fused kernel: channel att + 7x7 spatial att + MultiheadAttention(C, 4).
# Everything is channels-first:
#   x_ref : (B, C, HW)   (free reshape of NCHW in the wrapper)
#   o_ref : (B, C, HW)   (free reshape back to NCHW in the wrapper)
# ---------------------------------------------------------------------------
def _fused_kernel(x_ref, w1_ref, w2_ref, wtap_ref, mask_ref,
                  win_ref, bin_ref, wout_ref, bout_ref,
                  hsel_ref, hexp_ref, o_ref,
                  x2_scr, qkv_scr, tap_scr, *, H, W):
    B, C, HW = x_ref.shape
    inv_hw = 1.0 / HW

    w1 = w1_ref[...]          # (Cr, C)
    w2 = w2_ref[...]          # (C, Cr)
    wtap = wtap_ref[...]      # (NTAPS_PAD, C)   row t = kh*7+kw holds wconv[0,:,kh,kw]
    win = win_ref[...]        # (3C, C)
    b_in = bin_ref[...]       # (3C, 1)
    wout = wout_ref[...]      # (C, C)
    b_out = bout_ref[...]     # (C, 1)
    hsel = hsel_ref[...]      # (B*NHP, B*C) block-diag head selector, 1/sqrt(hd) folded
    hexp = hexp_ref[...]      # (C, NHP)     head -> channel expansion (0/1)

    def shift_lanes(row, s):
        # out[:, p] = row[:, p + s], zero-filled at the flat-array edge.
        # (boundary bleed between image rows is killed by the per-tap mask)
        if s > 0:
            return jnp.concatenate(
                [row[:, s:], jnp.zeros((1, s), jnp.float32)], axis=1)
        if s < 0:
            return jnp.concatenate(
                [jnp.zeros((1, -s), jnp.float32), row[:, :s]], axis=1)
        return row

    # ---- stage 1: channel attention + 7x7 spatial attention (per batch) ----
    for b in range(B):                                   # B tiny & static -> unrolled
        xT = x_ref[b].astype(jnp.float32)                # (C, HW) channels-first
        pooled = jnp.sum(xT, axis=1, keepdims=True) * inv_hw          # (C, 1)
        h1 = jnp.maximum(
            jnp.dot(w1, pooled, preferred_element_type=jnp.float32), 0.0)   # (Cr, 1)
        catt = _sigmoid(
            jnp.dot(w2, h1, preferred_element_type=jnp.float32))            # (C, 1)
        x1T = xT * catt                                                      # (C, HW)

        # 7x7 conv(C -> 1): channels contracted FIRST on the MXU into 49 scalar
        # tap maps, then 49 cheap shift+mask accumulations on (1, HW) rows.
        tap_scr[...] = jnp.dot(wtap, x1T,
                               preferred_element_type=jnp.float32)           # (56, HW)
        conv = jnp.zeros((1, HW), jnp.float32)
        for kh in range(KSIZE):
            for kw in range(KSIZE):
                t = kh * KSIZE + kw
                s = (kh - PAD) * W + (kw - PAD)          # flat spatial offset
                row = tap_scr[pl.ds(t, 1), :]            # (1, HW)
                conv = conv + shift_lanes(row, s) * mask_ref[pl.ds(t, 1), :]
        x2_scr[b] = x1T * _sigmoid(conv)                 # (C, HW)

    # ---- stage 2: nn.MultiheadAttention(C, 4); torch (L=B, N=HW, E=C) conv. ----
    # qkv^T per batch, staged in a flat (B*3C, HW) scratch (aligned row blocks).
    for b in range(B):
        qkv_scr[pl.ds(b * 3 * C, 3 * C), :] = (
            jnp.dot(win, x2_scr[b], preferred_element_type=jnp.float32) + b_in)

    for i in range(B):
        q_i = qkv_scr[pl.ds(i * 3 * C, C), :]            # (C, HW)

        # fused all-head, all-j scores: one block-diagonal selector matmul
        qk = jnp.concatenate(
            [q_i * qkv_scr[pl.ds(j * 3 * C + C, C), :] for j in range(B)],
            axis=0)                                      # (B*C, HW)
        s_all = jnp.dot(hsel, qk, preferred_element_type=jnp.float32)  # (B*NHP, HW)

        # softmax over the key-batch axis j (blocks of NHP aligned sublanes)
        blocks = [s_all[j * NHP:(j + 1) * NHP, :] for j in range(B)]
        m = blocks[0]
        for blk in blocks[1:]:
            m = jnp.maximum(m, blk)
        exps = [jnp.exp(blk - m) for blk in blocks]
        den = exps[0]
        for e in exps[1:]:
            den = den + e
        inv = pl.reciprocal(den, approx=True)            # EUP, free slot

        ctx = jnp.zeros((C, HW), jnp.float32)
        for j in range(B):
            p_full = jnp.dot(hexp, exps[j] * inv,
                             preferred_element_type=jnp.float32)       # (C, HW)
            ctx = ctx + p_full * qkv_scr[pl.ds(j * 3 * C + 2 * C, C), :]

        o_ref[i] = (jnp.dot(wout, ctx, preferred_element_type=jnp.float32)
                    + b_out).astype(o_ref.dtype)         # (C, HW), no transpose


# ---------------------------------------------------------------------------
# Wrapper
# ---------------------------------------------------------------------------
def triple_attention(x, params):
    B, C, H, W = x.shape
    HW = H * W
    hd = C // NUM_HEADS

    x_chw = x.reshape(B, C, HW)                          # free reshape of NCHW

    # weights (no activation transposes; these are tiny host-side constants)
    w1 = params['w1'][:, :, 0, 0]                        # (Cr, C)
    w2 = params['w2'][:, :, 0, 0]                        # (C, Cr)
    wtap = jnp.transpose(params['wconv'][0], (1, 2, 0)).reshape(NTAPS, C)
    wtap = jnp.concatenate(
        [wtap, jnp.zeros((NTAPS_PAD - NTAPS, C), wtap.dtype)], axis=0)  # (56, C)
    win = params['in_proj_weight']                       # (3C, C)
    b_in = params['in_proj_bias'][:, None]               # (3C, 1)
    wout = params['out_proj_weight']                     # (C, C)
    b_out = params['out_proj_bias'][:, None]             # (C, 1)

    # baked numpy constants ---------------------------------------------------
    head_of = np.arange(C) // hd
    # block-diagonal head selector (one NHP-row block per key batch j), scaled
    hsel = np.zeros((B * NHP, B * C), np.float32)
    for j in range(B):
        for h in range(NUM_HEADS):
            hsel[j * NHP + h, j * C:(j + 1) * C] = (head_of == h) / math.sqrt(hd)
    # head -> channel expansion (padded head columns stay zero -> no leakage)
    hexp = np.zeros((C, NHP), np.float32)
    hexp[np.arange(C), head_of] = 1.0

    # per-tap validity mask over flat output positions (zero-padding of the conv)
    mask = np.zeros((NTAPS_PAD, HW), np.float32)
    hh, ww = np.meshgrid(np.arange(H), np.arange(W), indexing='ij')
    for kh in range(KSIZE):
        for kw in range(KSIZE):
            dh, dw = kh - PAD, kw - PAD
            valid = ((hh + dh >= 0) & (hh + dh < H) &
                     (ww + dw >= 0) & (ww + dw < W))
            mask[kh * KSIZE + kw] = valid.reshape(-1).astype(np.float32)

    out = pl.pallas_call(
        functools.partial(_fused_kernel, H=H, W=W),
        out_shape=jax.ShapeDtypeStruct((B, C, HW), x.dtype),
        in_specs=[pl.BlockSpec(memory_space=pltpu.MemorySpace.VMEM)] * 11,
        out_specs=pl.BlockSpec(memory_space=pltpu.MemorySpace.VMEM),
        scratch_shapes=[
            pltpu.VMEM((B, C, HW), jnp.float32),         # x2 (after both gates)
            pltpu.VMEM((B * 3 * C, HW), jnp.float32),    # qkv^T, flat aligned blocks
            pltpu.VMEM((NTAPS_PAD, HW), jnp.float32),    # per-tap scalar maps
        ],
        compiler_params=pltpu.CompilerParams(vmem_limit_bytes=32 * 1024 * 1024),
    )(x_chw, w1, w2, wtap, jnp.asarray(mask), win, b_in, wout, b_out,
      jnp.asarray(hsel), jnp.asarray(hexp))

    return out.reshape(B, C, H, W)                       # free reshape to NCHW
    # TODO(synk): at large H*W / C, split into a grid=(B,) "parallel" front-end
    # call and an MHA call (megacore on v7x) and tile HW; skipped here because
    # the extra launch overhead outweighs it at these tiny shapes.


# ---------------------------------------------------------------------------
# Pure-JAX reference (mirrors the PyTorch forward exactly)
# ---------------------------------------------------------------------------
def reference(x, params):
    B, C, H, W = x.shape
    pooled = jnp.mean(x, axis=(2, 3))                                      # (B, C)
    h1 = jax.nn.relu(pooled @ params['w1'][:, :, 0, 0].T)                  # (B, Cr)
    catt = jax.nn.sigmoid(h1 @ params['w2'][:, :, 0, 0].T)                 # (B, C)
    x1 = x * catt[:, :, None, None]
    satt = jax.lax.conv_general_dilated(
        x1, params['wconv'], (1, 1), [(PAD, PAD), (PAD, PAD)],
        dimension_numbers=('NCHW', 'OIHW', 'NCHW'))
    x2 = x1 * jax.nn.sigmoid(satt)

    xf = x2.reshape(B, C, H * W).transpose(0, 2, 1)                        # (L=B, N=HW, E=C)
    L, N, E = xf.shape
    hd = E // NUM_HEADS
    qkv = xf @ params['in_proj_weight'].T + params['in_proj_bias']
    q, k, v = qkv[..., :E], qkv[..., E:2 * E], qkv[..., 2 * E:]
    q = q.reshape(L, N, NUM_HEADS, hd)
    k = k.reshape(L, N, NUM_HEADS, hd)
    v = v.reshape(L, N, NUM_HEADS, hd)
    scores = jnp.einsum('inhd,jnhd->nhij', q, k) / math.sqrt(hd)
    p = jax.nn.softmax(scores, axis=-1)
    ctx = jnp.einsum('nhij,jnhd->inhd', p, v).reshape(L, N, E)
    out = ctx @ params['out_proj_weight'].T + params['out_proj_bias']      # (L, N, E)
    return out.transpose(0, 2, 1).reshape(B, C, H, W)


def init_params(key, C, reduction=16):
    Cr = max(C // reduction, 1)
    ks = jax.random.split(key, 7)
    return {
        'w1': jax.random.normal(ks[0], (Cr, C, 1, 1), jnp.float32) * 0.2,
        'w2': jax.random.normal(ks[1], (C, Cr, 1, 1), jnp.float32) * 0.2,
        'wconv': jax.random.normal(ks[2], (1, C, KSIZE, KSIZE), jnp.float32) * 0.05,
        'in_proj_weight': jax.random.normal(ks[3], (3 * C, C), jnp.float32) / math.sqrt(C),
        'in_proj_bias': jax.random.normal(ks[4], (3 * C,), jnp.float32) * 0.02,
        'out_proj_weight': jax.random.normal(ks[5], (C, C), jnp.float32) / math.sqrt(C),
        'out_proj_bias': jax.random.normal(ks[6], (C,), jnp.float32) * 0.02,
    }


if __name__ == "__main__":
    key = jax.random.PRNGKey(0)
    kx, kp = jax.random.split(key)
    # in_channels=32, reduction=16 -> hidden=2; num_heads=4 -> head_dim=8
    B, C, H, W = 2, 32, 8, 8
    x = jax.random.normal(kx, (B, C, H, W), jnp.float32)
    params = init_params(kp, C, reduction=16)

    out = jax.jit(triple_attention)(x, params)
    out = jax.block_until_ready(out)

    ref = reference(x, params)
    assert out.shape == (B, C, H, W)
    assert bool(jnp.all(jnp.isfinite(out)))
    max_err = float(jnp.max(jnp.abs(out - ref)))
    assert max_err < 5e-2, f"max abs error too large: {max_err}"
    print("KERNEL_OK")
</pallas_src>

<mosaic_0001>
module attributes {stable_mosaic.version = 11 : i64} {
  func.func @_fused_kernel(%arg0: memref<2x32x64xf32, #tpu.memory_space<vmem>>, %arg1: memref<2x32xf32, #tpu.memory_space<vmem>>, %arg2: memref<32x2xf32, #tpu.memory_space<vmem>>, %arg3: memref<56x32xf32, #tpu.memory_space<vmem>>, %arg4: memref<56x64xf32, #tpu.memory_space<vmem>>, %arg5: memref<96x32xf32, #tpu.memory_space<vmem>>, %arg6: memref<96x1xf32, #tpu.memory_space<vmem>>, %arg7: memref<32x32xf32, #tpu.memory_space<vmem>>, %arg8: memref<32x1xf32, #tpu.memory_space<vmem>>, %arg9: memref<16x64xf32, #tpu.memory_space<vmem>>, %arg10: memref<32x8xf32, #tpu.memory_space<vmem>>, %arg11: memref<2x32x64xf32, #tpu.memory_space<vmem>>, %arg12: memref<2x32x64xf32, #tpu.memory_space<vmem>>, %arg13: memref<192x64xf32, #tpu.memory_space<vmem>>, %arg14: memref<56x64xf32, #tpu.memory_space<vmem>>) attributes {dimension_semantics = [], scalar_prefetch = 0 : i64, scratch_operands = 3 : i64, tpu.core_type = #tpu.core_type<tc>} {
    %c0 = arith.constant 0 : index
    %c0_0 = arith.constant 0 : index
    %0 = vector.load %arg1[%c0, %c0_0] : memref<2x32xf32, #tpu.memory_space<vmem>>, vector<2x32xf32>
    %c0_1 = arith.constant 0 : index
    %c0_2 = arith.constant 0 : index
    %1 = vector.load %arg2[%c0_1, %c0_2] : memref<32x2xf32, #tpu.memory_space<vmem>>, vector<32x2xf32>
    %c0_3 = arith.constant 0 : index
    %c0_4 = arith.constant 0 : index
    %2 = vector.load %arg3[%c0_3, %c0_4] : memref<56x32xf32, #tpu.memory_space<vmem>>, vector<56x32xf32>
    %c0_5 = arith.constant 0 : index
    %c0_6 = arith.constant 0 : index
    %3 = vector.load %arg5[%c0_5, %c0_6] : memref<96x32xf32, #tpu.memory_space<vmem>>, vector<96x32xf32>
    %c0_7 = arith.constant 0 : index
    %c0_8 = arith.constant 0 : index
    %4 = vector.load %arg6[%c0_7, %c0_8] : memref<96x1xf32, #tpu.memory_space<vmem>>, vector<96x1xf32>
    %c0_9 = arith.constant 0 : index
    %c0_10 = arith.constant 0 : index
    %5 = vector.load %arg7[%c0_9, %c0_10] : memref<32x32xf32, #tpu.memory_space<vmem>>, vector<32x32xf32>
    %c0_11 = arith.constant 0 : index
    %c0_12 = arith.constant 0 : index
    %6 = vector.load %arg8[%c0_11, %c0_12] : memref<32x1xf32, #tpu.memory_space<vmem>>, vector<32x1xf32>
    %c0_13 = arith.constant 0 : index
    %c0_14 = arith.constant 0 : index
    %7 = vector.load %arg9[%c0_13, %c0_14] : memref<16x64xf32, #tpu.memory_space<vmem>>, vector<16x64xf32>
    %c0_15 = arith.constant 0 : index
    %c0_16 = arith.constant 0 : index
    %8 = vector.load %arg10[%c0_15, %c0_16] : memref<32x8xf32, #tpu.memory_space<vmem>>, vector<32x8xf32>
    %c0_17 = arith.constant 0 : index
    %c0_18 = arith.constant 0 : index
    %c0_19 = arith.constant 0 : index
    %9 = vector.load %arg0[%c0_17, %c0_18, %c0_19] : memref<2x32x64xf32, #tpu.memory_space<vmem>>, vector<1x32x64xf32>
    %10 = vector.shape_cast %9 : vector<1x32x64xf32> to vector<32x64xf32>
    %cst = arith.constant dense<0.000000e+00> : vector<32xf32>
    %11 = vector.multi_reduction <add>, %10, %cst [1] : vector<32x64xf32> to vector<32xf32>
    %12 = vector.shape_cast %11 : vector<32xf32> to vector<32x1xf32>
    %cst_20 = arith.constant 1.562500e-02 : f32
    %13 = vector.broadcast %cst_20 : f32 to vector<32x1xf32>
    %14 = arith.mulf %12, %13 : vector<32x1xf32>
    %cst_21 = arith.constant dense<0.000000e+00> : vector<2x1xf32>
    %15 = tpu.matmul %0, %14, %cst_21 {dimension_numbers = #tpu.dot_dimension_numbers<[1], [0], [0], [1], [0, 0, 1, 1], [], []>} : vector<2x32xf32>, vector<32x1xf32>, vector<2x1xf32> -> vector<2x1xf32>
    %cst_22 = arith.constant 0.000000e+00 : f32
    %16 = vector.broadcast %cst_22 : f32 to vector<2x1xf32>
    %17 = arith.maximumf %15, %16 : vector<2x1xf32>
    %cst_23 = arith.constant dense<0.000000e+00> : vector<32x1xf32>
    %18 = tpu.matmul %1, %17, %cst_23 {dimension_numbers = #tpu.dot_dimension_numbers<[1], [0], [0], [1], [0, 0, 1, 1], [], []>} : vector<32x2xf32>, vector<2x1xf32>, vector<32x1xf32> -> vector<32x1xf32>
    %cst_24 = arith.constant 0.000000e+00 : f32
    %19 = vector.broadcast %cst_24 : f32 to vector<32x1xf32>
    %20 = arith.subf %19, %18 : vector<32x1xf32>
    %21 = math.exp %20 : vector<32x1xf32>
    %cst_25 = arith.constant 1.000000e+00 : f32
    %22 = vector.broadcast %cst_25 : f32 to vector<32x1xf32>
    %23 = arith.addf %22, %21 : vector<32x1xf32>
    %cst_26 = arith.constant 1.000000e+00 : f32
    %24 = vector.broadcast %cst_26 : f32 to vector<32x1xf32>
    %25 = arith.divf %24, %23 : vector<32x1xf32>
    %26 = vector.broadcast %25 : vector<32x1xf32> to vector<32x64xf32>
    %27 = arith.mulf %10, %26 : vector<32x64xf32>
    %cst_27 = arith.constant dense<0.000000e+00> : vector<56x64xf32>
    %28 = tpu.matmul %2, %27, %cst_27 {dimension_numbers = #tpu.dot_dimension_numbers<[1], [0], [0], [1], [0, 0, 1, 1], [], []>} : vector<56x32xf32>, vector<32x64xf32>, vector<56x64xf32> -> vector<56x64xf32>
    %c0_28 = arith.constant 0 : index
    %c0_29 = arith.constant 0 : index
    %29 = vector.load %arg14[%c0_28, %c0_29] : memref<56x64xf32, #tpu.memory_space<vmem>>, vector<56x64xf32>
    tpu.vector_store %arg14[%c0_28, %c0_29], %28 {strides = array<i32>} : memref<56x64xf32, #tpu.memory_space<vmem>>, vector<56x64xf32>,
    %cst_30 = arith.constant 0.000000e+00 : f32
    %30 = vector.broadcast %cst_30 : f32 to vector<1x64xf32>
    %c0_31 = arith.constant 0 : index
    %c0_32 = arith.constant 0 : index
    %31 = vector.load %arg14[%c0_31, %c0_32] : memref<56x64xf32, #tpu.memory_space<vmem>>, vector<1x64xf32>
    %cst_33 = arith.constant 0.000000e+00 : f32
    %32 = vector.broadcast %cst_33 : f32 to vector<1x27xf32>
    %33 = vector.extract_strided_slice %31 {offsets = [0, 0], sizes = [1, 37], strides = [1, 1]} : vector<1x64xf32> to vector<1x37xf32>
    %34 = tpu.concatenate %32, %33 in 1 : vector<1x27xf32>, vector<1x37xf32> -> vector<1x64xf32>
    %c0_34 = arith.constant 0 : index
    %c0_35 = arith.constant 0 : index
    %35 = vector.load %arg4[%c0_34, %c0_35] : memref<56x64xf32, #tpu.memory_space<vmem>>, vector<1x64xf32>
    %36 = arith.mulf %34, %35 : vector<1x64xf32>
    %37 = arith.addf %30, %36 : vector<1x64xf32>
    %c1 = arith.constant 1 : index
    %c0_36 = arith.constant 0 : index
    %38 = vector.load %arg14[%c1, %c0_36] : memref<56x64xf32, #tpu.memory_space<vmem>>, vector<1x64xf32>
    %cst_37 = arith.constant 0.000000e+00 : f32
    %39 = vector.broadcast %cst_37 : f32 to vector<1x26xf32>
    %40 = vector.extract_strided_slice %38 {offsets = [0, 0], sizes = [1, 38], strides = [1, 1]} : vector<1x64xf32> to vector<1x38xf32>
    %41 = tpu.concatenate %39, %40 in 1 : vector<1x26xf32>, vector<1x38xf32> -> vector<1x64xf32>
    %c1_38 = arith.constant 1 : index
    %c0_39 = arith.constant 0 : index
    %42 = vector.load %arg4[%c1_38, %c0_39] : memref<56x64xf32, #tpu.memory_space<vmem>>, vector<1x64xf32>
    %43 = arith.mulf %41, %42 : vector<1x64xf32>
    %44 = arith.addf %37, %43 : vector<1x64xf32>
    %c2 = arith.constant 2 : index
    %c0_40 = arith.constant 0 : index
    %45 = vector.load %arg14[%c2, %c0_40] : memref<56x64xf32, #tpu.memory_space<vmem>>, vector<1x64xf32>
    %cst_41 = arith.constant 0.000000e+00 : f32
    %46 = vector.broadcast %cst_41 : f32 to vector<1x25xf32>
    %47 = vector.extract_strided_slice %45 {offsets = [0, 0], sizes = [1, 39], strides = [1, 1]} : vector<1x64xf32> to vector<1x39xf32>
    %48 = tpu.concatenate %46, %47 in 1 : vector<1x25xf32>, vector<1x39xf32> -> vector<1x64xf32>
    %c2_42 = arith.constant 2 : index
    %c0_43 = arith.constant 0 : index
    %49 = vector.load %arg4[%c2_42, %c0_43] : memref<56x64xf32, #tpu.memory_space<vmem>>, vector<1x64xf32>
    %50 = arith.mulf %48, %49 : vector<1x64xf32>
    %51 = arith.addf %44, %50 : vector<1x64xf32>
    %c3 = arith.constant 3 : index
    %c0_44 = arith.constant 0 : index
    %52 = vector.load %arg14[%c3, %c0_44] : memref<56x64xf32, #tpu.memory_space<vmem>>, vector<1x64xf32>
    %cst_45 = arith.constant 0.000000e+00 : f32
    %53 = vector.broadcast %cst_45 : f32 to vector<1x24xf32>
    %54 = vector.extract_strided_slice %52 {offsets = [0, 0], sizes = [1, 40], strides = [1, 1]} : vector<1x64xf32> to vector<1x40xf32>
    %55 = tpu.concatenate %53, %54 in 1 : vector<1x24xf32>, vector<1x40xf32> -> vector<1x64xf32>
    %c3_46 = arith.constant 3 : index
    %c0_47 = arith.constant 0 : index
    %56 = vector.load %arg4[%c3_46, %c0_47] : memref<56x64xf32, #tpu.memory_space<vmem>>, vector<1x64xf32>
    %57 = arith.mulf %55, %56 : vector<1x64xf32>
    %58 = arith.addf %51, %57 : vector<1x64xf32>
    %c4 = arith.constant 4 : index
    %c0_48 = arith.constant 0 : index
    %59 = vector.load %arg14[%c4, %c0_48] : memref<56x64xf32, #tpu.memory_space<vmem>>, vector<1x64xf32>
    %cst_49 = arith.constant 0.000000e+00 : f32
    %60 = vector.broadcast %cst_49 : f32 to vector<1x23xf32>
    %61 = vector.extract_strided_slice %59 {offsets = [0, 0], sizes = [1, 41], strides = [1, 1]} : vector<1x64xf32> to vector<1x41xf32>
    %62 = tpu.concatenate %60, %61 in 1 : vector<1x23xf32>, vector<1x41xf32> -> vector<1x64xf32>
    %c4_50 = arith.constant 4 : index
    %c0_51 = arith.constant 0 : index
    %63 = vector.load %arg4[%c4_50, %c0_51] : memref<56x64xf32, #tpu.memory_space<vmem>>, vector<1x64xf32>
    %64 = arith.mulf %62, %63 : vector<1x64xf32>
    %65 = arith.addf %58, %64 : vector<1x64xf32>
    %c5 = arith.constant 5 : index
    %c0_52 = arith.constant 0 : index
    %66 = vector.load %arg14[%c5, %c0_52] : memref<56x64xf32, #tpu.memory_space<vmem>>, vector<1x64xf32>
    %cst_53 = arith.constant 0.000000e+00 : f32
    %67 = vector.broadcast %cst_53 : f32 to vector<1x22xf32>
    %68 = vector.extract_strided_slice %66 {offsets = [0, 0], sizes = [1, 42], strides = [1, 1]} : vector<1x64xf32> to vector<1x42xf32>
    %69 = tpu.concatenate %67, %68 in 1 : vector<1x22xf32>, vector<1x42xf32> -> vector<1x64xf32>
    %c5_54 = arith.constant 5 : index
    %c0_55 = arith.constant 0 : index
    %70 = vector.load %arg4[%c5_54, %c0_55] : memref<56x64xf32, #tpu.memory_space<vmem>>, vector<1x64xf32>
    %71 = arith.mulf %69, %70 : vector<1x64xf32>
    %72 = arith.addf %65, %71 : vector<1x64xf32>
    %c6 = arith.constant 6 : index
    %c0_56 = arith.constant 0 : index
    %73 = vector.load %arg14[%c6, %c0_56] : memref<56x64xf32, #tpu.memory_space<vmem>>, vector<1x64xf32>
    %cst_57 = arith.constant 0.000000e+00 : f32
    %74 = vector.broadcast %cst_57 : f32 to vector<1x21xf32>
    %75 = vector.extract_strided_slice %73 {offsets = [0, 0], sizes = [1, 43], strides = [1, 1]} : vector<1x64xf32> to vector<1x43xf32>
    %76 = tpu.concatenate %74, %75 in 1 : vector<1x21xf32>, vector<1x43xf32> -> vector<1x64xf32>
    %c6_58 = arith.constant 6 : index
    %c0_59 = arith.constant 0 : index
    %77 = vector.load %arg4[%c6_58, %c0_59] : memref<56x64xf32, #tpu.memory_space<vmem>>, vector<1x64xf32>
    %78 = arith.mulf %76, %77 : vector<1x64xf32>
    %79 = arith.addf %72, %78 : vector<1x64xf32>
    %c7 = arith.constant 7 : index
    %c0_60 = arith.constant 0 : index
    %80 = vector.load %arg14[%c7, %c0_60] : memref<56x64xf32, #tpu.memory_space<vmem>>, vector<1x64xf32>
    %cst_61 = arith.constant 0.000000e+00 : f32
    %81 = vector.broadcast %cst_61 : f32 to vector<1x19xf32>
    %82 = vector.extract_strided_slice %80 {offsets = [0, 0], sizes = [1, 45], strides = [1, 1]} : vector<1x64xf32> to vector<1x45xf32>
    %83 = tpu.concatenate %81, %82 in 1 : vector<1x19xf32>, vector<1x45xf32> -> vector<1x64xf32>
    %c7_62 = arith.constant 7 : index
    %c0_63 = arith.constant 0 : index
    %84 = vector.load %arg4[%c7_62, %c0_63] : memref<56x64xf32, #tpu.memory_space<vmem>>, vector<1x64xf32>
    %85 = arith.mulf %83, %84 : vector<1x64xf32>
    %86 = arith.addf %79, %85 : vector<1x64xf32>
    %c8 = arith.constant 8 : index
    %c0_64 = arith.constant 0 : index
    %87 = vector.load %arg14[%c8, %c0_64] : memref<56x64xf32, #tpu.memory_space<vmem>>, vector<1x64xf32>
    %cst_65 = arith.constant 0.000000e+00 : f32
    %88 = vector.broadcast %cst_65 : f32 to vector<1x18xf32>
    %89 = vector.extract_strided_slice %87 {offsets = [0, 0], sizes = [1, 46], strides = [1, 1]} : vector<1x64xf32> to vector<1x46xf32>
    %90 = tpu.concatenate %88, %89 in 1 : vector<1x18xf32>, vector<1x46xf32> -> vector<1x64xf32>
    %c8_66 = arith.constant 8 : index
    %c0_67 = arith.constant 0 : index
    %91 = vector.load %arg4[%c8_66, %c0_67] : memref<56x64xf32, #tpu.memory_space<vmem>>, vector<1x64xf32>
    %92 = arith.mulf %90, %91 : vector<1x64xf32>
    %93 = arith.addf %86, %92 : vector<1x64xf32>
    %c9 = arith.constant 9 : index
    %c0_68 = arith.constant 0 : index
    %94 = vector.load %arg14[%c9, %c0_68] : memref<56x64xf32, #tpu.memory_space<vmem>>, vector<1x64xf32>
    %cst_69 = arith.constant 0.000000e+00 : f32
    %95 = vector.broadcast %cst_69 : f32 to vector<1x17xf32>
    %96 = vector.extract_strided_slice %94 {offsets = [0, 0], sizes = [1, 47], strides = [1, 1]} : vector<1x64xf32> to vector<1x47xf32>
    %97 = tpu.concatenate %95, %96 in 1 : vector<1x17xf32>, vector<1x47xf32> -> vector<1x64xf32>
    %c9_70 = arith.constant 9 : index
    %c0_71 = arith.constant 0 : index
    %98 = vector.load %arg4[%c9_70, %c0_71] : memref<56x64xf32, #tpu.memory_space<vmem>>, vector<1x64xf32>
    %99 = arith.mulf %97, %98 : vector<1x64xf32>
    %100 = arith.addf %93, %99 : vector<1x64xf32>
    %c10 = arith.constant 10 : index
    %c0_72 = arith.constant 0 : index
    %101 = vector.load %arg14[%c10, %c0_72] : memref<56x64xf32, #tpu.memory_space<vmem>>, vector<1x64xf32>
    %cst_73 = arith.constant 0.000000e+00 : f32
    %102 = vector.broadcast %cst_73 : f32 to vector<1x16xf32>
    %103 = vector.extract_strided_slice %101 {offsets = [0, 0], sizes = [1, 48], strides = [1, 1]} : vector<1x64xf32> to vector<1x48xf32>
    %104 = tpu.concatenate %102, %103 in 1 : vector<1x16xf32>, vector<1x48xf32> -> vector<1x64xf32>
    %c10_74 = arith.constant 10 : index
    %c0_75 = arith.constant 0 : index
    %105 = vector.load %arg4[%c10_74, %c0_75] : memref<56x64xf32, #tpu.memory_space<vmem>>, vector<1x64xf32>
    %106 = arith.mulf %104, %105 : vector<1x64xf32>
    %107 = arith.addf %100, %106 : vector<1x64xf32>
    %c11 = arith.constant 11 : index
    %c0_76 = arith.constant 0 : index
    %108 = vector.load %arg14[%c11, %c0_76] : memref<56x64xf32, #tpu.memory_space<vmem>>, vector<1x64xf32>
    %cst_77 = arith.constant 0.000000e+00 : f32
    %109 = vector.broadcast %cst_77 : f32 to vector<1x15xf32>
    %110 = vector.extract_strided_slice %108 {offsets = [0, 0], sizes = [1, 49], strides = [1, 1]} : vector<1x64xf32> to vector<1x49xf32>
    %111 = tpu.concatenate %109, %110 in 1 : vector<1x15xf32>, vector<1x49xf32> -> vector<1x64xf32>
    %c11_78 = arith.constant 11 : index
    %c0_79 = arith.constant 0 : index
    %112 = vector.load %arg4[%c11_78, %c0_79] : memref<56x64xf32, #tpu.memory_space<vmem>>, vector<1x64xf32>
    %113 = arith.mulf %111, %112 : vector<1x64xf32>
    %114 = arith.addf %107, %113 : vector<1x64xf32>
    %c12 = arith.constant 12 : index
    %c0_80 = arith.constant 0 : index
    %115 = vector.load %arg14[%c12, %c0_80] : memref<56x64xf32, #tpu.memory_space<vmem>>, vector<1x64xf32>
    %cst_81 = arith.constant 0.000000e+00 : f32
    %116 = vector.broadcast %cst_81 : f32 to vector<1x14xf32>
    %117 = vector.extract_strided_slice %115 {offsets = [0, 0], sizes = [1, 50], strides = [1, 1]} : vector<1x64xf32> to vector<1x50xf32>
    %118 = tpu.concatenate %116, %117 in 1 : vector<1x14xf32>, vector<1x50xf32> -> vector<1x64xf32>
    %c12_82 = arith.constant 12 : index
    %c0_83 = arith.constant 0 : index
    %119 = vector.load %arg4[%c12_82, %c0_83] : memref<56x64xf32, #tpu.memory_space<vmem>>, vector<1x64xf32>
    %120 = arith.mulf %118, %119 : vector<1x64xf32>
    %121 = arith.addf %114, %120 : vector<1x64xf32>
    %c13 = arith.constant 13 : index
    %c0_84 = arith.constant 0 : index
    %122 = vector.load %arg14[%c13, %c0_84] : memref<56x64xf32, #tpu.memory_space<vmem>>, vector<1x64xf32>
    %cst_85 = arith.constant 0.000000e+00 : f32
    %123 = vector.broadcast %cst_85 : f32 to vector<1x13xf32>
    %124 = vector.extract_strided_slice %122 {offsets = [0, 0], sizes = [1, 51], strides = [1, 1]} : vector<1x64xf32> to vector<1x51xf32>
    %125 = tpu.concatenate %123, %124 in 1 : vector<1x13xf32>, vector<1x51xf32> -> vector<1x64xf32>
    %c13_86 = arith.constant 13 : index
    %c0_87 = arith.constant 0 : index
    %126 = vector.load %arg4[%c13_86, %c0_87] : memref<56x64xf32, #tpu.memory_space<vmem>>, vector<1x64xf32>
    %127 = arith.mulf %125, %126 : vector<1x64xf32>
    %128 = arith.addf %121, %127 : vector<1x64xf32>
    %c14 = arith.constant 14 : index
    %c0_88 = arith.constant 0 : index
    %129 = vector.load %arg14[%c14, %c0_88] : memref<56x64xf32, #tpu.memory_space<vmem>>, vector<1x64xf32>
    %cst_89 = arith.constant 0.000000e+00 : f32
    %130 = vector.broadcast %cst_89 : f32 to vector<1x11xf32>
    %131 = vector.extract_strided_slice %129 {offsets = [0, 0], sizes = [1, 53], strides = [1, 1]} : vector<1x64xf32> to vector<1x53xf32>
    %132 = tpu.concatenate %130, %131 in 1 : vector<1x11xf32>, vector<1x53xf32> -> vector<1x64xf32>
    %c14_90 = arith.constant 14 : index
    %c0_91 = arith.constant 0 : index
    %133 = vector.load %arg4[%c14_90, %c0_91] : memref<56x64xf32, #tpu.memory_space<vmem>>, vector<1x64xf32>
    %134 = arith.mulf %132, %133 : vector<1x64xf32>
    %135 = arith.addf %128, %134 : vector<1x64xf32>
    %c15 = arith.constant 15 : index
    %c0_92 = arith.constant 0 : index
    %136 = vector.load %arg14[%c15, %c0_92] : memref<56x64xf32, #tpu.memory_space<vmem>>, vector<1x64xf32>
    %cst_93 = arith.constant 0.000000e+00 : f32
    %137 = vector.broadcast %cst_93 : f32 to vector<1x10xf32>
    %138 = vector.extract_strided_slice %136 {offsets = [0, 0], sizes = [1, 54], strides = [1, 1]} : vector<1x64xf32> to vector<1x54xf32>
    %139 = tpu.concatenate %137, %138 in 1 : vector<1x10xf32>, vector<1x54xf32> -> vector<1x64xf32>
    %c15_94 = arith.constant 15 : index
    %c0_95 = arith.constant 0 : index
    %140 = vector.load %arg4[%c15_94, %c0_95] : memref<56x64xf32, #tpu.memory_space<vmem>>, vector<1x64xf32>
    %141 = arith.mulf %139, %140 : vector<1x64xf32>
    %142 = arith.addf %135, %141 : vector<1x64xf32>
    %c16 = arith.constant 16 : index
    %c0_96 = arith.constant 0 : index
    %143 = vector.load %arg14[%c16, %c0_96] : memref<56x64xf32, #tpu.memory_space<vmem>>, vector<1x64xf32>
    %cst_97 = arith.constant 0.000000e+00 : f32
    %144 = vector.broadcast %cst_97 : f32 to vector<1x9xf32>
    %145 = vector.extract_strided_slice %143 {offsets = [0, 0], sizes = [1, 55], strides = [1, 1]} : vector<1x64xf32> to vector<1x55xf32>
    %146 = tpu.concatenate %144, %145 in 1 : vector<1x9xf32>, vector<1x55xf32> -> vector<1x64xf32>
    %c16_98 = arith.constant 16 : index
    %c0_99 = arith.constant 0 : index
    %147 = vector.load %arg4[%c16_98, %c0_99] : memref<56x64xf32, #tpu.memory_space<vmem>>, vector<1x64xf32>
    %148 = arith.mulf %146, %147 : vector<1x64xf32>
    %149 = arith.addf %142, %148 : vector<1x64xf32>
    %c17 = arith.constant 17 : index
    %c0_100 = arith.constant 0 : index
    %150 = vector.load %arg14[%c17, %c0_100] : memref<56x64xf32, #tpu.memory_space<vmem>>, vector<1x64xf32>
    %cst_101 = arith.constant 0.000000e+00 : f32
    %151 = vector.broadcast %cst_101 : f32 to vector<1x8xf32>
    %152 = vector.extract_strided_slice %150 {offsets = [0, 0], sizes = [1, 56], strides = [1, 1]} : vector<1x64xf32> to vector<1x56xf32>
    %153 = tpu.concatenate %151, %152 in 1 : vector<1x8xf32>, vector<1x56xf32> -> vector<1x64xf32>
    %c17_102 = arith.constant 17 : index
    %c0_103 = arith.constant 0 : index
    %154 = vector.load %arg4[%c17_102, %c0_103] : memref<56x64xf32, #tpu.memory_space<vmem>>, vector<1x64xf32>
    %155 = arith.mulf %153, %154 : vector<1x64xf32>
    %156 = arith.addf %149, %155 : vector<1x64xf32>
    %c18 = arith.constant 18 : index
    %c0_104 = arith.constant 0 : index
    %157 = vector.load %arg14[%c18, %c0_104] : memref<56x64xf32, #tpu.memory_space<vmem>>, vector<1x64xf32>
    %cst_105 = arith.constant 0.000000e+00 : f32
    %158 = vector.broadcast %cst_105 : f32 to vector<1x7xf32>
    %159 = vector.extract_strided_slice %157 {offsets = [0, 0], sizes = [1, 57], strides = [1, 1]} : vector<1x64xf32> to vector<1x57xf32>
    %160 = tpu.concatenate %158, %159 in 1 : vector<1x7xf32>, vector<1x57xf32> -> vector<1x64xf32>
    %c18_106 = arith.constant 18 : index
    %c0_107 = arith.constant 0 : index
    %161 = vector.load %arg4[%c18_106, %c0_107] : memref<56x64xf32, #tpu.memory_space<vmem>>, vector<1x64xf32>
    %162 = arith.mulf %160, %161 : vector<1x64xf32>
    %163 = arith.addf %156, %162 : vector<1x64xf32>
    %c19 = arith.constant 19 : index
    %c0_108 = arith.constant 0 : index
    %164 = vector.load %arg14[%c19, %c0_108] : memref<56x64xf32, #tpu.memory_space<vmem>>, vector<1x64xf32>
    %cst_109 = arith.constant 0.000000e+00 : f32
    %165 = vector.broadcast %cst_109 : f32 to vector<1x6xf32>
    %166 = vector.extract_strided_slice %164 {offsets = [0, 0], sizes = [1, 58], strides = [1, 1]} : vector<1x64xf32> to vector<1x58xf32>
    %167 = tpu.concatenate %165, %166 in 1 : vector<1x6xf32>, vector<1x58xf32> -> vector<1x64xf32>
    %c19_110 = arith.constant 19 : index
    %c0_111 = arith.constant 0 : index
    %168 = vector.load %arg4[%c19_110, %c0_111] : memref<56x64xf32, #tpu.memory_space<vmem>>, vector<1x64xf32>
    %169 = arith.mulf %167, %168 : vector<1x64xf32>
    %170 = arith.addf %163, %169 : vector<1x64xf32>
    %c20 = arith.constant 20 : index
    %c0_112 = arith.constant 0 : index
    %171 = vector.load %arg14[%c20, %c0_112] : memref<56x64xf32, #tpu.memory_space<vmem>>, vector<1x64xf32>
    %cst_113 = arith.constant 0.000000e+00 : f32
    %172 = vector.broadcast %cst_113 : f32 to vector<1x5xf32>
    %173 = vector.extract_strided_slice %171 {offsets = [0, 0], sizes = [1, 59], strides = [1, 1]} : vector<1x64xf32> to vector<1x59xf32>
    %174 = tpu.concatenate %172, %173 in 1 : vector<1x5xf32>, vector<1x59xf32> -> vector<1x64xf32>
    %c20_114 = arith.constant 20 : index
    %c0_115 = arith.constant 0 : index
    %175 = vector.load %arg4[%c20_114, %c0_115] : memref<56x64xf32, #tpu.memory_space<vmem>>, vector<1x64xf32>
    %176 = arith.mulf %174, %175 : vector<1x64xf32>
    %177 = arith.addf %170, %176 : vector<1x64xf32>
    %c21 = arith.constant 21 : index
    %c0_116 = arith.constant 0 : index
    %178 = vector.load %arg14[%c21, %c0_116] : memref<56x64xf32, #tpu.memory_space<vmem>>, vector<1x64xf32>
    %cst_117 = arith.constant 0.000000e+00 : f32
    %179 = vector.broadcast %cst_117 : f32 to vector<1x3xf32>
    %180 = vector.extract_strided_slice %178 {offsets = [0, 0], sizes = [1, 61], strides = [1, 1]} : vector<1x64xf32> to vector<1x61xf32>
    %181 = tpu.concatenate %179, %180 in 1 : vector<1x3xf32>, vector<1x61xf32> -> vector<1x64xf32>
    %c21_118 = arith.constant 21 : index
    %c0_119 = arith.constant 0 : index
    %182 = vector.load %arg4[%c21_118, %c0_119] : memref<56x64xf32, #tpu.memory_space<vmem>>, vector<1x64xf32>
    %183 = arith.mulf %181, %182 : vector<1x64xf32>
    %184 = arith.addf %177, %183 : vector<1x64xf32>
    %c22 = arith.constant 22 : index
    %c0_120 = arith.constant 0 : index
    %185 = vector.load %arg14[%c22, %c0_120] : memref<56x64xf32, #tpu.memory_space<vmem>>, vector<1x64xf32>
    %cst_121 = arith.constant 0.000000e+00 : f32
    %186 = vector.broadcast %cst_121 : f32 to vector<1x2xf32>
    %187 = vector.extract_strided_slice %185 {offsets = [0, 0], sizes = [1, 62], strides = [1, 1]} : vector<1x64xf32> to vector<1x62xf32>
    %188 = tpu.concatenate %186, %187 in 1 : vector<1x2xf32>, vector<1x62xf32> -> vector<1x64xf32>
    %c22_122 = arith.constant 22 : index
    %c0_123 = arith.constant 0 : index
    %189 = vector.load %arg4[%c22_122, %c0_123] : memref<56x64xf32, #tpu.memory_space<vmem>>, vector<1x64xf32>
    %190 = arith.mulf %188, %189 : vector<1x64xf32>
    %191 = arith.addf %184, %190 : vector<1x64xf32>
    %c23 = arith.constant 23 : index
    %c0_124 = arith.constant 0 : index
    %192 = vector.load %arg14[%c23, %c0_124] : memref<56x64xf32, #tpu.memory_space<vmem>>, vector<1x64xf32>
    %cst_125 = arith.constant 0.000000e+00 : f32
    %193 = vector.broadcast %cst_125 : f32 to vector<1x1xf32>
    %194 = vector.extract_strided_slice %192 {offsets = [0, 0], sizes = [1, 63], strides = [1, 1]} : vector<1x64xf32> to vector<1x63xf32>
    %195 = tpu.concatenate %193, %194 in 1 : vector<1x1xf32>, vector<1x63xf32> -> vector<1x64xf32>
    %c23_126 = arith.constant 23 : index
    %c0_127 = arith.constant 0 : index
    %196 = vector.load %arg4[%c23_126, %c0_127] : memref<56x64xf32, #tpu.memory_space<vmem>>, vector<1x64xf32>
    %197 = arith.mulf %195, %196 : vector<1x64xf32>
    %198 = arith.addf %191, %197 : vector<1x64xf32>
    %c24 = arith.constant 24 : index
    %c0_128 = arith.constant 0 : index
    %199 = vector.load %arg14[%c24, %c0_128] : memref<56x64xf32, #tpu.memory_space<vmem>>, vector<1x64xf32>
    %c24_129 = arith.constant 24 : index
    %c0_130 = arith.constant 0 : index
    %200 = vector.load %arg4[%c24_129, %c0_130] : memref<56x64xf32, #tpu.memory_space<vmem>>, vector<1x64xf32>
    %201 = arith.mulf %199, %200 : vector<1x64xf32>
    %202 = arith.addf %198, %201 : vector<1x64xf32>
    %c25 = arith.constant 25 : index
    %c0_131 = arith.constant 0 : index
    %203 = vector.load %arg14[%c25, %c0_131] : memref<56x64xf32, #tpu.memory_space<vmem>>, vector<1x64xf32>
    %204 = vector.extract_strided_slice %203 {offsets = [0, 1], sizes = [1, 63], strides = [1, 1]} : vector<1x64xf32> to vector<1x63xf32>
    %cst_132 = arith.constant 0.000000e+00 : f32
    %205 = vector.broadcast %cst_132 : f32 to vector<1x1xf32>
    %206 = tpu.concatenate %204, %205 in 1 : vector<1x63xf32>, vector<1x1xf32> -> vector<1x64xf32>
    %c25_133 = arith.constant 25 : index
    %c0_134 = arith.constant 0 : index
    %207 = vector.load %arg4[%c25_133, %c0_134] : memref<56x64xf32, #tpu.memory_space<vmem>>, vector<1x64xf32>
    %208 = arith.mulf %206, %207 : vector<1x64xf32>
    %209 = arith.addf %202, %208 : vector<1x64xf32>
    %c26 = arith.constant 26 : index
    %c0_135 = arith.constant 0 : index
    %210 = vector.load %arg14[%c26, %c0_135] : memref<56x64xf32, #tpu.memory_space<vmem>>, vector<1x64xf32>
    %211 = vector.extract_strided_slice %210 {offsets = [0, 2], sizes = [1, 62], strides = [1, 1]} : vector<1x64xf32> to vector<1x62xf32>
    %cst_136 = arith.constant 0.000000e+00 : f32
    %212 = vector.broadcast %cst_136 : f32 to vector<1x2xf32>
    %213 = tpu.concatenate %211, %212 in 1 : vector<1x62xf32>, vector<1x2xf32> -> vector<1x64xf32>
    %c26_137 = arith.constant 26 : index
    %c0_138 = arith.constant 0 : index
    %214 = vector.load %arg4[%c26_137, %c0_138] : memref<56x64xf32, #tpu.memory_space<vmem>>, vector<1x64xf32>
    %215 = arith.mulf %213, %214 : vector<1x64xf32>
    %216 = arith.addf %209, %215 : vector<1x64xf32>
    %c27 = arith.constant 27 : index
    %c0_139 = arith.constant 0 : index
    %217 = vector.load %arg14[%c27, %c0_139] : memref<56x64xf32, #tpu.memory_space<vmem>>, vector<1x64xf32>
    %218 = vector.extract_strided_slice %217 {offsets = [0, 3], sizes = [1, 61], strides = [1, 1]} : vector<1x64xf32> to vector<1x61xf32>
    %cst_140 = arith.constant 0.000000e+00 : f32
    %219 = vector.broadcast %cst_140 : f32 to vector<1x3xf32>
    %220 = tpu.concatenate %218, %219 in 1 : vector<1x61xf32>, vector<1x3xf32> -> vector<1x64xf32>
    %c27_141 = arith.constant 27 : index
    %c0_142 = arith.constant 0 : index
    %221 = vector.load %arg4[%c27_141, %c0_142] : memref<56x64xf32, #tpu.memory_space<vmem>>, vector<1x64xf32>
    %222 = arith.mulf %220, %221 : vector<1x64xf32>
    %223 = arith.addf %216, %222 : vector<1x64xf32>
    %c28 = arith.constant 28 : index
    %c0_143 = arith.constant 0 : index
    %224 = vector.load %arg14[%c28, %c0_143] : memref<56x64xf32, #tpu.memory_space<vmem>>, vector<1x64xf32>
    %225 = vector.extract_strided_slice %224 {offsets = [0, 5], sizes = [1, 59], strides = [1, 1]} : vector<1x64xf32> to vector<1x59xf32>
    %cst_144 = arith.constant 0.000000e+00 : f32
    %226 = vector.broadcast %cst_144 : f32 to vector<1x5xf32>
    %227 = tpu.concatenate %225, %226 in 1 : vector<1x59xf32>, vector<1x5xf32> -> vector<1x64xf32>
    %c28_145 = arith.constant 28 : index
    %c0_146 = arith.constant 0 : index
    %228 = vector.load %arg4[%c28_145, %c0_146] : memref<56x64xf32, #tpu.memory_space<vmem>>, vector<1x64xf32>
    %229 = arith.mulf %227, %228 : vector<1x64xf32>
    %230 = arith.addf %223, %229 : vector<1x64xf32>
    %c29 = arith.constant 29 : index
    %c0_147 = arith.constant 0 : index
    %231 = vector.load %arg14[%c29, %c0_147] : memref<56x64xf32, #tpu.memory_space<vmem>>, vector<1x64xf32>
    %232 = vector.extract_strided_slice %231 {offsets = [0, 6], sizes = [1, 58], strides = [1, 1]} : vector<1x64xf32> to vector<1x58xf32>
    %cst_148 = arith.constant 0.000000e+00 : f32
    %233 = vector.broadcast %cst_148 : f32 to vector<1x6xf32>
    %234 = tpu.concatenate %232, %233 in 1 : vector<1x58xf32>, vector<1x6xf32> -> vector<1x64xf32>
    %c29_149 = arith.constant 29 : index
    %c0_150 = arith.constant 0 : index
    %235 = vector.load %arg4[%c29_149, %c0_150] : memref<56x64xf32, #tpu.memory_space<vmem>>, vector<1x64xf32>
    %236 = arith.mulf %234, %235 : vector<1x64xf32>
    %237 = arith.addf %230, %236 : vector<1x64xf32>
    %c30 = arith.constant 30 : index
    %c0_151 = arith.constant 0 : index
    %238 = vector.load %arg14[%c30, %c0_151] : memref<56x64xf32, #tpu.memory_space<vmem>>, vector<1x64xf32>
    %239 = vector.extract_strided_slice %238 {offsets = [0, 7], sizes = [1, 57], strides = [1, 1]} : vector<1x64xf32> to vector<1x57xf32>
    %cst_152 = arith.constant 0.000000e+00 : f32
    %240 = vector.broadcast %cst_152 : f32 to vector<1x7xf32>
    %241 = tpu.concatenate %239, %240 in 1 : vector<1x57xf32>, vector<1x7xf32> -> vector<1x64xf32>
    %c30_153 = arith.constant 30 : index
    %c0_154 = arith.constant 0 : index
    %242 = vector.load %arg4[%c30_153, %c0_154] : memref<56x64xf32, #tpu.memory_space<vmem>>, vector<1x64xf32>
    %243 = arith.mulf %241, %242 : vector<1x64xf32>
    %244 = arith.addf %237, %243 : vector<1x64xf32>
    %c31 = arith.constant 31 : index
    %c0_155 = arith.constant 0 : index
    %245 = vector.load %arg14[%c31, %c0_155] : memref<56x64xf32, #tpu.memory_space<vmem>>, vector<1x64xf32>
    %246 = vector.extract_strided_slice %245 {offsets = [0, 8], sizes = [1, 56], strides = [1, 1]} : vector<1x64xf32> to vector<1x56xf32>
    %cst_156 = arith.constant 0.000000e+00 : f32
    %247 = vector.broadcast %cst_156 : f32 to vector<1x8xf32>
    %248 = tpu.concatenate %246, %247 in 1 : vector<1x56xf32>, vector<1x8xf32> -> vector<1x64xf32>
    %c31_157 = arith.constant 31 : index
    %c0_158 = arith.constant 0 : index
    %249 = vector.load %arg4[%c31_157, %c0_158] : memref<56x64xf32, #tpu.memory_space<vmem>>, vector<1x64xf32>
    %250 = arith.mulf %248, %249 : vector<1x64xf32>
    %251 = arith.addf %244, %250 : vector<1x64xf32>
    %c32 = arith.constant 32 : index
    %c0_159 = arith.constant 0 : index
    %252 = vector.load %arg14[%c32, %c0_159] : memref<56x64xf32, #tpu.memory_space<vmem>>, vector<1x64xf32>
    %253 = vector.extract_strided_slice %252 {offsets = [0, 9], sizes = [1, 55], strides = [1, 1]} : vector<1x64xf32> to vector<1x55xf32>
    %cst_160 = arith.constant 0.000000e+00 : f32
    %254 = vector.broadcast %cst_160 : f32 to vector<1x9xf32>
    %255 = tpu.concatenate %253, %254 in 1 : vector<1x55xf32>, vector<1x9xf32> -> vector<1x64xf32>
    %c32_161 = arith.constant 32 : index
    %c0_162 = arith.constant 0 : index
    %256 = vector.load %arg4[%c32_161, %c0_162] : memref<56x64xf32, #tpu.memory_space<vmem>>, vector<1x64xf32>
    %257 = arith.mulf %255, %256 : vector<1x64xf32>
    %258 = arith.addf %251, %257 : vector<1x64xf32>
    %c33 = arith.constant 33 : index
    %c0_163 = arith.constant 0 : index
    %259 = vector.load %arg14[%c33, %c0_163] : memref<56x64xf32, #tpu.memory_space<vmem>>, vector<1x64xf32>
    %260 = vector.extract_strided_slice %259 {offsets = [0, 10], sizes = [1, 54], strides = [1, 1]} : vector<1x64xf32> to vector<1x54xf32>
    %cst_164 = arith.constant 0.000000e+00 : f32
    %261 = vector.broadcast %cst_164 : f32 to vector<1x10xf32>
    %262 = tpu.concatenate %260, %261 in 1 : vector<1x54xf32>, vector<1x10xf32> -> vector<1x64xf32>
    %c33_165 = arith.constant 33 : index
    %c0_166 = arith.constant 0 : index
    %263 = vector.load %arg4[%c33_165, %c0_166] : memref<56x64xf32, #tpu.memory_space<vmem>>, vector<1x64xf32>
    %264 = arith.mulf %262, %263 : vector<1x64xf32>
    %265 = arith.addf %258, %264 : vector<1x64xf32>
    %c34 = arith.constant 34 : index
    %c0_167 = arith.constant 0 : index
    %266 = vector.load %arg14[%c34, %c0_167] : memref<56x64xf32, #tpu.memory_space<vmem>>, vector<1x64xf32>
    %267 = vector.extract_strided_slice %266 {offsets = [0, 11], sizes = [1, 53], strides = [1, 1]} : vector<1x64xf32> to vector<1x53xf32>
    %cst_168 = arith.constant 0.000000e+00 : f32
    %268 = vector.broadcast %cst_168 : f32 to vector<1x11xf32>
    %269 = tpu.concatenate %267, %268 in 1 : vector<1x53xf32>, vector<1x11xf32> -> vector<1x64xf32>
    %c34_169 = arith.constant 34 : index
    %c0_170 = arith.constant 0 : index
    %270 = vector.load %arg4[%c34_169, %c0_170] : memref<56x64xf32, #tpu.memory_space<vmem>>, vector<1x64xf32>
    %271 = arith.mulf %269, %270 : vector<1x64xf32>
    %272 = arith.addf %265, %271 : vector<1x64xf32>
    %c35 = arith.constant 35 : index
    %c0_171 = arith.constant 0 : index
    %273 = vector.load %arg14[%c35, %c0_171] : memref<56x64xf32, #tpu.memory_space<vmem>>, vector<1x64xf32>
    %274 = vector.extract_strided_slice %273 {offsets = [0, 13], sizes = [1, 51], strides = [1, 1]} : vector<1x64xf32> to vector<1x51xf32>
    %cst_172 = arith.constant 0.000000e+00 : f32
    %275 = vector.broadcast %cst_172 : f32 to vector<1x13xf32>
    %276 = tpu.concatenate %274, %275 in 1 : vector<1x51xf32>, vector<1x13xf32> -> vector<1x64xf32>
    %c35_173 = arith.constant 35 : index
    %c0_174 = arith.constant 0 : index
    %277 = vector.load %arg4[%c35_173, %c0_174] : memref<56x64xf32, #tpu.memory_space<vmem>>, vector<1x64xf32>
    %278 = arith.mulf %276, %277 : vector<1x64xf32>
    %279 = arith.addf %272, %278 : vector<1x64xf32>
    %c36 = arith.constant 36 : index
    %c0_175 = arith.constant 0 : index
    %280 = vector.load %arg14[%c36, %c0_175] : memref<56x64xf32, #tpu.memory_space<vmem>>, vector<1x64xf32>
    %281 = vector.extract_strided_slice %280 {offsets = [0, 14], sizes = [1, 50], strides = [1, 1]} : vector<1x64xf32> to vector<1x50xf32>
    %cst_176 = arith.constant 0.000000e+00 : f32
    %282 = vector.broadcast %cst_176 : f32 to vector<1x14xf32>
    %283 = tpu.concatenate %281, %282 in 1 : vector<1x50xf32>, vector<1x14xf32> -> vector<1x64xf32>
    %c36_177 = arith.constant 36 : index
    %c0_178 = arith.constant 0 : index
    %284 = vector.load %arg4[%c36_177, %c0_178] : memref<56x64xf32, #tpu.memory_space<vmem>>, vector<1x64xf32>
    %285 = arith.mulf %283, %284 : vector<1x64xf32>
    %286 = arith.addf %279, %285 : vector<1x64xf32>
    %c37 = arith.constant 37 : index
    %c0_179 = arith.constant 0 : index
    %287 = vector.load %arg14[%c37, %c0_179] : memref<56x64xf32, #tpu.memory_space<vmem>>, vector<1x64xf32>
    %288 = vector.extract_strided_slice %287 {offsets = [0, 15], sizes = [1, 49], strides = [1, 1]} : vector<1x64xf32> to vector<1x49xf32>
    %cst_180 = arith.constant 0.000000e+00 : f32
    %289 = vector.broadcast %cst_180 : f32 to vector<1x15xf32>
    %290 = tpu.concatenate %288, %289 in 1 : vector<1x49xf32>, vector<1x15xf32> -> vector<1x64xf32>
    %c37_181 = arith.constant 37 : index
    %c0_182 = arith.constant 0 : index
    %291 = vector.load %arg4[%c37_181, %c0_182] : memref<56x64xf32, #tpu.memory_space<vmem>>, vector<1x64xf32>
    %292 = arith.mulf %290, %291 : vector<1x64xf32>
    %293 = arith.addf %286, %292 : vector<1x64xf32>
    %c38 = arith.constant 38 : index
    %c0_183 = arith.constant 0 : index
    %294 = vector.load %arg14[%c38, %c0_183] : memref<56x64xf32, #tpu.memory_space<vmem>>, vector<1x64xf32>
    %295 = vector.extract_strided_slice %294 {offsets = [0, 16], sizes = [1, 48], strides = [1, 1]} : vector<1x64xf32> to vector<1x48xf32>
    %cst_184 = arith.constant 0.000000e+00 : f32
    %296 = vector.broadcast %cst_184 : f32 to vector<1x16xf32>
    %297 = tpu.concatenate %295, %296 in 1 : vector<1x48xf32>, vector<1x16xf32> -> vector<1x64xf32>
    %c38_185 = arith.constant 38 : index
    %c0_186 = arith.constant 0 : index
    %298 = vector.load %arg4[%c38_185, %c0_186] : memref<56x64xf32, #tpu.memory_space<vmem>>, vector<1x64xf32>
    %299 = arith.mulf %297, %298 : vector<1x64xf32>
    %300 = arith.addf %293, %299 : vector<1x64xf32>
    %c39 = arith.constant 39 : index
    %c0_187 = arith.constant 0 : index
    %301 = vector.load %arg14[%c39, %c0_187] : memref<56x64xf32, #tpu.memory_space<vmem>>, vector<1x64xf32>
    %302 = vector.extract_strided_slice %301 {offsets = [0, 17], sizes = [1, 47], strides = [1, 1]} : vector<1x64xf32> to vector<1x47xf32>
    %cst_188 = arith.constant 0.000000e+00 : f32
    %303 = vector.broadcast %cst_188 : f32 to vector<1x17xf32>
    %304 = tpu.concatenate %302, %303 in 1 : vector<1x47xf32>, vector<1x17xf32> -> vector<1x64xf32>
    %c39_189 = arith.constant 39 : index
    %c0_190 = arith.constant 0 : index
    %305 = vector.load %arg4[%c39_189, %c0_190] : memref<56x64xf32, #tpu.memory_space<vmem>>, vector<1x64xf32>
    %306 = arith.mulf %304, %305 : vector<1x64xf32>
    %307 = arith.addf %300, %306 : vector<1x64xf32>
    %c40 = arith.constant 40 : index
    %c0_191 = arith.constant 0 : index
    %308 = vector.load %arg14[%c40, %c0_191] : memref<56x64xf32, #tpu.memory_space<vmem>>, vector<1x64xf32>
    %309 = vector.extract_strided_slice %308 {offsets = [0, 18], sizes = [1, 46], strides = [1, 1]} : vector<1x64xf32> to vector<1x46xf32>
    %cst_192 = arith.constant 0.000000e+00 : f32
    %310 = vector.broadcast %cst_192 : f32 to vector<1x18xf32>
    %311 = tpu.concatenate %309, %310 in 1 : vector<1x46xf32>, vector<1x18xf32> -> vector<1x64xf32>
    %c40_193 = arith.constant 40 : index
    %c0_194 = arith.constant 0 : index
    %312 = vector.load %arg4[%c40_193, %c0_194] : memref<56x64xf32, #tpu.memory_space<vmem>>, vector<1x64xf32>
    %313 = arith.mulf %311, %312 : vector<1x64xf32>
    %314 = arith.addf %307, %313 : vector<1x64xf32>
    %c41 = arith.constant 41 : index
    %c0_195 = arith.constant 0 : index
    %315 = vector.load %arg14[%c41, %c0_195] : memref<56x64xf32, #tpu.memory_space<vmem>>, vector<1x64xf32>
    %316 = vector.extract_strided_slice %315 {offsets = [0, 19], sizes = [1, 45], strides = [1, 1]} : vector<1x64xf32> to vector<1x45xf32>
    %cst_196 = arith.constant 0.000000e+00 : f32
    %317 = vector.broadcast %cst_196 : f32 to vector<1x19xf32>
    %318 = tpu.concatenate %316, %317 in 1 : vector<1x45xf32>, vector<1x19xf32> -> vector<1x64xf32>
    %c41_197 = arith.constant 41 : index
    %c0_198 = arith.constant 0 : index
    %319 = vector.load %arg4[%c41_197, %c0_198] : memref<56x64xf32, #tpu.memory_space<vmem>>, vector<1x64xf32>
    %320 = arith.mulf %318, %319 : vector<1x64xf32>
    %321 = arith.addf %314, %320 : vector<1x64xf32>
    %c42 = arith.constant 42 : index
    %c0_199 = arith.constant 0 : index
    %322 = vector.load %arg14[%c42, %c0_199] : memref<56x64xf32, #tpu.memory_space<vmem>>, vector<1x64xf32>
    %323 = vector.extract_strided_slice %322 {offsets = [0, 21], sizes = [1, 43], strides = [1, 1]} : vector<1x64xf32> to vector<1x43xf32>
    %cst_200 = arith.constant 0.000000e+00 : f32
    %324 = vector.broadcast %cst_200 : f32 to vector<1x21xf32>
    %325 = tpu.concatenate %323, %324 in 1 : vector<1x43xf32>, vector<1x21xf32> -> vector<1x64xf32>
    %c42_201 = arith.constant 42 : index
    %c0_202 = arith.constant 0 : index
    %326 = vector.load %arg4[%c42_201, %c0_202] : memref<56x64xf32, #tpu.memory_space<vmem>>, vector<1x64xf32>
    %327 = arith.mulf %325, %326 : vector<1x64xf32>
    %328 = arith.addf %321, %327 : vector<1x64xf32>
    %c43 = arith.constant 43 : index
    %c0_203 = arith.constant 0 : index
    %329 = vector.load %arg14[%c43, %c0_203] : memref<56x64xf32, #tpu.memory_space<vmem>>, vector<1x64xf32>
    %330 = vector.extract_strided_slice %329 {offsets = [0, 22], sizes = [1, 42], strides = [1, 1]} : vector<1x64xf32> to vector<1x42xf32>
    %cst_204 = arith.constant 0.000000e+00 : f32
    %331 = vector.broadcast %cst_204 : f32 to vector<1x22xf32>
    %332 = tpu.concatenate %330, %331 in 1 : vector<1x42xf32>, vector<1x22xf32> -> vector<1x64xf32>
    %c43_205 = arith.constant 43 : index
    %c0_206 = arith.constant 0 : index
    %333 = vector.load %arg4[%c43_205, %c0_206] : memref<56x64xf32, #tpu.memory_space<vmem>>, vector<1x64xf32>
    %334 = arith.mulf %332, %333 : vector<1x64xf32>
    %335 = arith.addf %328, %334 : vector<1x64xf32>
    %c44 = arith.constant 44 : index
    %c0_207 = arith.constant 0 : index
    %336 = vector.load %arg14[%c44, %c0_207] : memref<56x64xf32, #tpu.memory_space<vmem>>, vector<1x64xf32>
    %337 = vector.extract_strided_slice %336 {offsets = [0, 23], sizes = [1, 41], strides = [1, 1]} : vector<1x64xf32> to vector<1x41xf32>
    %cst_208 = arith.constant 0.000000e+00 : f32
    %338 = vector.broadcast %cst_208 : f32 to vector<1x23xf32>
    %339 = tpu.concatenate %337, %338 in 1 : vector<1x41xf32>, vector<1x23xf32> -> vector<1x64xf32>
    %c44_209 = arith.constant 44 : index
    %c0_210 = arith.constant 0 : index
    %340 = vector.load %arg4[%c44_209, %c0_210] : memref<56x64xf32, #tpu.memory_space<vmem>>, vector<1x64xf32>
    %341 = arith.mulf %339, %340 : vector<1x64xf32>
    %342 = arith.addf %335, %341 : vector<1x64xf32>
    %c45 = arith.constant 45 : index
    %c0_211 = arith.constant 0 : index
    %343 = vector.load %arg14[%c45, %c0_211] : memref<56x64xf32, #tpu.memory_space<vmem>>, vector<1x64xf32>
    %344 = vector.extract_strided_slice %343 {offsets = [0, 24], sizes = [1, 40], strides = [1, 1]} : vector<1x64xf32> to vector<1x40xf32>
    %cst_212 = arith.constant 0.000000e+00 : f32
    %345 = vector.broadcast %cst_212 : f32 to vector<1x24xf32>
    %346 = tpu.concatenate %344, %345 in 1 : vector<1x40xf32>, vector<1x24xf32> -> vector<1x64xf32>
    %c45_213 = arith.constant 45 : index
    %c0_214 = arith.constant 0 : index
    %347 = vector.load %arg4[%c45_213, %c0_214] : memref<56x64xf32, #tpu.memory_space<vmem>>, vector<1x64xf32>
    %348 = arith.mulf %346, %347 : vector<1x64xf32>
    %349 = arith.addf %342, %348 : vector<1x64xf32>
    %c46 = arith.constant 46 : index
    %c0_215 = arith.constant 0 : index
    %350 = vector.load %arg14[%c46, %c0_215] : memref<56x64xf32, #tpu.memory_space<vmem>>, vector<1x64xf32>
    %351 = vector.extract_strided_slice %350 {offsets = [0, 25], sizes = [1, 39], strides = [1, 1]} : vector<1x64xf32> to vector<1x39xf32>
    %cst_216 = arith.constant 0.000000e+00 : f32
    %352 = vector.broadcast %cst_216 : f32 to vector<1x25xf32>
    %353 = tpu.concatenate %351, %352 in 1 : vector<1x39xf32>, vector<1x25xf32> -> vector<1x64xf32>
    %c46_217 = arith.constant 46 : index
    %c0_218 = arith.constant 0 : index
    %354 = vector.load %arg4[%c46_217, %c0_218] : memref<56x64xf32, #tpu.memory_space<vmem>>, vector<1x64xf32>
    %355 = arith.mulf %353, %354 : vector<1x64xf32>
    %356 = arith.addf %349, %355 : vector<1x64xf32>
    %c47 = arith.constant 47 : index
    %c0_219 = arith.constant 0 : index
    %357 = vector.load %arg14[%c47, %c0_219] : memref<56x64xf32, #tpu.memory_space<vmem>>, vector<1x64xf32>
    %358 = vector.extract_strided_slice %357 {offsets = [0, 26], sizes = [1, 38], strides = [1, 1]} : vector<1x64xf32> to vector<1x38xf32>
    %cst_220 = arith.constant 0.000000e+00 : f32
    %359 = vector.broadcast %cst_220 : f32 to vector<1x26xf32>
    %360 = tpu.concatenate %358, %359 in 1 : vector<1x38xf32>, vector<1x26xf32> -> vector<1x64xf32>
    %c47_221 = arith.constant 47 : index
    %c0_222 = arith.constant 0 : index
    %361 = vector.load %arg4[%c47_221, %c0_222] : memref<56x64xf32, #tpu.memory_space<vmem>>, vector<1x64xf32>
    %362 = arith.mulf %360, %361 : vector<1x64xf32>
    %363 = arith.addf %356, %362 : vector<1x64xf32>
    %c48 = arith.constant 48 : index
    %c0_223 = arith.constant 0 : index
    %364 = vector.load %arg14[%c48, %c0_223] : memref<56x64xf32, #tpu.memory_space<vmem>>, vector<1x64xf32>
    %365 = vector.extract_strided_slice %364 {offsets = [0, 27], sizes = [1, 37], strides = [1, 1]} : vector<1x64xf32> to vector<1x37xf32>
    %cst_224 = arith.constant 0.000000e+00 : f32
    %366 = vector.broadcast %cst_224 : f32 to vector<1x27xf32>
    %367 = tpu.concatenate %365, %366 in 1 : vector<1x37xf32>, vector<1x27xf32> -> vector<1x64xf32>
    %c48_225 = arith.constant 48 : index
    %c0_226 = arith.constant 0 : index
    %368 = vector.load %arg4[%c48_225, %c0_226] : memref<56x64xf32, #tpu.memory_space<vmem>>, vector<1x64xf32>
    %369 = arith.mulf %367, %368 : vector<1x64xf32>
    %370 = arith.addf %363, %369 : vector<1x64xf32>
    %cst_227 = arith.constant 0.000000e+00 : f32
    %371 = vector.broadcast %cst_227 : f32 to vector<1x64xf32>
    %372 = arith.subf %371, %370 : vector<1x64xf32>
    %373 = math.exp %372 : vector<1x64xf32>
    %cst_228 = arith.constant 1.000000e+00 : f32
    %374 = vector.broadcast %cst_228 : f32 to vector<1x64xf32>
    %375 = arith.addf %374, %373 : vector<1x64xf32>
    %cst_229 = arith.constant 1.000000e+00 : f32
    %376 = vector.broadcast %cst_229 : f32 to vector<1x64xf32>
    %377 = arith.divf %376, %375 : vector<1x64xf32>
    %378 = vector.broadcast %377 : vector<1x64xf32> to vector<32x64xf32>
    %379 = arith.mulf %27, %378 : vector<32x64xf32>
    %c0_230 = arith.constant 0 : index
    %c0_231 = arith.constant 0 : index
    %c0_232 = arith.constant 0 : index
    %380 = vector.load %arg12[%c0_230, %c0_231, %c0_232] : memref<2x32x64xf32, #tpu.memory_space<vmem>>, vector<1x32x64xf32>
    %381 = vector.shape_cast %380 : vector<1x32x64xf32> to vector<32x64xf32>
    %382 = vector.shape_cast %379 : vector<32x64xf32> to vector<1x32x64xf32>
    tpu.vector_store %arg12[%c0_230, %c0_231, %c0_232], %382 {strides = array<i32>} : memref<2x32x64xf32, #tpu.memory_space<vmem>>, vector<1x32x64xf32>,
    %c1_233 = arith.constant 1 : index
    %c0_234 = arith.constant 0 : index
    %c0_235 = arith.constant 0 : index
    %383 = vector.load %arg0[%c1_233, %c0_234, %c0_235] : memref<2x32x64xf32, #tpu.memory_space<vmem>>, vector<1x32x64xf32>
    %384 = vector.shape_cast %383 : vector<1x32x64xf32> to vector<32x64xf32>
    %cst_236 = arith.constant dense<0.000000e+00> : vector<32xf32>
    %385 = vector.multi_reduction <add>, %384, %cst_236 [1] : vector<32x64xf32> to vector<32xf32>
    %386 = vector.shape_cast %385 : vector<32xf32> to vector<32x1xf32>
    %cst_237 = arith.constant 1.562500e-02 : f32
    %387 = vector.broadcast %cst_237 : f32 to vector<32x1xf32>
    %388 = arith.mulf %386, %387 : vector<32x1xf32>
    %cst_238 = arith.constant dense<0.000000e+00> : vector<2x1xf32>
    %389 = tpu.matmul %0, %388, %cst_238 {dimension_numbers = #tpu.dot_dimension_numbers<[1], [0], [0], [1], [0, 0, 1, 1], [], []>} : vector<2x32xf32>, vector<32x1xf32>, vector<2x1xf32> -> vector<2x1xf32>
    %cst_239 = arith.constant 0.000000e+00 : f32
    %390 = vector.broadcast %cst_239 : f32 to vector<2x1xf32>
    %391 = arith.maximumf %389, %390 : vector<2x1xf32>
    %cst_240 = arith.constant dense<0.000000e+00> : vector<32x1xf32>
    %392 = tpu.matmul %1, %391, %cst_240 {dimension_numbers = #tpu.dot_dimension_numbers<[1], [0], [0], [1], [0, 0, 1, 1], [], []>} : vector<32x2xf32>, vector<2x1xf32>, vector<32x1xf32> -> vector<32x1xf32>
    %cst_241 = arith.constant 0.000000e+00 : f32
    %393 = vector.broadcast %cst_241 : f32 to vector<32x1xf32>
    %394 = arith.subf %393, %392 : vector<32x1xf32>
    %395 = math.exp %394 : vector<32x1xf32>
    %cst_242 = arith.constant 1.000000e+00 : f32
    %396 = vector.broadcast %cst_242 : f32 to vector<32x1xf32>
    %397 = arith.addf %396, %395 : vector<32x1xf32>
    %cst_243 = arith.constant 1.000000e+00 : f32
    %398 = vector.broadcast %cst_243 : f32 to vector<32x1xf32>
    %399 = arith.divf %398, %397 : vector<32x1xf32>
    %400 = vector.broadcast %399 : vector<32x1xf32> to vector<32x64xf32>
    %401 = arith.mulf %384, %400 : vector<32x64xf32>
    %cst_244 = arith.constant dense<0.000000e+00> : vector<56x64xf32>
    %402 = tpu.matmul %2, %401, %cst_244 {dimension_numbers = #tpu.dot_dimension_numbers<[1], [0], [0], [1], [0, 0, 1, 1], [], []>} : vector<56x32xf32>, vector<32x64xf32>, vector<56x64xf32> -> vector<56x64xf32>
    %c0_245 = arith.constant 0 : index
    %c0_246 = arith.constant 0 : index
    %403 = vector.load %arg14[%c0_245, %c0_246] : memref<56x64xf32, #tpu.memory_space<vmem>>, vector<56x64xf32>
    tpu.vector_store %arg14[%c0_245, %c0_246], %402 {strides = array<i32>} : memref<56x64xf32, #tpu.memory_space<vmem>>, vector<56x64xf32>,
    %cst_247 = arith.constant 0.000000e+00 : f32
    %404 = vector.broadcast %cst_247 : f32 to vector<1x64xf32>
    %c0_248 = arith.constant 0 : index
    %c0_249 = arith.constant 0 : index
    %405 = vector.load %arg14[%c0_248, %c0_249] : memref<56x64xf32, #tpu.memory_space<vmem>>, vector<1x64xf32>
    %cst_250 = arith.constant 0.000000e+00 : f32
    %406 = vector.broadcast %cst_250 : f32 to vector<1x27xf32>
    %407 = vector.extract_strided_slice %405 {offsets = [0, 0], sizes = [1, 37], strides = [1, 1]} : vector<1x64xf32> to vector<1x37xf32>
    %408 = tpu.concatenate %406, %407 in 1 : vector<1x27xf32>, vector<1x37xf32> -> vector<1x64xf32>
    %c0_251 = arith.constant 0 : index
    %c0_252 = arith.constant 0 : index
    %409 = vector.load %arg4[%c0_251, %c0_252] : memref<56x64xf32, #tpu.memory_space<vmem>>, vector<1x64xf32>
    %410 = arith.mulf %408, %409 : vector<1x64xf32>
    %411 = arith.addf %404, %410 : vector<1x64xf32>
    %c1_253 = arith.constant 1 : index
    %c0_254 = arith.constant 0 : index
    %412 = vector.load %arg14[%c1_253, %c0_254] : memref<56x64xf32, #tpu.memory_space<vmem>>, vector<1x64xf32>
    %cst_255 = arith.constant 0.000000e+00 : f32
    %413 = vector.broadcast %cst_255 : f32 to vector<1x26xf32>
    %414 = vector.extract_strided_slice %412 {offsets = [0, 0], sizes = [1, 38], strides = [1, 1]} : vector<1x64xf32> to vector<1x38xf32>
    %415 = tpu.concatenate %413, %414 in 1 : vector<1x26xf32>, vector<1x38xf32> -> vector<1x64xf32>
    %c1_256 = arith.constant 1 : index
    %c0_257 = arith.constant 0 : index
    %416 = vector.load %arg4[%c1_256, %c0_257] : memref<56x64xf32, #tpu.memory_space<vmem>>, vector<1x64xf32>
    %417 = arith.mulf %415, %416 : vector<1x64xf32>
    %418 = arith.addf %411, %417 : vector<1x64xf32>
    %c2_258 = arith.constant 2 : index
    %c0_259 = arith.constant 0 : index
    %419 = vector.load %arg14[%c2_258, %c0_259] : memref<56x64xf32, #tpu.memory_space<vmem>>, vector<1x64xf32>
    %cst_260 = arith.constant 0.000000e+00 : f32
    %420 = vector.broadcast %cst_260 : f32 to vector<1x25xf32>
    %421 = vector.extract_strided_slice %419 {offsets = [0, 0], sizes = [1, 39], strides = [1, 1]} : vector<1x64xf32> to vector<1x39xf32>
    %422 = tpu.concatenate %420, %421 in 1 : vector<1x25xf32>, vector<1x39xf32> -> vector<1x64xf32>
    %c2_261 = arith.constant 2 : index
    %c0_262 = arith.constant 0 : index
    %423 = vector.load %arg4[%c2_261, %c0_262] : memref<56x64xf32, #tpu.memory_space<vmem>>, vector<1x64xf32>
    %424 = arith.mulf %422, %423 : vector<1x64xf32>
    %425 = arith.addf %418, %424 : vector<1x64xf32>
    %c3_263 = arith.constant 3 : index
    %c0_264 = arith.constant 0 : index
    %426 = vector.load %arg14[%c3_263, %c0_264] : memref<56x64xf32, #tpu.memory_space<vmem>>, vector<1x64xf32>
    %cst_265 = arith.constant 0.000000e+00 : f32
    %427 = vector.broadcast %cst_265 : f32 to vector<1x24xf32>
    %428 = vector.extract_strided_slice %426 {offsets = [0, 0], sizes = [1, 40], strides = [1, 1]} : vector<1x64xf32> to vector<1x40xf32>
    %429 = tpu.concatenate %427, %428 in 1 : vector<1x24xf32>, vector<1x40xf32> -> vector<1x64xf32>
    %c3_266 = arith.constant 3 : index
    %c0_267 = arith.constant 0 : index
    %430 = vector.load %arg4[%c3_266, %c0_267] : memref<56x64xf32, #tpu.memory_space<vmem>>, vector<1x64xf32>
    %431 = arith.mulf %429, %430 : vector<1x64xf32>
    %432 = arith.addf %425, %431 : vector<1x64xf32>
    %c4_268 = arith.constant 4 : index
    %c0_269 = arith.constant 0 : index
    %433 = vector.load %arg14[%c4_268, %c0_269] : memref<56x64xf32, #tpu.memory_space<vmem>>, vector<1x64xf32>
    %cst_270 = arith.constant 0.000000e+00 : f32
    %434 = vector.broadcast %cst_270 : f32 to vector<1x23xf32>
    %435 = vector.extract_strided_slice %433 {offsets = [0, 0], sizes = [1, 41], strides = [1, 1]} : vector<1x64xf32> to vector<1x41xf32>
    %436 = tpu.concatenate %434, %435 in 1 : vector<1x23xf32>, vector<1x41xf32> -> vector<1x64xf32>
    %c4_271 = arith.constant 4 : index
    %c0_272 = arith.constant 0 : index
    %437 = vector.load %arg4[%c4_271, %c0_272] : memref<56x64xf32, #tpu.memory_space<vmem>>, vector<1x64xf32>
    %438 = arith.mulf %436, %437 : vector<1x64xf32>
    %439 = arith.addf %432, %438 : vector<1x64xf32>
    %c5_273 = arith.constant 5 : index
    %c0_274 = arith.constant 0 : index
    %440 = vector.load %arg14[%c5_273, %c0_274] : memref<56x64xf32, #tpu.memory_space<vmem>>, vector<1x64xf32>
    %cst_275 = arith.constant 0.000000e+00 : f32
    %441 = vector.broadcast %cst_275 : f32 to vector<1x22xf32>
    %442 = vector.extract_strided_slice %440 {offsets = [0, 0], sizes = [1, 42], strides = [1, 1]} : vector<1x64xf32> to vector<1x42xf32>
    %443 = tpu.concatenate %441, %442 in 1 : vector<1x22xf32>, vector<1x42xf32> -> vector<1x64xf32>
    %c5_276 = arith.constant 5 : index
    %c0_277 = arith.constant 0 : index
    %444 = vector.load %arg4[%c5_276, %c0_277] : memref<56x64xf32, #tpu.memory_space<vmem>>, vector<1x64xf32>
    %445 = arith.mulf %443, %444 : vector<1x64xf32>
    %446 = arith.addf %439, %445 : vector<1x64xf32>
    %c6_278 = arith.constant 6 : index
    %c0_279 = arith.constant 0 : index
    %447 = vector.load %arg14[%c6_278, %c0_279] : memref<56x64xf32, #tpu.memory_space<vmem>>, vector<1x64xf32>
    %cst_280 = arith.constant 0.000000e+00 : f32
    %448 = vector.broadcast %cst_280 : f32 to vector<1x21xf32>
    %449 = vector.extract_strided_slice %447 {offsets = [0, 0], sizes = [1, 43], strides = [1, 1]} : vector<1x64xf32> to vector<1x43xf32>
    %450 = tpu.concatenate %448, %449 in 1 : vector<1x21xf32>, vector<1x43xf32> -> vector<1x64xf32>
    %c6_281 = arith.constant 6 : index
    %c0_282 = arith.constant 0 : index
    %451 = vector.load %arg4[%c6_281, %c0_282] : memref<56x64xf32, #tpu.memory_space<vmem>>, vector<1x64xf32>
    %452 = arith.mulf %450, %451 : vector<1x64xf32>
    %453 = arith.addf %446, %452 : vector<1x64xf32>
    %c7_283 = arith.constant 7 : index
    %c0_284 = arith.constant 0 : index
    %454 = vector.load %arg14[%c7_283, %c0_284] : memref<56x64xf32, #tpu.memory_space<vmem>>, vector<1x64xf32>
    %cst_285 = arith.constant 0.000000e+00 : f32
    %455 = vector.broadcast %cst_285 : f32 to vector<1x19xf32>
    %456 = vector.extract_strided_slice %454 {offsets = [0, 0], sizes = [1, 45], strides = [1, 1]} : vector<1x64xf32> to vector<1x45xf32>
    %457 = tpu.concatenate %455, %456 in 1 : vector<1x19xf32>, vector<1x45xf32> -> vector<1x64xf32>
    %c7_286 = arith.constant 7 : index
    %c0_287 = arith.constant 0 : index
    %458 = vector.load %arg4[%c7_286, %c0_287] : memref<56x64xf32, #tpu.memory_space<vmem>>, vector<1x64xf32>
    %459 = arith.mulf %457, %458 : vector<1x64xf32>
    %460 = arith.addf %453, %459 : vector<1x64xf32>
    %c8_288 = arith.constant 8 : index
    %c0_289 = arith.constant 0 : index
    %461 = vector.load %arg14[%c8_288, %c0_289] : memref<56x64xf32, #tpu.memory_space<vmem>>, vector<1x64xf32>
    %cst_290 = arith.constant 0.000000e+00 : f32
    %462 = vector.broadcast %cst_290 : f32 to vector<1x18xf32>
    %463 = vector.extract_strided_slice %461 {offsets = [0, 0], sizes = [1, 46], strides = [1, 1]} : vector<1x64xf32> to vector<1x46xf32>
    %464 = tpu.concatenate %462, %463 in 1 : vector<1x18xf32>, vector<1x46xf32> -> vector<1x64xf32>
    %c8_291 = arith.constant 8 : index
    %c0_292 = arith.constant 0 : index
    %465 = vector.load %arg4[%c8_291, %c0_292] : memref<56x64xf32, #tpu.memory_space<vmem>>, vector<1x64xf32>
    %466 = arith.mulf %464, %465 : vector<1x64xf32>
    %467 = arith.addf %460, %466 : vector<1x64xf32>
    %c9_293 = arith.constant 9 : index
    %c0_294 = arith.constant 0 : index
    %468 = vector.load %arg14[%c9_293, %c0_294] : memref<56x64xf32, #tpu.memory_space<vmem>>, vector<1x64xf32>
    %cst_295 = arith.constant 0.000000e+00 : f32
    %469 = vector.broadcast %cst_295 : f32 to vector<1x17xf32>
    %470 = vector.extract_strided_slice %468 {offsets = [0, 0], sizes = [1, 47], strides = [1, 1]} : vector<1x64xf32> to vector<1x47xf32>
    %471 = tpu.concatenate %469, %470 in 1 : vector<1x17xf32>, vector<1x47xf32> -> vector<1x64xf32>
    %c9_296 = arith.constant 9 : index
    %c0_297 = arith.constant 0 : index
    %472 = vector.load %arg4[%c9_296, %c0_297] : memref<56x64xf32, #tpu.memory_space<vmem>>, vector<1x64xf32>
    %473 = arith.mulf %471, %472 : vector<1x64xf32>
    %474 = arith.addf %467, %473 : vector<1x64xf32>
    %c10_298 = arith.constant 10 : index
    %c0_299 = arith.constant 0 : index
    %475 = vector.load %arg14[%c10_298, %c0_299] : memref<56x64xf32, #tpu.memory_space<vmem>>, vector<1x64xf32>
    %cst_300 = arith.constant 0.000000e+00 : f32
    %476 = vector.broadcast %cst_300 : f32 to vector<1x16xf32>
    %477 = vector.extract_strided_slice %475 {offsets = [0, 0], sizes = [1, 48], strides = [1, 1]} : vector<1x64xf32> to vector<1x48xf32>
    %478 = tpu.concatenate %476, %477 in 1 : vector<1x16xf32>, vector<1x48xf32> -> vector<1x64xf32>
    %c10_301 = arith.constant 10 : index
    %c0_302 = arith.constant 0 : index
    %479 = vector.load %arg4[%c10_301, %c0_302] : memref<56x64xf32, #tpu.memory_space<vmem>>, vector<1x64xf32>
    %480 = arith.mulf %478, %479 : vector<1x64xf32>
    %481 = arith.addf %474, %480 : vector<1x64xf32>
    %c11_303 = arith.constant 11 : index
    %c0_304 = arith.constant 0 : index
    %482 = vector.load %arg14[%c11_303, %c0_304] : memref<56x64xf32, #tpu.memory_space<vmem>>, vector<1x64xf32>
    %cst_305 = arith.constant 0.000000e+00 : f32
    %483 = vector.broadcast %cst_305 : f32 to vector<1x15xf32>
    %484 = vector.extract_strided_slice %482 {offsets = [0, 0], sizes = [1, 49], strides = [1, 1]} : vector<1x64xf32> to vector<1x49xf32>
    %485 = tpu.concatenate %483, %484 in 1 : vector<1x15xf32>, vector<1x49xf32> -> vector<1x64xf32>
    %c11_306 = arith.constant 11 : index
    %c0_307 = arith.constant 0 : index
    %486 = vector.load %arg4[%c11_306, %c0_307] : memref<56x64xf32, #tpu.memory_space<vmem>>, vector<1x64xf32>
    %487 = arith.mulf %485, %486 : vector<1x64xf32>
    %488 = arith.addf %481, %487 : vector<1x64xf32>
    %c12_308 = arith.constant 12 : index
    %c0_309 = arith.constant 0 : index
    %489 = vector.load %arg14[%c12_308, %c0_309] : memref<56x64xf32, #tpu.memory_space<vmem>>, vector<1x64xf32>
    %cst_310 = arith.constant 0.000000e+00 : f32
    %490 = vector.broadcast %cst_310 : f32 to vector<1x14xf32>
    %491 = vector.extract_strided_slice %489 {offsets = [0, 0], sizes = [1, 50], strides = [1, 1]} : vector<1x64xf32> to vector<1x50xf32>
    %492 = tpu.concatenate %490, %491 in 1 : vector<1x14xf32>, vector<1x50xf32> -> vector<1x64xf32>
    %c12_311 = arith.constant 12 : index
    %c0_312 = arith.constant 0 : index
    %493 = vector.load %arg4[%c12_311, %c0_312] : memref<56x64xf32, #tpu.memory_space<vmem>>, vector<1x64xf32>
    %494 = arith.mulf %492, %493 : vector<1x64xf32>
    %495 = arith.addf %488, %494 : vector<1x64xf32>
    %c13_313 = arith.constant 13 : index
    %c0_314 = arith.constant 0 : index
    %496 = vector.load %arg14[%c13_313, %c0_314] : memref<56x64xf32, #tpu.memory_space<vmem>>, vector<1x64xf32>
    %cst_315 = arith.constant 0.000000e+00 : f32
    %497 = vector.broadcast %cst_315 : f32 to vector<1x13xf32>
    %498 = vector.extract_strided_slice %496 {offsets = [0, 0], sizes = [1, 51], strides = [1, 1]} : vector<1x64xf32> to vector<1x51xf32>
    %499 = tpu.concatenate %497, %498 in 1 : vector<1x13xf32>, vector<1x51xf32> -> vector<1x64xf32>
    %c13_316 = arith.constant 13 : index
    %c0_317 = arith.constant 0 : index
    %500 = vector.load %arg4[%c13_316, %c0_317] : memref<56x64xf32, #tpu.memory_space<vmem>>, vector<1x64xf32>
    %501 = arith.mulf %499, %500 : vector<1x64xf32>
    %502 = arith.addf %495, %501 : vector<1x64xf32>
    %c14_318 = arith.constant 14 : index
    %c0_319 = arith.constant 0 : index
    %503 = vector.load %arg14[%c14_318, %c0_319] : memref<56x64xf32, #tpu.memory_space<vmem>>, vector<1x64xf32>
    %cst_320 = arith.constant 0.000000e+00 : f32
    %504 = vector.broadcast %cst_320 : f32 to vector<1x11xf32>
    %505 = vector.extract_strided_slice %503 {offsets = [0, 0], sizes = [1, 53], strides = [1, 1]} : vector<1x64xf32> to vector<1x53xf32>
    %506 = tpu.concatenate %504, %505 in 1 : vector<1x11xf32>, vector<1x53xf32> -> vector<1x64xf32>
    %c14_321 = arith.constant 14 : index
    %c0_322 = arith.constant 0 : index
    %507 = vector.load %arg4[%c14_321, %c0_322] : memref<56x64xf32, #tpu.memory_space<vmem>>, vector<1x64xf32>
    %508 = arith.mulf %506, %507 : vector<1x64xf32>
    %509 = arith.addf %502, %508 : vector<1x64xf32>
    %c15_323 = arith.constant 15 : index
    %c0_324 = arith.constant 0 : index
    %510 = vector.load %arg14[%c15_323, %c0_324] : memref<56x64xf32, #tpu.memory_space<vmem>>, vector<1x64xf32>
    %cst_325 = arith.constant 0.000000e+00 : f32
    %511 = vector.broadcast %cst_325 : f32 to vector<1x10xf32>
    %512 = vector.extract_strided_slice %510 {offsets = [0, 0], sizes = [1, 54], strides = [1, 1]} : vector<1x64xf32> to vector<1x54xf32>
    %513 = tpu.concatenate %511, %512 in 1 : vector<1x10xf32>, vector<1x54xf32> -> vector<1x64xf32>
    %c15_326 = arith.constant 15 : index
    %c0_327 = arith.constant 0 : index
    %514 = vector.load %arg4[%c15_326, %c0_327] : memref<56x64xf32, #tpu.memory_space<vmem>>, vector<1x64xf32>
    %515 = arith.mulf %513, %514 : vector<1x64xf32>
    %516 = arith.addf %509, %515 : vector<1x64xf32>
    %c16_328 = arith.constant 16 : index
    %c0_329 = arith.constant 0 : index
    %517 = vector.load %arg14[%c16_328, %c0_329] : memref<56x64xf32, #tpu.memory_space<vmem>>, vector<1x64xf32>
    %cst_330 = arith.constant 0.000000e+00 : f32
    %518 = vector.broadcast %cst_330 : f32 to vector<1x9xf32>
    %519 = vector.extract_strided_slice %517 {offsets = [0, 0], sizes = [1, 55], strides = [1, 1]} : vector<1x64xf32> to vector<1x55xf32>
    %520 = tpu.concatenate %518, %519 in 1 : vector<1x9xf32>, vector<1x55xf32> -> vector<1x64xf32>
    %c16_331 = arith.constant 16 : index
    %c0_332 = arith.constant 0 : index
    %521 = vector.load %arg4[%c16_331, %c0_332] : memref<56x64xf32, #tpu.memory_space<vmem>>, vector<1x64xf32>
    %522 = arith.mulf %520, %521 : vector<1x64xf32>
    %523 = arith.addf %516, %522 : vector<1x64xf32>
    %c17_333 = arith.constant 17 : index
    %c0_334 = arith.constant 0 : index
    %524 = vector.load %arg14[%c17_333, %c0_334] : memref<56x64xf32, #tpu.memory_space<vmem>>, vector<1x64xf32>
    %cst_335 = arith.constant 0.000000e+00 : f32
    %525 = vector.broadcast %cst_335 : f32 to vector<1x8xf32>
    %526 = vector.extract_strided_slice %524 {offsets = [0, 0], sizes = [1, 56], strides = [1, 1]} : vector<1x64xf32> to vector<1x56xf32>
    %527 = tpu.concatenate %525, %526 in 1 : vector<1x8xf32>, vector<1x56xf32> -> vector<1x64xf32>
    %c17_336 = arith.constant 17 : index
    %c0_337 = arith.constant 0 : index
    %528 = vector.load %arg4[%c17_336, %c0_337] : memref<56x64xf32, #tpu.memory_space<vmem>>, vector<1x64xf32>
    %529 = arith.mulf %527, %528 : vector<1x64xf32>
    %530 = arith.addf %523, %529 : vector<1x64xf32>
    %c18_338 = arith.constant 18 : index
    %c0_339 = arith.constant 0 : index
    %531 = vector.load %arg14[%c18_338, %c0_339] : memref<56x64xf32, #tpu.memory_space<vmem>>, vector<1x64xf32>
    %cst_340 = arith.constant 0.000000e+00 : f32
    %532 = vector.broadcast %cst_340 : f32 to vector<1x7xf32>
    %533 = vector.extract_strided_slice %531 {offsets = [0, 0], sizes = [1, 57], strides = [1, 1]} : vector<1x64xf32> to vector<1x57xf32>
    %534 = tpu.concatenate %532, %533 in 1 : vector<1x7xf32>, vector<1x57xf32> -> vector<1x64xf32>
    %c18_341 = arith.constant 18 : index
    %c0_342 = arith.constant 0 : index
    %535 = vector.load %arg4[%c18_341, %c0_342] : memref<56x64xf32, #tpu.memory_space<vmem>>, vector<1x64xf32>
    %536 = arith.mulf %534, %535 : vector<1x64xf32>
    %537 = arith.addf %530, %536 : vector<1x64xf32>
    %c19_343 = arith.constant 19 : index
    %c0_344 = arith.constant 0 : index
    %538 = vector.load %arg14[%c19_343, %c0_344] : memref<56x64xf32, #tpu.memory_space<vmem>>, vector<1x64xf32>
    %cst_345 = arith.constant 0.000000e+00 : f32
    %539 = vector.broadcast %cst_345 : f32 to vector<1x6xf32>
    %540 = vector.extract_strided_slice %538 {offsets = [0, 0], sizes = [1, 58], strides = [1, 1]} : vector<1x64xf32> to vector<1x58xf32>
    %541 = tpu.concatenate %539, %540 in 1 : vector<1x6xf32>, vector<1x58xf32> -> vector<1x64xf32>
    %c19_346 = arith.constant 19 : index
    %c0_347 = arith.constant 0 : index
    %542 = vector.load %arg4[%c19_346, %c0_347] : memref<56x64xf32, #tpu.memory_space<vmem>>, vector<1x64xf32>
    %543 = arith.mulf %541, %542 : vector<1x64xf32>
    %544 = arith.addf %537, %543 : vector<1x64xf32>
    %c20_348 = arith.constant 20 : index
    %c0_349 = arith.constant 0 : index
    %545 = vector.load %arg14[%c20_348, %c0_349] : memref<56x64xf32, #tpu.memory_space<vmem>>, vector<1x64xf32>
    %cst_350 = arith.constant 0.000000e+00 : f32
    %546 = vector.broadcast %cst_350 : f32 to vector<1x5xf32>
    %547 = vector.extract_strided_slice %545 {offsets = [0, 0], sizes = [1, 59], strides = [1, 1]} : vector<1x64xf32> to vector<1x59xf32>
    %548 = tpu.concatenate %546, %547 in 1 : vector<1x5xf32>, vector<1x59xf32> -> vector<1x64xf32>
    %c20_351 = arith.constant 20 : index
    %c0_352 = arith.constant 0 : index
    %549 = vector.load %arg4[%c20_351, %c0_352] : memref<56x64xf32, #tpu.memory_space<vmem>>, vector<1x64xf32>
    %550 = arith.mulf %548, %549 : vector<1x64xf32>
    %551 = arith.addf %544, %550 : vector<1x64xf32>
    %c21_353 = arith.constant 21 : index
    %c0_354 = arith.constant 0 : index
    %552 = vector.load %arg14[%c21_353, %c0_354] : memref<56x64xf32, #tpu.memory_space<vmem>>, vector<1x64xf32>
    %cst_355 = arith.constant 0.000000e+00 : f32
    %553 = vector.broadcast %cst_355 : f32 to vector<1x3xf32>
    %554 = vector.extract_strided_slice %552 {offsets = [0, 0], sizes = [1, 61], strides = [1, 1]} : vector<1x64xf32> to vector<1x61xf32>
    %555 = tpu.concatenate %553, %554 in 1 : vector<1x3xf32>, vector<1x61xf32> -> vector<1x64xf32>
    %c21_356 = arith.constant 21 : index
    %c0_357 = arith.constant 0 : index
    %556 = vector.load %arg4[%c21_356, %c0_357] : memref<56x64xf32, #tpu.memory_space<vmem>>, vector<1x64xf32>
    %557 = arith.mulf %555, %556 : vector<1x64xf32>
    %558 = arith.addf %551, %557 : vector<1x64xf32>
    %c22_358 = arith.constant 22 : index
    %c0_359 = arith.constant 0 : index
    %559 = vector.load %arg14[%c22_358, %c0_359] : memref<56x64xf32, #tpu.memory_space<vmem>>, vector<1x64xf32>
    %cst_360 = arith.constant 0.000000e+00 : f32
    %560 = vector.broadcast %cst_360 : f32 to vector<1x2xf32>
    %561 = vector.extract_strided_slice %559 {offsets = [0, 0], sizes = [1, 62], strides = [1, 1]} : vector<1x64xf32> to vector<1x62xf32>
    %562 = tpu.concatenate %560, %561 in 1 : vector<1x2xf32>, vector<1x62xf32> -> vector<1x64xf32>
    %c22_361 = arith.constant 22 : index
    %c0_362 = arith.constant 0 : index
    %563 = vector.load %arg4[%c22_361, %c0_362] : memref<56x64xf32, #tpu.memory_space<vmem>>, vector<1x64xf32>
    %564 = arith.mulf %562, %563 : vector<1x64xf32>
    %565 = arith.addf %558, %564 : vector<1x64xf32>
    %c23_363 = arith.constant 23 : index
    %c0_364 = arith.constant 0 : index
    %566 = vector.load %arg14[%c23_363, %c0_364] : memref<56x64xf32, #tpu.memory_space<vmem>>, vector<1x64xf32>
    %cst_365 = arith.constant 0.000000e+00 : f32
    %567 = vector.broadcast %cst_365 : f32 to vector<1x1xf32>
    %568 = vector.extract_strided_slice %566 {offsets = [0, 0], sizes = [1, 63], strides = [1, 1]} : vector<1x64xf32> to vector<1x63xf32>
    %569 = tpu.concatenate %567, %568 in 1 : vector<1x1xf32>, vector<1x63xf32> -> vector<1x64xf32>
    %c23_366 = arith.constant 23 : index
    %c0_367 = arith.constant 0 : index
    %570 = vector.load %arg4[%c23_366, %c0_367] : memref<56x64xf32, #tpu.memory_space<vmem>>, vector<1x64xf32>
    %571 = arith.mulf %569, %570 : vector<1x64xf32>
    %572 = arith.addf %565, %571 : vector<1x64xf32>
    %c24_368 = arith.constant 24 : index
    %c0_369 = arith.constant 0 : index
    %573 = vector.load %arg14[%c24_368, %c0_369] : memref<56x64xf32, #tpu.memory_space<vmem>>, vector<1x64xf32>
    %c24_370 = arith.constant 24 : index
    %c0_371 = arith.constant 0 : index
    %574 = vector.load %arg4[%c24_370, %c0_371] : memref<56x64xf32, #tpu.memory_space<vmem>>, vector<1x64xf32>
    %575 = arith.mulf %573, %574 : vector<1x64xf32>
    %576 = arith.addf %572, %575 : vector<1x64xf32>
    %c25_372 = arith.constant 25 : index
    %c0_373 = arith.constant 0 : index
    %577 = vector.load %arg14[%c25_372, %c0_373] : memref<56x64xf32, #tpu.memory_space<vmem>>, vector<1x64xf32>
    %578 = vector.extract_strided_slice %577 {offsets = [0, 1], sizes = [1, 63], strides = [1, 1]} : vector<1x64xf32> to vector<1x63xf32>
    %cst_374 = arith.constant 0.000000e+00 : f32
    %579 = vector.broadcast %cst_374 : f32 to vector<1x1xf32>
    %580 = tpu.concatenate %578, %579 in 1 : vector<1x63xf32>, vector<1x1xf32> -> vector<1x64xf32>
    %c25_375 = arith.constant 25 : index
    %c0_376 = arith.constant 0 : index
    %581 = vector.load %arg4[%c25_375, %c0_376] : memref<56x64xf32, #tpu.memory_space<vmem>>, vector<1x64xf32>
    %582 = arith.mulf %580, %581 : vector<1x64xf32>
    %583 = arith.addf %576, %582 : vector<1x64xf32>
    %c26_377 = arith.constant 26 : index
    %c0_378 = arith.constant 0 : index
    %584 = vector.load %arg14[%c26_377, %c0_378] : memref<56x64xf32, #tpu.memory_space<vmem>>, vector<1x64xf32>
    %585 = vector.extract_strided_slice %584 {offsets = [0, 2], sizes = [1, 62], strides = [1, 1]} : vector<1x64xf32> to vector<1x62xf32>
    %cst_379 = arith.constant 0.000000e+00 : f32
    %586 = vector.broadcast %cst_379 : f32 to vector<1x2xf32>
    %587 = tpu.concatenate %585, %586 in 1 : vector<1x62xf32>, vector<1x2xf32> -> vector<1x64xf32>
    %c26_380 = arith.constant 26 : index
    %c0_381 = arith.constant 0 : index
    %588 = vector.load %arg4[%c26_380, %c0_381] : memref<56x64xf32, #tpu.memory_space<vmem>>, vector<1x64xf32>
    %589 = arith.mulf %587, %588 : vector<1x64xf32>
    %590 = arith.addf %583, %589 : vector<1x64xf32>
    %c27_382 = arith.constant 27 : index
    %c0_383 = arith.constant 0 : index
    %591 = vector.load %arg14[%c27_382, %c0_383] : memref<56x64xf32, #tpu.memory_space<vmem>>, vector<1x64xf32>
    %592 = vector.extract_strided_slice %591 {offsets = [0, 3], sizes = [1, 61], strides = [1, 1]} : vector<1x64xf32> to vector<1x61xf32>
    %cst_384 = arith.constant 0.000000e+00 : f32
    %593 = vector.broadcast %cst_384 : f32 to vector<1x3xf32>
    %594 = tpu.concatenate %592, %593 in 1 : vector<1x61xf32>, vector<1x3xf32> -> vector<1x64xf32>
    %c27_385 = arith.constant 27 : index
    %c0_386 = arith.constant 0 : index
    %595 = vector.load %arg4[%c27_385, %c0_386] : memref<56x64xf32, #tpu.memory_space<vmem>>, vector<1x64xf32>
    %596 = arith.mulf %594, %595 : vector<1x64xf32>
    %597 = arith.addf %590, %596 : vector<1x64xf32>
    %c28_387 = arith.constant 28 : index
    %c0_388 = arith.constant 0 : index
    %598 = vector.load %arg14[%c28_387, %c0_388] : memref<56x64xf32, #tpu.memory_space<vmem>>, vector<1x64xf32>
    %599 = vector.extract_strided_slice %598 {offsets = [0, 5], sizes = [1, 59], strides = [1, 1]} : vector<1x64xf32> to vector<1x59xf32>
    %cst_389 = arith.constant 0.000000e+00 : f32
    %600 = vector.broadcast %cst_389 : f32 to vector<1x5xf32>
    %601 = tpu.concatenate %599, %600 in 1 : vector<1x59xf32>, vector<1x5xf32> -> vector<1x64xf32>
    %c28_390 = arith.constant 28 : index
    %c0_391 = arith.constant 0 : index
    %602 = vector.load %arg4[%c28_390, %c0_391] : memref<56x64xf32, #tpu.memory_space<vmem>>, vector<1x64xf32>
    %603 = arith.mulf %601, %602 : vector<1x64xf32>
    %604 = arith.addf %597, %603 : vector<1x64xf32>
    %c29_392 = arith.constant 29 : index
    %c0_393 = arith.constant 0 : index
    %605 = vector.load %arg14[%c29_392, %c0_393] : memref<56x64xf32, #tpu.memory_space<vmem>>, vector<1x64xf32>
    %606 = vector.extract_strided_slice %605 {offsets = [0, 6], sizes = [1, 58], strides = [1, 1]} : vector<1x64xf32> to vector<1x58xf32>
    %cst_394 = arith.constant 0.000000e+00 : f32
    %607 = vector.broadcast %cst_394 : f32 to vector<1x6xf32>
    %608 = tpu.concatenate %606, %607 in 1 : vector<1x58xf32>, vector<1x6xf32> -> vector<1x64xf32>
    %c29_395 = arith.constant 29 : index
    %c0_396 = arith.constant 0 : index
    %609 = vector.load %arg4[%c29_395, %c0_396] : memref<56x64xf32, #tpu.memory_space<vmem>>, vector<1x64xf32>
    %610 = arith.mulf %608, %609 : vector<1x64xf32>
    %611 = arith.addf %604, %610 : vector<1x64xf32>
    %c30_397 = arith.constant 30 : index
    %c0_398 = arith.constant 0 : index
    %612 = vector.load %arg14[%c30_397, %c0_398] : memref<56x64xf32, #tpu.memory_space<vmem>>, vector<1x64xf32>
    %613 = vector.extract_strided_slice %612 {offsets = [0, 7], sizes = [1, 57], strides = [1, 1]} : vector<1x64xf32> to vector<1x57xf32>
    %cst_399 = arith.constant 0.000000e+00 : f32
    %614 = vector.broadcast %cst_399 : f32 to vector<1x7xf32>
    %615 = tpu.concatenate %613, %614 in 1 : vector<1x57xf32>, vector<1x7xf32> -> vector<1x64xf32>
    %c30_400 = arith.constant 30 : index
    %c0_401 = arith.constant 0 : index
    %616 = vector.load %arg4[%c30_400, %c0_401] : memref<56x64xf32, #tpu.memory_space<vmem>>, vector<1x64xf32>
    %617 = arith.mulf %615, %616 : vector<1x64xf32>
    %618 = arith.addf %611, %617 : vector<1x64xf32>
    %c31_402 = arith.constant 31 : index
    %c0_403 = arith.constant 0 : index
    %619 = vector.load %arg14[%c31_402, %c0_403] : memref<56x64xf32, #tpu.memory_space<vmem>>, vector<1x64xf32>
    %620 = vector.extract_strided_slice %619 {offsets = [0, 8], sizes = [1, 56], strides = [1, 1]} : vector<1x64xf32> to vector<1x56xf32>
    %cst_404 = arith.constant 0.000000e+00 : f32
    %621 = vector.broadcast %cst_404 : f32 to vector<1x8xf32>
    %622 = tpu.concatenate %620, %621 in 1 : vector<1x56xf32>, vector<1x8xf32> -> vector<1x64xf32>
    %c31_405 = arith.constant 31 : index
    %c0_406 = arith.constant 0 : index
    %623 = vector.load %arg4[%c31_405, %c0_406] : memref<56x64xf32, #tpu.memory_space<vmem>>, vector<1x64xf32>
    %624 = arith.mulf %622, %623 : vector<1x64xf32>
    %625 = arith.addf %618, %624 : vector<1x64xf32>
    %c32_407 = arith.constant 32 : index
    %c0_408 = arith.constant 0 : index
    %626 = vector.load %arg14[%c32_407, %c0_408] : memref<56x64xf32, #tpu.memory_space<vmem>>, vector<1x64xf32>
    %627 = vector.extract_strided_slice %626 {offsets = [0, 9], sizes = [1, 55], strides = [1, 1]} : vector<1x64xf32> to vector<1x55xf32>
    %cst_409 = arith.constant 0.000000e+00 : f32
    %628 = vector.broadcast %cst_409 : f32 to vector<1x9xf32>
    %629 = tpu.concatenate %627, %628 in 1 : vector<1x55xf32>, vector<1x9xf32> -> vector<1x64xf32>
    %c32_410 = arith.constant 32 : index
    %c0_411 = arith.constant 0 : index
    %630 = vector.load %arg4[%c32_410, %c0_411] : memref<56x64xf32, #tpu.memory_space<vmem>>, vector<1x64xf32>
    %631 = arith.mulf %629, %630 : vector<1x64xf32>
    %632 = arith.addf %625, %631 : vector<1x64xf32>
    %c33_412 = arith.constant 33 : index
    %c0_413 = arith.constant 0 : index
    %633 = vector.load %arg14[%c33_412, %c0_413] : memref<56x64xf32, #tpu.memory_space<vmem>>, vector<1x64xf32>
    %634 = vector.extract_strided_slice %633 {offsets = [0, 10], sizes = [1, 54], strides = [1, 1]} : vector<1x64xf32> to vector<1x54xf32>
    %cst_414 = arith.constant 0.000000e+00 : f32
    %635 = vector.broadcast %cst_414 : f32 to vector<1x10xf32>
    %636 = tpu.concatenate %634, %635 in 1 : vector<1x54xf32>, vector<1x10xf32> -> vector<1x64xf32>
    %c33_415 = arith.constant 33 : index
    %c0_416 = arith.constant 0 : index
    %637 = vector.load %arg4[%c33_415, %c0_416] : memref<56x64xf32, #tpu.memory_space<vmem>>, vector<1x64xf32>
    %638 = arith.mulf %636, %637 : vector<1x64xf32>
    %639 = arith.addf %632, %638 : vector<1x64xf32>
    %c34_417 = arith.constant 34 : index
    %c0_418 = arith.constant 0 : index
    %640 = vector.load %arg14[%c34_417, %c0_418] : memref<56x64xf32, #tpu.memory_space<vmem>>, vector<1x64xf32>
    %641 = vector.extract_strided_slice %640 {offsets = [0, 11], sizes = [1, 53], strides = [1, 1]} : vector<1x64xf32> to vector<1x53xf32>
    %cst_419 = arith.constant 0.000000e+00 : f32
    %642 = vector.broadcast %cst_419 : f32 to vector<1x11xf32>
    %643 = tpu.concatenate %641, %642 in 1 : vector<1x53xf32>, vector<1x11xf32> -> vector<1x64xf32>
    %c34_420 = arith.constant 34 : index
    %c0_421 = arith.constant 0 : index
    %644 = vector.load %arg4[%c34_420, %c0_421] : memref<56x64xf32, #tpu.memory_space<vmem>>, vector<1x64xf32>
    %645 = arith.mulf %643, %644 : vector<1x64xf32>
    %646 = arith.addf %639, %645 : vector<1x64xf32>
    %c35_422 = arith.constant 35 : index
    %c0_423 = arith.constant 0 : index
    %647 = vector.load %arg14[%c35_422, %c0_423] : memref<56x64xf32, #tpu.memory_space<vmem>>, vector<1x64xf32>
    %648 = vector.extract_strided_slice %647 {offsets = [0, 13], sizes = [1, 51], strides = [1, 1]} : vector<1x64xf32> to vector<1x51xf32>
    %cst_424 = arith.constant 0.000000e+00 : f32
    %649 = vector.broadcast %cst_424 : f32 to vector<1x13xf32>
    %650 = tpu.concatenate %648, %649 in 1 : vector<1x51xf32>, vector<1x13xf32> -> vector<1x64xf32>
    %c35_425 = arith.constant 35 : index
    %c0_426 = arith.constant 0 : index
    %651 = vector.load %arg4[%c35_425, %c0_426] : memref<56x64xf32, #tpu.memory_space<vmem>>, vector<1x64xf32>
    %652 = arith.mulf %650, %651 : vector<1x64xf32>
    %653 = arith.addf %646, %652 : vector<1x64xf32>
    %c36_427 = arith.constant 36 : index
    %c0_428 = arith.constant 0 : index
    %654 = vector.load %arg14[%c36_427, %c0_428] : memref<56x64xf32, #tpu.memory_space<vmem>>, vector<1x64xf32>
    %655 = vector.extract_strided_slice %654 {offsets = [0, 14], sizes = [1, 50], strides = [1, 1]} : vector<1x64xf32> to vector<1x50xf32>
    %cst_429 = arith.constant 0.000000e+00 : f32
    %656 = vector.broadcast %cst_429 : f32 to vector<1x14xf32>
    %657 = tpu.concatenate %655, %656 in 1 : vector<1x50xf32>, vector<1x14xf32> -> vector<1x64xf32>
    %c36_430 = arith.constant 36 : index
    %c0_431 = arith.constant 0 : index
    %658 = vector.load %arg4[%c36_430, %c0_431] : memref<56x64xf32, #tpu.memory_space<vmem>>, vector<1x64xf32>
    %659 = arith.mulf %657, %658 : vector<1x64xf32>
    %660 = arith.addf %653, %659 : vector<1x64xf32>
    %c37_432 = arith.constant 37 : index
    %c0_433 = arith.constant 0 : index
    %661 = vector.load %arg14[%c37_432, %c0_433] : memref<56x64xf32, #tpu.memory_space<vmem>>, vector<1x64xf32>
    %662 = vector.extract_strided_slice %661 {offsets = [0, 15], sizes = [1, 49], strides = [1, 1]} : vector<1x64xf32> to vector<1x49xf32>
    %cst_434 = arith.constant 0.000000e+00 : f32
    %663 = vector.broadcast %cst_434 : f32 to vector<1x15xf32>
    %664 = tpu.concatenate %662, %663 in 1 : vector<1x49xf32>, vector<1x15xf32> -> vector<1x64xf32>
    %c37_435 = arith.constant 37 : index
    %c0_436 = arith.constant 0 : index
    %665 = vector.load %arg4[%c37_435, %c0_436] : memref<56x64xf32, #tpu.memory_space<vmem>>, vector<1x64xf32>
    %666 = arith.mulf %664, %665 : vector<1x64xf32>
    %667 = arith.addf %660, %666 : vector<1x64xf32>
    %c38_437 = arith.constant 38 : index
    %c0_438 = arith.constant 0 : index
    %668 = vector.load %arg14[%c38_437, %c0_438] : memref<56x64xf32, #tpu.memory_space<vmem>>, vector<1x64xf32>
    %669 = vector.extract_strided_slice %668 {offsets = [0, 16], sizes = [1, 48], strides = [1, 1]} : vector<1x64xf32> to vector<1x48xf32>
    %cst_439 = arith.constant 0.000000e+00 : f32
    %670 = vector.broadcast %cst_439 : f32 to vector<1x16xf32>
    %671 = tpu.concatenate %669, %670 in 1 : vector<1x48xf32>, vector<1x16xf32> -> vector<1x64xf32>
    %c38_440 = arith.constant 38 : index
    %c0_441 = arith.constant 0 : index
    %672 = vector.load %arg4[%c38_440, %c0_441] : memref<56x64xf32, #tpu.memory_space<vmem>>, vector<1x64xf32>
    %673 = arith.mulf %671, %672 : vector<1x64xf32>
    %674 = arith.addf %667, %673 : vector<1x64xf32>
    %c39_442 = arith.constant 39 : index
    %c0_443 = arith.constant 0 : index
    %675 = vector.load %arg14[%c39_442, %c0_443] : memref<56x64xf32, #tpu.memory_space<vmem>>, vector<1x64xf32>
    %676 = vector.extract_strided_slice %675 {offsets = [0, 17], sizes = [1, 47], strides = [1, 1]} : vector<1x64xf32> to vector<1x47xf32>
    %cst_444 = arith.constant 0.000000e+00 : f32
    %677 = vector.broadcast %cst_444 : f32 to vector<1x17xf32>
    %678 = tpu.concatenate %676, %677 in 1 : vector<1x47xf32>, vector<1x17xf32> -> vector<1x64xf32>
    %c39_445 = arith.constant 39 : index
    %c0_446 = arith.constant 0 : index
    %679 = vector.load %arg4[%c39_445, %c0_446] : memref<56x64xf32, #tpu.memory_space<vmem>>, vector<1x64xf32>
    %680 = arith.mulf %678, %679 : vector<1x64xf32>
    %681 = arith.addf %674, %680 : vector<1x64xf32>
    %c40_447 = arith.constant 40 : index
    %c0_448 = arith.constant 0 : index
    %682 = vector.load %arg14[%c40_447, %c0_448] : memref<56x64xf32, #tpu.memory_space<vmem>>, vector<1x64xf32>
    %683 = vector.extract_strided_slice %682 {offsets = [0, 18], sizes = [1, 46], strides = [1, 1]} : vector<1x64xf32> to vector<1x46xf32>
    %cst_449 = arith.constant 0.000000e+00 : f32
    %684 = vector.broadcast %cst_449 : f32 to vector<1x18xf32>
    %685 = tpu.concatenate %683, %684 in 1 : vector<1x46xf32>, vector<1x18xf32> -> vector<1x64xf32>
    %c40_450 = arith.constant 40 : index
    %c0_451 = arith.constant 0 : index
    %686 = vector.load %arg4[%c40_450, %c0_451] : memref<56x64xf32, #tpu.memory_space<vmem>>, vector<1x64xf32>
    %687 = arith.mulf %685, %686 : vector<1x64xf32>
    %688 = arith.addf %681, %687 : vector<1x64xf32>
    %c41_452 = arith.constant 41 : index
    %c0_453 = arith.constant 0 : index
    %689 = vector.load %arg14[%c41_452, %c0_453] : memref<56x64xf32, #tpu.memory_space<vmem>>, vector<1x64xf32>
    %690 = vector.extract_strided_slice %689 {offsets = [0, 19], sizes = [1, 45], strides = [1, 1]} : vector<1x64xf32> to vector<1x45xf32>
    %cst_454 = arith.constant 0.000000e+00 : f32
    %691 = vector.broadcast %cst_454 : f32 to vector<1x19xf32>
    %692 = tpu.concatenate %690, %691 in 1 : vector<1x45xf32>, vector<1x19xf32> -> vector<1x64xf32>
    %c41_455 = arith.constant 41 : index
    %c0_456 = arith.constant 0 : index
    %693 = vector.load %arg4[%c41_455, %c0_456] : memref<56x64xf32, #tpu.memory_space<vmem>>, vector<1x64xf32>
    %694 = arith.mulf %692, %693 : vector<1x64xf32>
    %695 = arith.addf %688, %694 : vector<1x64xf32>
    %c42_457 = arith.constant 42 : index
    %c0_458 = arith.constant 0 : index
    %696 = vector.load %arg14[%c42_457, %c0_458] : memref<56x64xf32, #tpu.memory_space<vmem>>, vector<1x64xf32>
    %697 = vector.extract_strided_slice %696 {offsets = [0, 21], sizes = [1, 43], strides = [1, 1]} : vector<1x64xf32> to vector<1x43xf32>
    %cst_459 = arith.constant 0.000000e+00 : f32
    %698 = vector.broadcast %cst_459 : f32 to vector<1x21xf32>
    %699 = tpu.concatenate %697, %698 in 1 : vector<1x43xf32>, vector<1x21xf32> -> vector<1x64xf32>
    %c42_460 = arith.constant 42 : index
    %c0_461 = arith.constant 0 : index
    %700 = vector.load %arg4[%c42_460, %c0_461] : memref<56x64xf32, #tpu.memory_space<vmem>>, vector<1x64xf32>
    %701 = arith.mulf %699, %700 : vector<1x64xf32>
    %702 = arith.addf %695, %701 : vector<1x64xf32>
    %c43_462 = arith.constant 43 : index
    %c0_463 = arith.constant 0 : index
    %703 = vector.load %arg14[%c43_462, %c0_463] : memref<56x64xf32, #tpu.memory_space<vmem>>, vector<1x64xf32>
    %704 = vector.extract_strided_slice %703 {offsets = [0, 22], sizes = [1, 42], strides = [1, 1]} : vector<1x64xf32> to vector<1x42xf32>
    %cst_464 = arith.constant 0.000000e+00 : f32
    %705 = vector.broadcast %cst_464 : f32 to vector<1x22xf32>
    %706 = tpu.concatenate %704, %705 in 1 : vector<1x42xf32>, vector<1x22xf32> -> vector<1x64xf32>
    %c43_465 = arith.constant 43 : index
    %c0_466 = arith.constant 0 : index
    %707 = vector.load %arg4[%c43_465, %c0_466] : memref<56x64xf32, #tpu.memory_space<vmem>>, vector<1x64xf32>
    %708 = arith.mulf %706, %707 : vector<1x64xf32>
    %709 = arith.addf %702, %708 : vector<1x64xf32>
    %c44_467 = arith.constant 44 : index
    %c0_468 = arith.constant 0 : index
    %710 = vector.load %arg14[%c44_467, %c0_468] : memref<56x64xf32, #tpu.memory_space<vmem>>, vector<1x64xf32>
    %711 = vector.extract_strided_slice %710 {offsets = [0, 23], sizes = [1, 41], strides = [1, 1]} : vector<1x64xf32> to vector<1x41xf32>
    %cst_469 = arith.constant 0.000000e+00 : f32
    %712 = vector.broadcast %cst_469 : f32 to vector<1x23xf32>
    %713 = tpu.concatenate %711, %712 in 1 : vector<1x41xf32>, vector<1x23xf32> -> vector<1x64xf32>
    %c44_470 = arith.constant 44 : index
    %c0_471 = arith.constant 0 : index
    %714 = vector.load %arg4[%c44_470, %c0_471] : memref<56x64xf32, #tpu.memory_space<vmem>>, vector<1x64xf32>
    %715 = arith.mulf %713, %714 : vector<1x64xf32>
    %716 = arith.addf %709, %715 : vector<1x64xf32>
    %c45_472 = arith.constant 45 : index
    %c0_473 = arith.constant 0 : index
    %717 = vector.load %arg14[%c45_472, %c0_473] : memref<56x64xf32, #tpu.memory_space<vmem>>, vector<1x64xf32>
    %718 = vector.extract_strided_slice %717 {offsets = [0, 24], sizes = [1, 40], strides = [1, 1]} : vector<1x64xf32> to vector<1x40xf32>
    %cst_474 = arith.constant 0.000000e+00 : f32
    %719 = vector.broadcast %cst_474 : f32 to vector<1x24xf32>
    %720 = tpu.concatenate %718, %719 in 1 : vector<1x40xf32>, vector<1x24xf32> -> vector<1x64xf32>
    %c45_475 = arith.constant 45 : index
    %c0_476 = arith.constant 0 : index
    %721 = vector.load %arg4[%c45_475, %c0_476] : memref<56x64xf32, #tpu.memory_space<vmem>>, vector<1x64xf32>
    %722 = arith.mulf %720, %721 : vector<1x64xf32>
    %723 = arith.addf %716, %722 : vector<1x64xf32>
    %c46_477 = arith.constant 46 : index
    %c0_478 = arith.constant 0 : index
    %724 = vector.load %arg14[%c46_477, %c0_478] : memref<56x64xf32, #tpu.memory_space<vmem>>, vector<1x64xf32>
    %725 = vector.extract_strided_slice %724 {offsets = [0, 25], sizes = [1, 39], strides = [1, 1]} : vector<1x64xf32> to vector<1x39xf32>
    %cst_479 = arith.constant 0.000000e+00 : f32
    %726 = vector.broadcast %cst_479 : f32 to vector<1x25xf32>
    %727 = tpu.concatenate %725, %726 in 1 : vector<1x39xf32>, vector<1x25xf32> -> vector<1x64xf32>
    %c46_480 = arith.constant 46 : index
    %c0_481 = arith.constant 0 : index
    %728 = vector.load %arg4[%c46_480, %c0_481] : memref<56x64xf32, #tpu.memory_space<vmem>>, vector<1x64xf32>
    %729 = arith.mulf %727, %728 : vector<1x64xf32>
    %730 = arith.addf %723, %729 : vector<1x64xf32>
    %c47_482 = arith.constant 47 : index
    %c0_483 = arith.constant 0 : index
    %731 = vector.load %arg14[%c47_482, %c0_483] : memref<56x64xf32, #tpu.memory_space<vmem>>, vector<1x64xf32>
    %732 = vector.extract_strided_slice %731 {offsets = [0, 26], sizes = [1, 38], strides = [1, 1]} : vector<1x64xf32> to vector<1x38xf32>
    %cst_484 = arith.constant 0.000000e+00 : f32
    %733 = vector.broadcast %cst_484 : f32 to vector<1x26xf32>
    %734 = tpu.concatenate %732, %733 in 1 : vector<1x38xf32>, vector<1x26xf32> -> vector<1x64xf32>
    %c47_485 = arith.constant 47 : index
    %c0_486 = arith.constant 0 : index
    %735 = vector.load %arg4[%c47_485, %c0_486] : memref<56x64xf32, #tpu.memory_space<vmem>>, vector<1x64xf32>
    %736 = arith.mulf %734, %735 : vector<1x64xf32>
    %737 = arith.addf %730, %736 : vector<1x64xf32>
    %c48_487 = arith.constant 48 : index
    %c0_488 = arith.constant 0 : index
    %738 = vector.load %arg14[%c48_487, %c0_488] : memref<56x64xf32, #tpu.memory_space<vmem>>, vector<1x64xf32>
    %739 = vector.extract_strided_slice %738 {offsets = [0, 27], sizes = [1, 37], strides = [1, 1]} : vector<1x64xf32> to vector<1x37xf32>
    %cst_489 = arith.constant 0.000000e+00 : f32
    %740 = vector.broadcast %cst_489 : f32 to vector<1x27xf32>
    %741 = tpu.concatenate %739, %740 in 1 : vector<1x37xf32>, vector<1x27xf32> -> vector<1x64xf32>
    %c48_490 = arith.constant 48 : index
    %c0_491 = arith.constant 0 : index
    %742 = vector.load %arg4[%c48_490, %c0_491] : memref<56x64xf32, #tpu.memory_space<vmem>>, vector<1x64xf32>
    %743 = arith.mulf %741, %742 : vector<1x64xf32>
    %744 = arith.addf %737, %743 : vector<1x64xf32>
    %cst_492 = arith.constant 0.000000e+00 : f32
    %745 = vector.broadcast %cst_492 : f32 to vector<1x64xf32>
    %746 = arith.subf %745, %744 : vector<1x64xf32>
    %747 = math.exp %746 : vector<1x64xf32>
    %cst_493 = arith.constant 1.000000e+00 : f32
    %748 = vector.broadcast %cst_493 : f32 to vector<1x64xf32>
    %749 = arith.addf %748, %747 : vector<1x64xf32>
    %cst_494 = arith.constant 1.000000e+00 : f32
    %750 = vector.broadcast %cst_494 : f32 to vector<1x64xf32>
    %751 = arith.divf %750, %749 : vector<1x64xf32>
    %752 = vector.broadcast %751 : vector<1x64xf32> to vector<32x64xf32>
    %753 = arith.mulf %401, %752 : vector<32x64xf32>
    %c1_495 = arith.constant 1 : index
    %c0_496 = arith.constant 0 : index
    %c0_497 = arith.constant 0 : index
    %754 = vector.load %arg12[%c1_495, %c0_496, %c0_497] : memref<2x32x64xf32, #tpu.memory_space<vmem>>, vector<1x32x64xf32>
    %755 = vector.shape_cast %754 : vector<1x32x64xf32> to vector<32x64xf32>
    %756 = vector.shape_cast %753 : vector<32x64xf32> to vector<1x32x64xf32>
    tpu.vector_store %arg12[%c1_495, %c0_496, %c0_497], %756 {strides = array<i32>} : memref<2x32x64xf32, #tpu.memory_space<vmem>>, vector<1x32x64xf32>,
    %c0_498 = arith.constant 0 : index
    %c0_499 = arith.constant 0 : index
    %c0_500 = arith.constant 0 : index
    %757 = vector.load %arg12[%c0_498, %c0_499, %c0_500] : memref<2x32x64xf32, #tpu.memory_space<vmem>>, vector<1x32x64xf32>
    %758 = vector.shape_cast %757 : vector<1x32x64xf32> to vector<32x64xf32>
    %cst_501 = arith.constant dense<0.000000e+00> : vector<96x64xf32>
    %759 = tpu.matmul %3, %758, %cst_501 {dimension_numbers = #tpu.dot_dimension_numbers<[1], [0], [0], [1], [0, 0, 1, 1], [], []>} : vector<96x32xf32>, vector<32x64xf32>, vector<96x64xf32> -> vector<96x64xf32>
    %760 = vector.broadcast %4 : vector<96x1xf32> to vector<96x64xf32>
    %761 = arith.addf %759, %760 : vector<96x64xf32>
    %c0_502 = arith.constant 0 : index
    %c0_503 = arith.constant 0 : index
    %762 = vector.load %arg13[%c0_502, %c0_503] : memref<192x64xf32, #tpu.memory_space<vmem>>, vector<96x64xf32>
    tpu.vector_store %arg13[%c0_502, %c0_503], %761 {strides = array<i32>} : memref<192x64xf32, #tpu.memory_space<vmem>>, vector<96x64xf32>,
    %c1_504 = arith.constant 1 : index
    %c0_505 = arith.constant 0 : index
    %c0_506 = arith.constant 0 : index
    %763 = vector.load %arg12[%c1_504, %c0_505, %c0_506] : memref<2x32x64xf32, #tpu.memory_space<vmem>>, vector<1x32x64xf32>
    %764 = vector.shape_cast %763 : vector<1x32x64xf32> to vector<32x64xf32>
    %cst_507 = arith.constant dense<0.000000e+00> : vector<96x64xf32>
    %765 = tpu.matmul %3, %764, %cst_507 {dimension_numbers = #tpu.dot_dimension_numbers<[1], [0], [0], [1], [0, 0, 1, 1], [], []>} : vector<96x32xf32>, vector<32x64xf32>, vector<96x64xf32> -> vector<96x64xf32>
    %766 = vector.broadcast %4 : vector<96x1xf32> to vector<96x64xf32>
    %767 = arith.addf %765, %766 : vector<96x64xf32>
    %c96 = arith.constant 96 : index
    %c0_508 = arith.constant 0 : index
    %768 = vector.load %arg13[%c96, %c0_508] : memref<192x64xf32, #tpu.memory_space<vmem>>, vector<96x64xf32>
    tpu.vector_store %arg13[%c96, %c0_508], %767 {strides = array<i32>} : memref<192x64xf32, #tpu.memory_space<vmem>>, vector<96x64xf32>,
    %c0_509 = arith.constant 0 : index
    %c0_510 = arith.constant 0 : index
    %769 = vector.load %arg13[%c0_509, %c0_510] : memref<192x64xf32, #tpu.memory_space<vmem>>, vector<32x64xf32>
    %c32_511 = arith.constant 32 : index
    %c0_512 = arith.constant 0 : index
    %770 = vector.load %arg13[%c32_511, %c0_512] : memref<192x64xf32, #tpu.memory_space<vmem>>, vector<32x64xf32>
    %771 = arith.mulf %769, %770 : vector<32x64xf32>
    %c128 = arith.constant 128 : index
    %c0_513 = arith.constant 0 : index
    %772 = vector.load %arg13[%c128, %c0_513] : memref<192x64xf32, #tpu.memory_space<vmem>>, vector<32x64xf32>
    %773 = arith.mulf %769, %772 : vector<32x64xf32>
    %774 = tpu.concatenate %771, %773 in 0 : vector<32x64xf32>, vector<32x64xf32> -> vector<64x64xf32>
    %cst_514 = arith.constant dense<0.000000e+00> : vector<16x64xf32>
    %775 = tpu.matmul %7, %774, %cst_514 {dimension_numbers = #tpu.dot_dimension_numbers<[1], [0], [0], [1], [0, 0, 1, 1], [], []>} : vector<16x64xf32>, vector<64x64xf32>, vector<16x64xf32> -> vector<16x64xf32>
    %776 = vector.extract_strided_slice %775 {offsets = [0, 0], sizes = [8, 64], strides = [1, 1]} : vector<16x64xf32> to vector<8x64xf32>
    %777 = vector.extract_strided_slice %775 {offsets = [8, 0], sizes = [8, 64], strides = [1, 1]} : vector<16x64xf32> to vector<8x64xf32>
    %778 = arith.maximumf %776, %777 : vector<8x64xf32>
    %779 = arith.subf %776, %778 : vector<8x64xf32>
    %780 = math.exp %779 : vector<8x64xf32>
    %781 = arith.subf %777, %778 : vector<8x64xf32>
    %782 = math.exp %781 : vector<8x64xf32>
    %783 = arith.addf %780, %782 : vector<8x64xf32>
    %784 = tpu.reciprocal %783 {approx = true} : vector<8x64xf32> -> vector<8x64xf32>
    %cst_515 = arith.constant 0.000000e+00 : f32
    %785 = vector.broadcast %cst_515 : f32 to vector<32x64xf32>
    %786 = arith.mulf %780, %784 : vector<8x64xf32>
    %cst_516 = arith.constant dense<0.000000e+00> : vector<32x64xf32>
    %787 = tpu.matmul %8, %786, %cst_516 {dimension_numbers = #tpu.dot_dimension_numbers<[1], [0], [0], [1], [0, 0, 1, 1], [], []>} : vector<32x8xf32>, vector<8x64xf32>, vector<32x64xf32> -> vector<32x64xf32>
    %c64 = arith.constant 64 : index
    %c0_517 = arith.constant 0 : index
    %788 = vector.load %arg13[%c64, %c0_517] : memref<192x64xf32, #tpu.memory_space<vmem>>, vector<32x64xf32>
    %789 = arith.mulf %787, %788 : vector<32x64xf32>
    %790 = arith.addf %785, %789 : vector<32x64xf32>
    %791 = arith.mulf %782, %784 : vector<8x64xf32>
    %cst_518 = arith.constant dense<0.000000e+00> : vector<32x64xf32>
    %792 = tpu.matmul %8, %791, %cst_518 {dimension_numbers = #tpu.dot_dimension_numbers<[1], [0], [0], [1], [0, 0, 1, 1], [], []>} : vector<32x8xf32>, vector<8x64xf32>, vector<32x64xf32> -> vector<32x64xf32>
    %c160 = arith.constant 160 : index
    %c0_519 = arith.constant 0 : index
    %793 = vector.load %arg13[%c160, %c0_519] : memref<192x64xf32, #tpu.memory_space<vmem>>, vector<32x64xf32>
    %794 = arith.mulf %792, %793 : vector<32x64xf32>
    %795 = arith.addf %790, %794 : vector<32x64xf32>
    %cst_520 = arith.constant dense<0.000000e+00> : vector<32x64xf32>
    %796 = tpu.matmul %5, %795, %cst_520 {dimension_numbers = #tpu.dot_dimension_numbers<[1], [0], [0], [1], [0, 0, 1, 1], [], []>} : vector<32x32xf32>, vector<32x64xf32>, vector<32x64xf32> -> vector<32x64xf32>
    %797 = vector.broadcast %6 : vector<32x1xf32> to vector<32x64xf32>
    %798 = arith.addf %796, %797 : vector<32x64xf32>
    %c0_521 = arith.constant 0 : index
    %c0_522 = arith.constant 0 : index
    %c0_523 = arith.constant 0 : index
    %799 = vector.load %arg11[%c0_521, %c0_522, %c0_523] : memref<2x32x64xf32, #tpu.memory_space<vmem>>, vector<1x32x64xf32>
    %800 = vector.shape_cast %799 : vector<1x32x64xf32> to vector<32x64xf32>
    %801 = vector.shape_cast %798 : vector<32x64xf32> to vector<1x32x64xf32>
    tpu.vector_store %arg11[%c0_521, %c0_522, %c0_523], %801 {strides = array<i32>} : memref<2x32x64xf32, #tpu.memory_space<vmem>>, vector<1x32x64xf32>,
    %c96_524 = arith.constant 96 : index
    %c0_525 = arith.constant 0 : index
    %802 = vector.load %arg13[%c96_524, %c0_525] : memref<192x64xf32, #tpu.memory_space<vmem>>, vector<32x64xf32>
    %c32_526 = arith.constant 32 : index
    %c0_527 = arith.constant 0 : index
    %803 = vector.load %arg13[%c32_526, %c0_527] : memref<192x64xf32, #tpu.memory_space<vmem>>, vector<32x64xf32>
    %804 = arith.mulf %802, %803 : vector<32x64xf32>
    %c128_528 = arith.constant 128 : index
    %c0_529 = arith.constant 0 : index
    %805 = vector.load %arg13[%c128_528, %c0_529] : memref<192x64xf32, #tpu.memory_space<vmem>>, vector<32x64xf32>
    %806 = arith.mulf %802, %805 : vector<32x64xf32>
    %807 = tpu.concatenate %804, %806 in 0 : vector<32x64xf32>, vector<32x64xf32> -> vector<64x64xf32>
    %cst_530 = arith.constant dense<0.000000e+00> : vector<16x64xf32>
    %808 = tpu.matmul %7, %807, %cst_530 {dimension_numbers = #tpu.dot_dimension_numbers<[1], [0], [0], [1], [0, 0, 1, 1], [], []>} : vector<16x64xf32>, vector<64x64xf32>, vector<16x64xf32> -> vector<16x64xf32>
    %809 = vector.extract_strided_slice %808 {offsets = [0, 0], sizes = [8, 64], strides = [1, 1]} : vector<16x64xf32> to vector<8x64xf32>
    %810 = vector.extract_strided_slice %808 {offsets = [8, 0], sizes = [8, 64], strides = [1, 1]} : vector<16x64xf32> to vector<8x64xf32>
    %811 = arith.maximumf %809, %810 : vector<8x64xf32>
    %812 = arith.subf %809, %811 : vector<8x64xf32>
    %813 = math.exp %812 : vector<8x64xf32>
    %814 = arith.subf %810, %811 : vector<8x64xf32>
    %815 = math.exp %814 : vector<8x64xf32>
    %816 = arith.addf %813, %815 : vector<8x64xf32>
    %817 = tpu.reciprocal %816 {approx = true} : vector<8x64xf32> -> vector<8x64xf32>
    %cst_531 = arith.constant 0.000000e+00 : f32
    %818 = vector.broadcast %cst_531 : f32 to vector<32x64xf32>
    %819 = arith.mulf %813, %817 : vector<8x64xf32>
    %cst_532 = arith.constant dense<0.000000e+00> : vector<32x64xf32>
    %820 = tpu.matmul %8, %819, %cst_532 {dimension_numbers = #tpu.dot_dimension_numbers<[1], [0], [0], [1], [0, 0, 1, 1], [], []>} : vector<32x8xf32>, vector<8x64xf32>, vector<32x64xf32> -> vector<32x64xf32>
    %c64_533 = arith.constant 64 : index
    %c0_534 = arith.constant 0 : index
    %821 = vector.load %arg13[%c64_533, %c0_534] : memref<192x64xf32, #tpu.memory_space<vmem>>, vector<32x64xf32>
    %822 = arith.mulf %820, %821 : vector<32x64xf32>
    %823 = arith.addf %818, %822 : vector<32x64xf32>
    %824 = arith.mulf %815, %817 : vector<8x64xf32>
    %cst_535 = arith.constant dense<0.000000e+00> : vector<32x64xf32>
    %825 = tpu.matmul %8, %824, %cst_535 {dimension_numbers = #tpu.dot_dimension_numbers<[1], [0], [0], [1], [0, 0, 1, 1], [], []>} : vector<32x8xf32>, vector<8x64xf32>, vector<32x64xf32> -> vector<32x64xf32>
    %c160_536 = arith.constant 160 : index
    %c0_537 = arith.constant 0 : index
    %826 = vector.load %arg13[%c160_536, %c0_537] : memref<192x64xf32, #tpu.memory_space<vmem>>, vector<32x64xf32>
    %827 = arith.mulf %825, %826 : vector<32x64xf32>
    %828 = arith.addf %823, %827 : vector<32x64xf32>
    %cst_538 = arith.constant dense<0.000000e+00> : vector<32x64xf32>
    %829 = tpu.matmul %5, %828, %cst_538 {dimension_numbers = #tpu.dot_dimension_numbers<[1], [0], [0], [1], [0, 0, 1, 1], [], []>} : vector<32x32xf32>, vector<32x64xf32>, vector<32x64xf32> -> vector<32x64xf32>
    %830 = vector.broadcast %6 : vector<32x1xf32> to vector<32x64xf32>
    %831 = arith.addf %829, %830 : vector<32x64xf32>
    %c1_539 = arith.constant 1 : index
    %c0_540 = arith.constant 0 : index
    %c0_541 = arith.constant 0 : index
    %832 = vector.load %arg11[%c1_539, %c0_540, %c0_541] : memref<2x32x64xf32, #tpu.memory_space<vmem>>, vector<1x32x64xf32>
    %833 = vector.shape_cast %832 : vector<1x32x64xf32> to vector<32x64xf32>
    %834 = vector.shape_cast %831 : vector<32x64xf32> to vector<1x32x64xf32>
    tpu.vector_store %arg11[%c1_539, %c0_540, %c0_541], %834 {strides = array<i32>} : memref<2x32x64xf32, #tpu.memory_space<vmem>>, vector<1x32x64xf32>,
    return
  }
}

</mosaic_0001>

<llo_original>
// kernel: triple_attention.1
$region0: #{triple_attention.1}
  #allocation0 [shape = 'u32[]', space=smem, size = 0x4, offset = 0x4, fixed_abs, tag = 'smem constant byte address 0x4 - core index']
  #allocation1 [shape = 'u32[72,128]{1,0:T(1,128)}', space=vmem, size = 0x9000, scoped, tag = 'internal scratch']
  #allocation2 [shape = 'f32[2,32,64]{2,1,0:T(8,128)}', space=vmem, size = 0x8000, scoped, tag = 'scratch operand']
  #allocation3 [shape = 'f32[192,64]{1,0:T(8,128)}', space=vmem, size = 0x18000, scoped, tag = 'scratch operand']
  #allocation4 [shape = 'f32[56,64]{1,0:T(8,128)}', space=vmem, size = 0x7000, scoped, tag = 'scratch operand']
  %s0 = inlined_call_operand.vmem [shape: f32[2,32,64], index: 0, kind: input, shape index: {}]
  %s1 = inlined_call_operand.vmem [shape: f32[2,32], index: 1, kind: input, shape index: {}]
  %s2 = inlined_call_operand.vmem [shape: f32[32,2], index: 2, kind: input, shape index: {}]
  %s3 = inlined_call_operand.vmem [shape: f32[56,32], index: 3, kind: input, shape index: {}]
  %s4 = inlined_call_operand.vmem [shape: f32[56,64], index: 4, kind: input, shape index: {}]
  %s5 = inlined_call_operand.vmem [shape: f32[96,32], index: 5, kind: input, shape index: {}]
  %s6 = inlined_call_operand.vmem [shape: f32[96,1], index: 6, kind: input, shape index: {}]
  %s7 = inlined_call_operand.vmem [shape: f32[32,32], index: 7, kind: input, shape index: {}]
  %s8 = inlined_call_operand.vmem [shape: f32[32,1], index: 8, kind: input, shape index: {}]
  %s9 = inlined_call_operand.vmem [shape: f32[16,64], index: 9, kind: input, shape index: {}]
  %s10 = inlined_call_operand.vmem [shape: f32[32,8], index: 10, kind: input, shape index: {}]
  %s11 = inlined_call_operand.vmem [shape: f32[2,32,64], index: 11, kind: output, shape index: {}]
  %s12 = sld [smem:[#allocation0]]
  $region54: #{triple_attention.1} parent=0
    _
  %s14 = ssub.s32 1, %s12
  %s15 = scalar_select 0, %s14, %s12
  // Predicated region
  $region2: #{triple_attention.1} parent=0 // pred_check
    _
  $region3: #{triple_attention.1} parent=0 // pred_check_branch
    %17 = sbr.rel (0) target = $region5
  $region4: #{triple_attention.1} parent=0 // pred_region
    _
  $region5: #{triple_attention.1} parent=0 // pred_fallthru
    _
  // Predicated region
  $region6: #{triple_attention.1} parent=0 // pred_check
    _
  $region7: #{triple_attention.1} parent=0 // pred_check_branch
    %19 = sbr.rel (0) target = $region9
  $region8: #{triple_attention.1} parent=0 // pred_region
    _
  $region9: #{triple_attention.1} parent=0 // pred_fallthru
    _
  // Predicated region
  $region10: #{triple_attention.1} parent=0 // pred_check
    _
  $region11: #{triple_attention.1} parent=0 // pred_check_branch
    %21 = sbr.rel (0) target = $region13
  $region12: #{triple_attention.1} parent=0 // pred_region
    _
  $region13: #{triple_attention.1} parent=0 // pred_fallthru
    _
  // Predicated region
  $region14: #{triple_attention.1} parent=0 // pred_check
    _
  $region15: #{triple_attention.1} parent=0 // pred_check_branch
    %23 = sbr.rel (0) target = $region17
  $region16: #{triple_attention.1} parent=0 // pred_region
    _
  $region17: #{triple_attention.1} parent=0 // pred_fallthru
    _
  // Predicated region
  $region18: #{triple_attention.1} parent=0 // pred_check
    _
  $region19: #{triple_attention.1} parent=0 // pred_check_branch
    %25 = sbr.rel (0) target = $region21
  $region20: #{triple_attention.1} parent=0 // pred_region
    _
  $region21: #{triple_attention.1} parent=0 // pred_fallthru
    _
  // Predicated region
  $region22: #{triple_attention.1} parent=0 // pred_check
    _
  $region23: #{triple_attention.1} parent=0 // pred_check_branch
    %27 = sbr.rel (0) target = $region25
  $region24: #{triple_attention.1} parent=0 // pred_region
    _
  $region25: #{triple_attention.1} parent=0 // pred_fallthru
    _
  // Predicated region
  $region26: #{triple_attention.1} parent=0 // pred_check
    _
  $region27: #{triple_attention.1} parent=0 // pred_check_branch
    %29 = sbr.rel (0) target = $region29
  $region28: #{triple_attention.1} parent=0 // pred_region
    _
  $region29: #{triple_attention.1} parent=0 // pred_fallthru
    _
  // Predicated region
  $region30: #{triple_attention.1} parent=0 // pred_check
    _
  $region31: #{triple_attention.1} parent=0 // pred_check_branch
    %31 = sbr.rel (0) target = $region33
  $region32: #{triple_attention.1} parent=0 // pred_region
    _
  $region33: #{triple_attention.1} parent=0 // pred_fallthru
    _
  // Predicated region
  $region34: #{triple_attention.1} parent=0 // pred_check
    _
  $region35: #{triple_attention.1} parent=0 // pred_check_branch
    %33 = sbr.rel (0) target = $region37
  $region36: #{triple_attention.1} parent=0 // pred_region
    _
  $region37: #{triple_attention.1} parent=0 // pred_fallthru
    _
  // Predicated region
  $region38: #{triple_attention.1} parent=0 // pred_check
    _
  $region39: #{triple_attention.1} parent=0 // pred_check_branch
    %35 = sbr.rel (0) target = $region41
  $region40: #{triple_attention.1} parent=0 // pred_region
    _
  $region41: #{triple_attention.1} parent=0 // pred_fallthru
    _
  // Predicated region
  $region42: #{triple_attention.1} parent=0 // pred_check
    _
  $region43: #{triple_attention.1} parent=0 // pred_check_branch
    %37 = sbr.rel (0) target = $region45
  $region44: #{triple_attention.1} parent=0 // pred_region
    _
  $region45: #{triple_attention.1} parent=0 // pred_fallthru
    _
  %v38 = vld [vmem:[%s1] sm:$0x3]
  %v39 = vld [vmem:[%s2] sm:$0xff]
  %v40 = vld [vmem:[%s2 + $0x8] sm:$0xff]
  %v41 = vld [vmem:[%s2 + $0x10] sm:$0xff]
  %v42 = vld [vmem:[%s2 + $0x18] sm:$0xff]
  %v43 = vld [vmem:[%s3] sm:$0xff]
  %v44 = vld [vmem:[%s3 + $0x8] sm:$0xff]
  %v45 = vld [vmem:[%s3 + $0x10] sm:$0xff]
  %v46 = vld [vmem:[%s3 + $0x18] sm:$0xff]
  %v47 = vld [vmem:[%s3 + $0x20] sm:$0xff]
  %v48 = vld [vmem:[%s3 + $0x28] sm:$0xff]
  %v49 = vld [vmem:[%s3 + $0x30] sm:$0xff]
  %v50 = vld [vmem:[%s5] sm:$0xff]
  %v51 = vld [vmem:[%s5 + $0x8] sm:$0xff]
  %v52 = vld [vmem:[%s5 + $0x10] sm:$0xff]
  %v53 = vld [vmem:[%s5 + $0x18] sm:$0xff]
  %v54 = vld [vmem:[%s5 + $0x20] sm:$0xff]
  %v55 = vld [vmem:[%s5 + $0x28] sm:$0xff]
  %v56 = vld [vmem:[%s5 + $0x30] sm:$0xff]
  %v57 = vld [vmem:[%s5 + $0x38] sm:$0xff]
  %v58 = vld [vmem:[%s5 + $0x40] sm:$0xff]
  %v59 = vld [vmem:[%s5 + $0x48] sm:$0xff]
  %v60 = vld [vmem:[%s5 + $0x50] sm:$0xff]
  %v61 = vld [vmem:[%s5 + $0x58] sm:$0xff]
  %v62 = vld [vmem:[%s6] sm:$0xff]
  %v63 = vld [vmem:[%s6 + $0x8] sm:$0xff]
  %v64 = vld [vmem:[%s6 + $0x10] sm:$0xff]
  %v65 = vld [vmem:[%s6 + $0x18] sm:$0xff]
  %v66 = vld [vmem:[%s6 + $0x20] sm:$0xff]
  %v67 = vld [vmem:[%s6 + $0x28] sm:$0xff]
  %v68 = vld [vmem:[%s6 + $0x30] sm:$0xff]
  %v69 = vld [vmem:[%s6 + $0x38] sm:$0xff]
  %v70 = vld [vmem:[%s6 + $0x40] sm:$0xff]
  %v71 = vld [vmem:[%s6 + $0x48] sm:$0xff]
  %v72 = vld [vmem:[%s6 + $0x50] sm:$0xff]
  %v73 = vld [vmem:[%s6 + $0x58] sm:$0xff]
  %v74 = vld [vmem:[%s7] sm:$0xff]
  %v75 = vld [vmem:[%s7 + $0x8] sm:$0xff]
  %v76 = vld [vmem:[%s7 + $0x10] sm:$0xff]
  %v77 = vld [vmem:[%s7 + $0x18] sm:$0xff]
  %v78 = vld [vmem:[%s8] sm:$0xff]
  %v79 = vld [vmem:[%s8 + $0x8] sm:$0xff]
  %v80 = vld [vmem:[%s8 + $0x10] sm:$0xff]
  %v81 = vld [vmem:[%s8 + $0x18] sm:$0xff]
  %v82 = vld [vmem:[%s9] sm:$0xff]
  %v83 = vld [vmem:[%s9 + $0x8] sm:$0xff]
  %v84 = vld [vmem:[%s10] sm:$0xff]
  %v85 = vld [vmem:[%s10 + $0x8] sm:$0xff]
  %v86 = vld [vmem:[%s10 + $0x10] sm:$0xff]
  %v87 = vld [vmem:[%s10 + $0x18] sm:$0xff]
  %v88 = vld [vmem:[%s0] sm:$0xff]
  %v89 = vld [vmem:[%s0 + $0x8] sm:$0xff]
  %v90 = vld [vmem:[%s0 + $0x10] sm:$0xff]
  %v91 = vld [vmem:[%s0 + $0x18] sm:$0xff]
  %vm92 = vcmask 523264
  %v93 = vsel %vm92, %v88, 0.0
  %94 = vadd.xlane.f32.xlu0 %v93
  %v95 = vpop.xlane.xlu0 %94
  %v96 = vsel %vm92, %v89, 0.0
  %97 = vadd.xlane.f32.xlu0 %v96
  %v98 = vpop.xlane.xlu0 %97
  %v99 = vsel %vm92, %v90, 0.0
  %100 = vadd.xlane.f32.xlu0 %v99
  %v101 = vpop.xlane.xlu0 %100
  %v102 = vsel %vm92, %v91, 0.0
  %103 = vadd.xlane.f32.xlu0 %v102
  %v104 = vpop.xlane.xlu0 %103
  %v105 = vmul.f32 %v95, 0.015625
  %v106 = vmul.f32 %v98, 0.015625
  %v107 = vmul.f32 %v101, 0.015625
  %v108 = vmul.f32 %v104, 0.015625
  %vm109 = vcmask 261120
  %v111 = vsel %vm109, %v38, 0
  %113 = vmatpush.msra.mxu0 0.0
  %114 = vmatpush.msra.mxu0 0.0
  %115 = vmatpush.msra.mxu0 0.0
  %116 = vmatpush.msra.mxu0 0.0
  %117 = vmatpush.msra.mxu0 0.0
  %118 = vmatpush.msra.mxu0 0.0
  %119 = vmatpush.msra.mxu0 0.0
  %120 = vmatpush.msra.mxu0 0.0
  %121 = vmatpush.msra.mxu0 0.0
  %122 = vmatpush.msra.mxu0 0.0
  %123 = vmatpush.msra.mxu0 0.0
  %124 = vmatpush.msra.mxu0 0.0
  %125 = vmatpush.msra.mxu0 %v108
  %126 = vmatpush.msra.mxu0 %v107
  %127 = vmatpush.msra.mxu0 %v106
  %128 = vmatpush.msra.mxu0 %v105
  %129 = vmatmul.f32.gmra.mxu0 %v111
  %v130 = vpop.f32.mrf.mxu0
  %v131 = vadd.f32 0.0, %v130
  %132 = vdwg.mxu0
  %v133 = vmax.f32 %v131, 0.0
  %vm134 = vcmask 15360
  %v136 = vsel %vm134, %v39, 0
  %v139 = vsel %vm134, %v40, 0
  %v142 = vsel %vm134, %v41, 0
  %v145 = vsel %vm134, %v42, 0
  %vm147 = vcmask 1041408
  %v149 = vsel %vm147, %v133, 0
  %151 = vmatpush.msra.mxu0 0.0
  %152 = vmatpush.msra.mxu0 0.0
  %153 = vmatpush.msra.mxu0 0.0
  %154 = vmatpush.msra.mxu0 0.0
  %155 = vmatpush.msra.mxu0 0.0
  %156 = vmatpush.msra.mxu0 0.0
  %157 = vmatpush.msra.mxu0 0.0
  %158 = vmatpush.msra.mxu0 0.0
  %159 = vmatpush.msra.mxu0 0.0
  %160 = vmatpush.msra.mxu0 0.0
  %161 = vmatpush.msra.mxu0 0.0
  %162 = vmatpush.msra.mxu0 0.0
  %163 = vmatpush.msra.mxu0 0.0
  %164 = vmatpush.msra.mxu0 0.0
  %165 = vmatpush.msra.mxu0 0.0
  %166 = vmatpush.msra.mxu0 %v149
  %167 = vmatmul.f32.gmra.mxu0 %v136
  %v168 = vpop.f32.mrf.mxu0
  %v169 = vadd.f32 0.0, %v168
  %170 = vmatmul.f32.gmra.mxu0 %v139
  %v171 = vpop.f32.mrf.mxu0
  %v172 = vadd.f32 0.0, %v171
  %173 = vmatmul.f32.gmra.mxu0 %v142
  %v174 = vpop.f32.mrf.mxu0
  %v175 = vadd.f32 0.0, %v174
  %176 = vmatmul.f32.gmra.mxu0 %v145
  %v177 = vpop.f32.mrf.mxu0
  %v178 = vadd.f32 0.0, %v177
  %179 = vdwg.mxu0
  %v180 = vsub.f32 0.0, %v169
  %v181 = vsub.f32 0.0, %v172
  %v182 = vsub.f32 0.0, %v175
  %v183 = vsub.f32 0.0, %v178
  %v184 = vmul.f32 %v180, 1.442695
  %v185 = vpow.pop %v184
  %v186 = vmul.f32 %v181, 1.442695
  %v187 = vpow.pop %v186
  %v188 = vmul.f32 %v182, 1.442695
  %v189 = vpow.pop %v188
  %v190 = vmul.f32 %v183, 1.442695
  %v191 = vpow.pop %v190
  %v192 = vadd.f32 %v185, 1.0
  %v193 = vadd.f32 %v187, 1.0
  %v194 = vadd.f32 %v189, 1.0
  %v195 = vadd.f32 %v191, 1.0
  %v196 = vrcp.pop %v192
  %v197 = vmul.f32 %v192, %v196
  %v198 = vsub.f32 1.0, %v197
  %v199 = vmul.f32 %v196, %v198
  %v200 = vadd.f32 %v196, %v199
  %vm201 = vweird.f32 %v192
  %vm202 = vweird.f32 %v196
  %vm203 = vmor %vm201, %vm202
  %v204 = vsel %vm203, %v196, %v200
  %v205 = vand.u32 2147483647, %v192
  %vm206 = vcmp.eq.f32.partialorder %v205, 8.507059e+37
  %v207 = vand.u32 %v192, 2147483648
  %v208 = vor.u32 1.1754944e-38, %v207
  %v209 = vsel %vm206, %v208, %v204
  %v210 = vmul.f32 1.0, %v209
  %v211 = vrcp.pop %v193
  %v212 = vmul.f32 %v193, %v211
  %v213 = vsub.f32 1.0, %v212
  %v214 = vmul.f32 %v211, %v213
  %v215 = vadd.f32 %v211, %v214
  %vm216 = vweird.f32 %v193
  %vm217 = vweird.f32 %v211
  %vm218 = vmor %vm216, %vm217
  %v219 = vsel %vm218, %v211, %v215
  %v220 = vand.u32 2147483647, %v193
  %vm221 = vcmp.eq.f32.partialorder %v220, 8.507059e+37
  %v222 = vand.u32 %v193, 2147483648
  %v223 = vor.u32 1.1754944e-38, %v222
  %v224 = vsel %vm221, %v223, %v219
  %v225 = vmul.f32 1.0, %v224
  %v226 = vrcp.pop %v194
  %v227 = vmul.f32 %v194, %v226
  %v228 = vsub.f32 1.0, %v227
  %v229 = vmul.f32 %v226, %v228
  %v230 = vadd.f32 %v226, %v229
  %vm231 = vweird.f32 %v194
  %vm232 = vweird.f32 %v226
  %vm233 = vmor %vm231, %vm232
  %v234 = vsel %vm233, %v226, %v230
  %v235 = vand.u32 2147483647, %v194
  %vm236 = vcmp.eq.f32.partialorder %v235, 8.507059e+37
  %v237 = vand.u32 %v194, 2147483648
  %v238 = vor.u32 1.1754944e-38, %v237
  %v239 = vsel %vm236, %v238, %v234
  %v240 = vmul.f32 1.0, %v239
  %v241 = vrcp.pop %v195
  %v242 = vmul.f32 %v195, %v241
  %v243 = vsub.f32 1.0, %v242
  %v244 = vmul.f32 %v241, %v243
  %v245 = vadd.f32 %v241, %v244
  %vm246 = vweird.f32 %v195
  %vm247 = vweird.f32 %v241
  %vm248 = vmor %vm246, %vm247
  %v249 = vsel %vm248, %v241, %v245
  %v250 = vand.u32 2147483647, %v195
  %vm251 = vcmp.eq.f32.partialorder %v250, 8.507059e+37
  %v252 = vand.u32 %v195, 2147483648
  %v253 = vor.u32 1.1754944e-38, %v252
  %v254 = vsel %vm251, %v253, %v249
  %v255 = vmul.f32 1.0, %v254
  %257 = vset.pattern.permute.xlu0 0
  %258 = vperm.xlu0 %257, %v210
  %v259 = vpop.permute.xlu0 %258
  %262 = vset.pattern.permute.xlu0 0
  %263 = vperm.xlu0 %262, %v225
  %v264 = vpop.permute.xlu0 %263
  %267 = vset.pattern.permute.xlu0 0
  %268 = vperm.xlu0 %267, %v240
  %v269 = vpop.permute.xlu0 %268
  %272 = vset.pattern.permute.xlu0 0
  %273 = vperm.xlu0 %272, %v255
  %v274 = vpop.permute.xlu0 %273
  %v276 = vmul.f32 %v88, %v259
  %v277 = vmul.f32 %v89, %v264
  %v278 = vmul.f32 %v90, %v269
  %v279 = vmul.f32 %v91, %v274
  %v281 = vsel %vm109, %v43, 0
  %v284 = vsel %vm109, %v44, 0
  %v287 = vsel %vm109, %v45, 0
  %v290 = vsel %vm109, %v46, 0
  %v293 = vsel %vm109, %v47, 0
  %v296 = vsel %vm109, %v48, 0
  %v299 = vsel %vm109, %v49, 0
  %301 = vmatpush.msra.mxu0 0.0
  %302 = vmatpush.msra.mxu0 0.0
  %303 = vmatpush.msra.mxu0 0.0
  %304 = vmatpush.msra.mxu0 0.0
  %305 = vmatpush.msra.mxu0 0.0
  %306 = vmatpush.msra.mxu0 0.0
  %307 = vmatpush.msra.mxu0 0.0
  %308 = vmatpush.msra.mxu0 0.0
  %309 = vmatpush.msra.mxu0 0.0
  %310 = vmatpush.msra.mxu0 0.0
  %311 = vmatpush.msra.mxu0 0.0
  %312 = vmatpush.msra.mxu0 0.0
  %313 = vmatpush.msra.mxu0 %v279
  %314 = vmatpush.msra.mxu0 %v278
  %315 = vmatpush.msra.mxu0 %v277
  %316 = vmatpush.msra.mxu0 %v276
  %317 = vmatmul.f32.gmra.mxu0 %v281
  %v318 = vpop.f32.mrf.mxu0
  %v319 = vadd.f32 0.0, %v318
  %320 = vmatmul.f32.gmra.mxu0 %v284
  %v321 = vpop.f32.mrf.mxu0
  %v322 = vadd.f32 0.0, %v321
  %323 = vmatmul.f32.gmra.mxu0 %v287
  %v324 = vpop.f32.mrf.mxu0
  %v325 = vadd.f32 0.0, %v324
  %326 = vmatmul.f32.gmra.mxu0 %v290
  %v327 = vpop.f32.mrf.mxu0
  %v328 = vadd.f32 0.0, %v327
  %329 = vmatmul.f32.gmra.mxu0 %v293
  %v330 = vpop.f32.mrf.mxu0
  %v331 = vadd.f32 0.0, %v330
  %332 = vmatmul.f32.gmra.mxu0 %v296
  %v333 = vpop.f32.mrf.mxu0
  %v334 = vadd.f32 0.0, %v333
  %335 = vmatmul.f32.gmra.mxu0 %v299
  %v336 = vpop.f32.mrf.mxu0
  %v337 = vadd.f32 0.0, %v336
  %338 = vdwg.mxu0
  %339 = vst.msk [vmem:[#allocation4] sm:$0xff] %vm92, %v319
  %340 = vst.msk [vmem:[#allocation4 + $0x8] sm:$0xff] %vm92, %v322
  %341 = vst.msk [vmem:[#allocation4 + $0x10] sm:$0xff] %vm92, %v325
  %342 = vst.msk [vmem:[#allocation4 + $0x18] sm:$0xff] %vm92, %v328
  %343 = vst.msk [vmem:[#allocation4 + $0x20] sm:$0xff] %vm92, %v331
  %344 = vst.msk [vmem:[#allocation4 + $0x28] sm:$0xff] %vm92, %v334
  %345 = vst.msk [vmem:[#allocation4 + $0x30] sm:$0xff] %vm92, %v337
  %v346 = vld [vmem:[#allocation4] sm:$0x1]
  %348 = vrot.lane.b32.xlu0 %v346, 27
  %v349 = vpop.permute.xlu0 %348
  %vm351 = vcmask 220160
  %v352 = vsel %vm351, 0.0, %v349
  %v353 = vld [vmem:[%s4] sm:$0x1]
  %v354 = vmul.f32 %v352, %v353
  %v355 = vadd.f32 %v354, 0.0
  %v356 = vld [vmem:[#allocation4 + $0x1] sm:$0x1]
  %358 = vrot.lane.b32.xlu0 %v356, 26
  %v359 = vpop.permute.xlu0 %358
  %vm361 = vcmask 211968
  %v362 = vsel %vm361, 0.0, %v359
  %v363 = vld [vmem:[%s4 + $0x1] sm:$0x1]
  %v364 = vmul.f32 %v362, %v363
  %v365 = vadd.f32 %v355, %v364
  %v366 = vld [vmem:[#allocation4 + $0x2] sm:$0x1]
  %368 = vrot.lane.b32.xlu0 %v366, 25
  %v369 = vpop.permute.xlu0 %368
  %vm371 = vcmask 203776
  %v372 = vsel %vm371, 0.0, %v369
  %v373 = vld [vmem:[%s4 + $0x2] sm:$0x1]
  %v374 = vmul.f32 %v372, %v373
  %v375 = vadd.f32 %v365, %v374
  %v376 = vld [vmem:[#allocation4 + $0x3] sm:$0x1]
  %378 = vrot.lane.b32.xlu0 %v376, 24
  %v379 = vpop.permute.xlu0 %378
  %vm381 = vcmask 195584
  %v382 = vsel %vm381, 0.0, %v379
  %v383 = vld [vmem:[%s4 + $0x3] sm:$0x1]
  %v384 = vmul.f32 %v382, %v383
  %v385 = vadd.f32 %v375, %v384
  %v386 = vld [vmem:[#allocation4 + $0x4] sm:$0x1]
  %388 = vrot.lane.b32.xlu0 %v386, 23
  %v389 = vpop.permute.xlu0 %388
  %vm391 = vcmask 187392
  %v392 = vsel %vm391, 0.0, %v389
  %v393 = vld [vmem:[%s4 + $0x4] sm:$0x1]
  %v394 = vmul.f32 %v392, %v393
  %v395 = vadd.f32 %v385, %v394
  %v396 = vld [vmem:[#allocation4 + $0x5] sm:$0x1]
  %398 = vrot.lane.b32.xlu0 %v396, 22
  %v399 = vpop.permute.xlu0 %398
  %vm401 = vcmask 179200
  %v402 = vsel %vm401, 0.0, %v399
  %v403 = vld [vmem:[%s4 + $0x5] sm:$0x1]
  %v404 = vmul.f32 %v402, %v403
  %v405 = vadd.f32 %v395, %v404
  %v406 = vld [vmem:[#allocation4 + $0x6] sm:$0x1]
  %408 = vrot.lane.b32.xlu0 %v406, 21
  %v409 = vpop.permute.xlu0 %408
  %vm411 = vcmask 171008
  %v412 = vsel %vm411, 0.0, %v409
  %v413 = vld [vmem:[%s4 + $0x6] sm:$0x1]
  %v414 = vmul.f32 %v412, %v413
  %v415 = vadd.f32 %v405, %v414
  %v416 = vld [vmem:[#allocation4 + $0x7] sm:$0x1]
  %418 = vrot.lane.b32.xlu0 %v416, 19
  %v419 = vpop.permute.xlu0 %418
  %vm421 = vcmask 154624
  %v422 = vsel %vm421, 0.0, %v419
  %v423 = vld [vmem:[%s4 + $0x7] sm:$0x1]
  %v424 = vmul.f32 %v422, %v423
  %v425 = vadd.f32 %v415, %v424
  %v426 = vld [vmem:[#allocation4 + $0x8] sm:$0x1]
  %428 = vrot.lane.b32.xlu0 %v426, 18
  %v429 = vpop.permute.xlu0 %428
  %vm431 = vcmask 146432
  %v432 = vsel %vm431, 0.0, %v429
  %v433 = vld [vmem:[%s4 + $0x8] sm:$0x1]
  %v434 = vmul.f32 %v432, %v433
  %v435 = vadd.f32 %v425, %v434
  %v436 = vld [vmem:[#allocation4 + $0x9] sm:$0x1]
  %438 = vrot.lane.b32.xlu0 %v436, 17
  %v439 = vpop.permute.xlu0 %438
  %vm441 = vcmask 138240
  %v442 = vsel %vm441, 0.0, %v439
  %v443 = vld [vmem:[%s4 + $0x9] sm:$0x1]
  %v444 = vmul.f32 %v442, %v443
  %v445 = vadd.f32 %v435, %v444
  %v446 = vld [vmem:[#allocation4 + $0xa] sm:$0x1]
  %448 = vrot.lane.b32.xlu0 %v446, 16
  %v449 = vpop.permute.xlu0 %448
  %vm451 = vcmask 130048
  %v452 = vsel %vm451, 0.0, %v449
  %v453 = vld [vmem:[%s4 + $0xa] sm:$0x1]
  %v454 = vmul.f32 %v452, %v453
  %v455 = vadd.f32 %v445, %v454
  %v456 = vld [vmem:[#allocation4 + $0xb] sm:$0x1]
  %458 = vrot.lane.b32.xlu0 %v456, 15
  %v459 = vpop.permute.xlu0 %458
  %vm461 = vcmask 121856
  %v462 = vsel %vm461, 0.0, %v459
  %v463 = vld [vmem:[%s4 + $0xb] sm:$0x1]
  %v464 = vmul.f32 %v462, %v463
  %v465 = vadd.f32 %v455, %v464
  %v466 = vld [vmem:[#allocation4 + $0xc] sm:$0x1]
  %468 = vrot.lane.b32.xlu0 %v466, 14
  %v469 = vpop.permute.xlu0 %468
  %vm471 = vcmask 113664
  %v472 = vsel %vm471, 0.0, %v469
  %v473 = vld [vmem:[%s4 + $0xc] sm:$0x1]
  %v474 = vmul.f32 %v472, %v473
  %v475 = vadd.f32 %v465, %v474
  %v476 = vld [vmem:[#allocation4 + $0xd] sm:$0x1]
  %478 = vrot.lane.b32.xlu0 %v476, 13
  %v479 = vpop.permute.xlu0 %478
  %vm481 = vcmask 105472
  %v482 = vsel %vm481, 0.0, %v479
  %v483 = vld [vmem:[%s4 + $0xd] sm:$0x1]
  %v484 = vmul.f32 %v482, %v483
  %v485 = vadd.f32 %v475, %v484
  %v486 = vld [vmem:[#allocation4 + $0xe] sm:$0x1]
  %488 = vrot.lane.b32.xlu0 %v486, 11
  %v489 = vpop.permute.xlu0 %488
  %vm491 = vcmask 89088
  %v492 = vsel %vm491, 0.0, %v489
  %v493 = vld [vmem:[%s4 + $0xe] sm:$0x1]
  %v494 = vmul.f32 %v492, %v493
  %v495 = vadd.f32 %v485, %v494
  %v496 = vld [vmem:[#allocation4 + $0xf] sm:$0x1]
  %498 = vrot.lane.b32.xlu0 %v496, 10
  %v499 = vpop.permute.xlu0 %498
  %vm501 = vcmask 80896
  %v502 = vsel %vm501, 0.0, %v499
  %v503 = vld [vmem:[%s4 + $0xf] sm:$0x1]
  %v504 = vmul.f32 %v502, %v503
  %v505 = vadd.f32 %v495, %v504
  %v506 = vld [vmem:[#allocation4 + $0x10] sm:$0x1]
  %508 = vrot.lane.b32.xlu0 %v506, 9
  %v509 = vpop.permute.xlu0 %508
  %vm511 = vcmask 72704
  %v512 = vsel %vm511, 0.0, %v509
  %v513 = vld [vmem:[%s4 + $0x10] sm:$0x1]
  %v514 = vmul.f32 %v512, %v513
  %v515 = vadd.f32 %v505, %v514
  %v516 = vld [vmem:[#allocation4 + $0x11] sm:$0x1]
  %518 = vrot.lane.b32.xlu0 %v516, 8
  %v519 = vpop.permute.xlu0 %518
  %vm521 = vcmask 64512
  %v522 = vsel %vm521, 0.0, %v519
  %v523 = vld [vmem:[%s4 + $0x11] sm:$0x1]
  %v524 = vmul.f32 %v522, %v523
  %v525 = vadd.f32 %v515, %v524
  %v526 = vld [vmem:[#allocation4 + $0x12] sm:$0x1]
  %528 = vrot.lane.b32.xlu0 %v526, 7
  %v529 = vpop.permute.xlu0 %528
  %vm531 = vcmask 56320
  %v532 = vsel %vm531, 0.0, %v529
  %v533 = vld [vmem:[%s4 + $0x12] sm:$0x1]
  %v534 = vmul.f32 %v532, %v533
  %v535 = vadd.f32 %v525, %v534
  %v536 = vld [vmem:[#allocation4 + $0x13] sm:$0x1]
  %538 = vrot.lane.b32.xlu0 %v536, 6
  %v539 = vpop.permute.xlu0 %538
  %vm541 = vcmask 48128
  %v542 = vsel %vm541, 0.0, %v539
  %v543 = vld [vmem:[%s4 + $0x13] sm:$0x1]
  %v544 = vmul.f32 %v542, %v543
  %v545 = vadd.f32 %v535, %v544
  %v546 = vld [vmem:[#allocation4 + $0x14] sm:$0x1]
  %548 = vrot.lane.b32.xlu0 %v546, 5
  %v549 = vpop.permute.xlu0 %548
  %vm551 = vcmask 39936
  %v552 = vsel %vm551, 0.0, %v549
  %v553 = vld [vmem:[%s4 + $0x14] sm:$0x1]
  %v554 = vmul.f32 %v552, %v553
  %v555 = vadd.f32 %v545, %v554
  %v556 = vld [vmem:[#allocation4 + $0x15] sm:$0x1]
  %558 = vrot.lane.b32.xlu0 %v556, 3
  %v559 = vpop.permute.xlu0 %558
  %vm561 = vcmask 23552
  %v562 = vsel %vm561, 0.0, %v559
  %v563 = vld [vmem:[%s4 + $0x15] sm:$0x1]
  %v564 = vmul.f32 %v562, %v563
  %v565 = vadd.f32 %v555, %v564
  %v566 = vld [vmem:[#allocation4 + $0x16] sm:$0x1]
  %568 = vrot.lane.b32.xlu0 %v566, 2
  %v569 = vpop.permute.xlu0 %568
  %v571 = vsel %vm134, 0.0, %v569
  %v572 = vld [vmem:[%s4 + $0x16] sm:$0x1]
  %v573 = vmul.f32 %v571, %v572
  %v574 = vadd.f32 %v565, %v573
  %v575 = vld [vmem:[#allocation4 + $0x17] sm:$0x1]
  %577 = vrot.lane.b32.xlu0 %v575, 1
  %v578 = vpop.permute.xlu0 %577
  %vm580 = vcmask 7168
  %v581 = vsel %vm580, 0.0, %v578
  %v582 = vld [vmem:[%s4 + $0x17] sm:$0x1]
  %v583 = vmul.f32 %v581, %v582
  %v584 = vadd.f32 %v574, %v583
  %v585 = vld [vmem:[#allocation4 + $0x18] sm:$0x1]
  %v586 = vld [vmem:[%s4 + $0x18] sm:$0x1]
  %v587 = vmul.f32 %v585, %v586
  %v588 = vadd.f32 %v584, %v587
  %v589 = vld [vmem:[#allocation4 + $0x19] sm:$0x1]
  %591 = vrot.lane.b32.xlu0 %v589, 127
  %v592 = vpop.permute.xlu0 %591
  %vm594 = vcmask 515072
  %v595 = vsel %vm594, %v592, 0.0
  %v596 = vld [vmem:[%s4 + $0x19] sm:$0x1]
  %v597 = vmul.f32 %v595, %v596
  %v598 = vadd.f32 %v588, %v597
  %v599 = vld [vmem:[#allocation4 + $0x1a] sm:$0x1]
  %601 = vrot.lane.b32.xlu0 %v599, 126
  %v602 = vpop.permute.xlu0 %601
  %vm604 = vcmask 506880
  %v605 = vsel %vm604, %v602, 0.0
  %v606 = vld [vmem:[%s4 + $0x1a] sm:$0x1]
  %v607 = vmul.f32 %v605, %v606
  %v608 = vadd.f32 %v598, %v607
  %v609 = vld [vmem:[#allocation4 + $0x1b] sm:$0x1]
  %611 = vrot.lane.b32.xlu0 %v609, 125
  %v612 = vpop.permute.xlu0 %611
  %vm614 = vcmask 498688
  %v615 = vsel %vm614, %v612, 0.0
  %v616 = vld [vmem:[%s4 + $0x1b] sm:$0x1]
  %v617 = vmul.f32 %v615, %v616
  %v618 = vadd.f32 %v608, %v617
  %v619 = vld [vmem:[#allocation4 + $0x1c] sm:$0x1]
  %621 = vrot.lane.b32.xlu0 %v619, 123
  %v622 = vpop.permute.xlu0 %621
  %vm624 = vcmask 482304
  %v625 = vsel %vm624, %v622, 0.0
  %v626 = vld [vmem:[%s4 + $0x1c] sm:$0x1]
  %v627 = vmul.f32 %v625, %v626
  %v628 = vadd.f32 %v618, %v627
  %v629 = vld [vmem:[#allocation4 + $0x1d] sm:$0x1]
  %631 = vrot.lane.b32.xlu0 %v629, 122
  %v632 = vpop.permute.xlu0 %631
  %vm634 = vcmask 474112
  %v635 = vsel %vm634, %v632, 0.0
  %v636 = vld [vmem:[%s4 + $0x1d] sm:$0x1]
  %v637 = vmul.f32 %v635, %v636
  %v638 = vadd.f32 %v628, %v637
  %v639 = vld [vmem:[#allocation4 + $0x1e] sm:$0x1]
  %641 = vrot.lane.b32.xlu0 %v639, 121
  %v642 = vpop.permute.xlu0 %641
  %vm644 = vcmask 465920
  %v645 = vsel %vm644, %v642, 0.0
  %v646 = vld [vmem:[%s4 + $0x1e] sm:$0x1]
  %v647 = vmul.f32 %v645, %v646
  %v648 = vadd.f32 %v638, %v647
  %v649 = vld [vmem:[#allocation4 + $0x1f] sm:$0x1]
  %651 = vrot.lane.b32.xlu0 %v649, 120
  %v652 = vpop.permute.xlu0 %651
  %vm654 = vcmask 457728
  %v655 = vsel %vm654, %v652, 0.0
  %v656 = vld [vmem:[%s4 + $0x1f] sm:$0x1]
  %v657 = vmul.f32 %v655, %v656
  %v658 = vadd.f32 %v648, %v657
  %v659 = vld [vmem:[#allocation4 + $0x20] sm:$0x1]
  %661 = vrot.lane.b32.xlu0 %v659, 119
  %v662 = vpop.permute.xlu0 %661
  %vm664 = vcmask 449536
  %v665 = vsel %vm664, %v662, 0.0
  %v666 = vld [vmem:[%s4 + $0x20] sm:$0x1]
  %v667 = vmul.f32 %v665, %v666
  %v668 = vadd.f32 %v658, %v667
  %v669 = vld [vmem:[#allocation4 + $0x21] sm:$0x1]
  %671 = vrot.lane.b32.xlu0 %v669, 118
  %v672 = vpop.permute.xlu0 %671
  %vm674 = vcmask 441344
  %v675 = vsel %vm674, %v672, 0.0
  %v676 = vld [vmem:[%s4 + $0x21] sm:$0x1]
  %v677 = vmul.f32 %v675, %v676
  %v678 = vadd.f32 %v668, %v677
  %v679 = vld [vmem:[#allocation4 + $0x22] sm:$0x1]
  %681 = vrot.lane.b32.xlu0 %v679, 117
  %v682 = vpop.permute.xlu0 %681
  %vm684 = vcmask 433152
  %v685 = vsel %vm684, %v682, 0.0
  %v686 = vld [vmem:[%s4 + $0x22] sm:$0x1]
  %v687 = vmul.f32 %v685, %v686
  %v688 = vadd.f32 %v678, %v687
  %v689 = vld [vmem:[#allocation4 + $0x23] sm:$0x1]
  %691 = vrot.lane.b32.xlu0 %v689, 115
  %v692 = vpop.permute.xlu0 %691
  %vm694 = vcmask 416768
  %v695 = vsel %vm694, %v692, 0.0
  %v696 = vld [vmem:[%s4 + $0x23] sm:$0x1]
  %v697 = vmul.f32 %v695, %v696
  %v698 = vadd.f32 %v688, %v697
  %v699 = vld [vmem:[#allocation4 + $0x24] sm:$0x1]
  %701 = vrot.lane.b32.xlu0 %v699, 114
  %v702 = vpop.permute.xlu0 %701
  %vm704 = vcmask 408576
  %v705 = vsel %vm704, %v702, 0.0
  %v706 = vld [vmem:[%s4 + $0x24] sm:$0x1]
  %v707 = vmul.f32 %v705, %v706
  %v708 = vadd.f32 %v698, %v707
  %v709 = vld [vmem:[#allocation4 + $0x25] sm:$0x1]
  %711 = vrot.lane.b32.xlu0 %v709, 113
  %v712 = vpop.permute.xlu0 %711
  %vm714 = vcmask 400384
  %v715 = vsel %vm714, %v712, 0.0
  %v716 = vld [vmem:[%s4 + $0x25] sm:$0x1]
  %v717 = vmul.f32 %v715, %v716
  %v718 = vadd.f32 %v708, %v717
  %v719 = vld [vmem:[#allocation4 + $0x26] sm:$0x1]
  %721 = vrot.lane.b32.xlu0 %v719, 112
  %v722 = vpop.permute.xlu0 %721
  %vm724 = vcmask 392192
  %v725 = vsel %vm724, %v722, 0.0
  %v726 = vld [vmem:[%s4 + $0x26] sm:$0x1]
  %v727 = vmul.f32 %v725, %v726
  %v728 = vadd.f32 %v718, %v727
  %v729 = vld [vmem:[#allocation4 + $0x27] sm:$0x1]
  %731 = vrot.lane.b32.xlu0 %v729, 111
  %v732 = vpop.permute.xlu0 %731
  %vm734 = vcmask 384000
  %v735 = vsel %vm734, %v732, 0.0
  %v736 = vld [vmem:[%s4 + $0x27] sm:$0x1]
  %v737 = vmul.f32 %v735, %v736
  %v738 = vadd.f32 %v728, %v737
  %v739 = vld [vmem:[#allocation4 + $0x28] sm:$0x1]
  %741 = vrot.lane.b32.xlu0 %v739, 110
  %v742 = vpop.permute.xlu0 %741
  %vm744 = vcmask 375808
  %v745 = vsel %vm744, %v742, 0.0
  %v746 = vld [vmem:[%s4 + $0x28] sm:$0x1]
  %v747 = vmul.f32 %v745, %v746
  %v748 = vadd.f32 %v738, %v747
  %v749 = vld [vmem:[#allocation4 + $0x29] sm:$0x1]
  %751 = vrot.lane.b32.xlu0 %v749, 109
  %v752 = vpop.permute.xlu0 %751
  %vm754 = vcmask 367616
  %v755 = vsel %vm754, %v752, 0.0
  %v756 = vld [vmem:[%s4 + $0x29] sm:$0x1]
  %v757 = vmul.f32 %v755, %v756
  %v758 = vadd.f32 %v748, %v757
  %v759 = vld [vmem:[#allocation4 + $0x2a] sm:$0x1]
  %761 = vrot.lane.b32.xlu0 %v759, 107
  %v762 = vpop.permute.xlu0 %761
  %vm764 = vcmask 351232
  %v765 = vsel %vm764, %v762, 0.0
  %v766 = vld [vmem:[%s4 + $0x2a] sm:$0x1]
  %v767 = vmul.f32 %v765, %v766
  %v768 = vadd.f32 %v758, %v767
  %v769 = vld [vmem:[#allocation4 + $0x2b] sm:$0x1]
  %771 = vrot.lane.b32.xlu0 %v769, 106
  %v772 = vpop.permute.xlu0 %771
  %vm774 = vcmask 343040
  %v775 = vsel %vm774, %v772, 0.0
  %v776 = vld [vmem:[%s4 + $0x2b] sm:$0x1]
  %v777 = vmul.f32 %v775, %v776
  %v778 = vadd.f32 %v768, %v777
  %v779 = vld [vmem:[#allocation4 + $0x2c] sm:$0x1]
  %781 = vrot.lane.b32.xlu0 %v779, 105
  %v782 = vpop.permute.xlu0 %781
  %vm784 = vcmask 334848
  %v785 = vsel %vm784, %v782, 0.0
  %v786 = vld [vmem:[%s4 + $0x2c] sm:$0x1]
  %v787 = vmul.f32 %v785, %v786
  %v788 = vadd.f32 %v778, %v787
  %v789 = vld [vmem:[#allocation4 + $0x2d] sm:$0x1]
  %791 = vrot.lane.b32.xlu0 %v789, 104
  %v792 = vpop.permute.xlu0 %791
  %vm794 = vcmask 326656
  %v795 = vsel %vm794, %v792, 0.0
  %v796 = vld [vmem:[%s4 + $0x2d] sm:$0x1]
  %v797 = vmul.f32 %v795, %v796
  %v798 = vadd.f32 %v788, %v797
  %v799 = vld [vmem:[#allocation4 + $0x2e] sm:$0x1]
  %801 = vrot.lane.b32.xlu0 %v799, 103
  %v802 = vpop.permute.xlu0 %801
  %vm804 = vcmask 318464
  %v805 = vsel %vm804, %v802, 0.0
  %v806 = vld [vmem:[%s4 + $0x2e] sm:$0x1]
  %v807 = vmul.f32 %v805, %v806
  %v808 = vadd.f32 %v798, %v807
  %v809 = vld [vmem:[#allocation4 + $0x2f] sm:$0x1]
  %811 = vrot.lane.b32.xlu0 %v809, 102
  %v812 = vpop.permute.xlu0 %811
  %vm814 = vcmask 310272
  %v815 = vsel %vm814, %v812, 0.0
  %v816 = vld [vmem:[%s4 + $0x2f] sm:$0x1]
  %v817 = vmul.f32 %v815, %v816
  %v818 = vadd.f32 %v808, %v817
  %v819 = vld [vmem:[#allocation4 + $0x30] sm:$0x1]
  %821 = vrot.lane.b32.xlu0 %v819, 101
  %v822 = vpop.permute.xlu0 %821
  %vm824 = vcmask 302080
  %v825 = vsel %vm824, %v822, 0.0
  %v826 = vld [vmem:[%s4 + $0x30] sm:$0x1]
  %v827 = vmul.f32 %v825, %v826
  %v828 = vadd.f32 %v818, %v827
  %v829 = vsub.f32 0.0, %v828
  %v830 = vmul.f32 %v829, 1.442695
  %v831 = vpow.pop %v830
  %v832 = vadd.f32 %v831, 1.0
  %v833 = vrcp.pop %v832
  %v834 = vmul.f32 %v832, %v833
  %v835 = vsub.f32 1.0, %v834
  %v836 = vmul.f32 %v833, %v835
  %v837 = vadd.f32 %v833, %v836
  %vm838 = vweird.f32 %v832
  %vm839 = vweird.f32 %v833
  %vm840 = vmor %vm838, %vm839
  %v841 = vsel %vm840, %v833, %v837
  %v842 = vand.u32 2147483647, %v832
  %vm843 = vcmp.eq.f32.partialorder %v842, 8.507059e+37
  %v844 = vand.u32 %v832, 2147483648
  %v845 = vor.u32 1.1754944e-38, %v844
  %v846 = vsel %vm843, %v845, %v841
  %v847 = vmul.f32 1.0, %v846
  %v848 = vperm.slane %v847, 0
  %v849 = vmul.f32 %v276, %v848
  %v850 = vmul.f32 %v277, %v848
  %v851 = vmul.f32 %v278, %v848
  %v852 = vmul.f32 %v279, %v848
  %853 = vst.msk [vmem:[#allocation2] sm:$0xff] %vm92, %v849
  %854 = vst.msk [vmem:[#allocation2 + $0x8] sm:$0xff] %vm92, %v850
  %855 = vst.msk [vmem:[#allocation2 + $0x10] sm:$0xff] %vm92, %v851
  %856 = vst.msk [vmem:[#allocation2 + $0x18] sm:$0xff] %vm92, %v852
  %s857 = scalar_lea.vmem %s0, 32
  %v858 = vld [vmem:[%s857] sm:$0xff]
  %v859 = vld [vmem:[%s857 + $0x8] sm:$0xff]
  %v860 = vld [vmem:[%s857 + $0x10] sm:$0xff]
  %v861 = vld [vmem:[%s857 + $0x18] sm:$0xff]
  %v862 = vsel %vm92, %v858, 0.0
  %863 = vadd.xlane.f32.xlu0 %v862
  %v864 = vpop.xlane.xlu0 %863
  %v865 = vsel %vm92, %v859, 0.0
  %866 = vadd.xlane.f32.xlu0 %v865
  %v867 = vpop.xlane.xlu0 %866
  %v868 = vsel %vm92, %v860, 0.0
  %869 = vadd.xlane.f32.xlu0 %v868
  %v870 = vpop.xlane.xlu0 %869
  %v871 = vsel %vm92, %v861, 0.0
  %872 = vadd.xlane.f32.xlu0 %v871
  %v873 = vpop.xlane.xlu0 %872
  %v874 = vmul.f32 %v864, 0.015625
  %v875 = vmul.f32 %v867, 0.015625
  %v876 = vmul.f32 %v870, 0.015625
  %v877 = vmul.f32 %v873, 0.015625
  %878 = vmatpush.msra.mxu0 0.0
  %879 = vmatpush.msra.mxu0 0.0
  %880 = vmatpush.msra.mxu0 0.0
  %881 = vmatpush.msra.mxu0 0.0
  %882 = vmatpush.msra.mxu0 0.0
  %883 = vmatpush.msra.mxu0 0.0
  %884 = vmatpush.msra.mxu0 0.0
  %885 = vmatpush.msra.mxu0 0.0
  %886 = vmatpush.msra.mxu0 0.0
  %887 = vmatpush.msra.mxu0 0.0
  %888 = vmatpush.msra.mxu0 0.0
  %889 = vmatpush.msra.mxu0 0.0
  %890 = vmatpush.msra.mxu0 %v877
  %891 = vmatpush.msra.mxu0 %v876
  %892 = vmatpush.msra.mxu0 %v875
  %893 = vmatpush.msra.mxu0 %v874
  %894 = vmatmul.f32.gmra.mxu0 %v111
  %v895 = vpop.f32.mrf.mxu0
  %v896 = vadd.f32 0.0, %v895
  %897 = vdwg.mxu0
  %v898 = vmax.f32 %v896, 0.0
  %v900 = vsel %vm147, %v898, 0
  %902 = vmatpush.msra.mxu0 0.0
  %903 = vmatpush.msra.mxu0 0.0
  %904 = vmatpush.msra.mxu0 0.0
  %905 = vmatpush.msra.mxu0 0.0
  %906 = vmatpush.msra.mxu0 0.0
  %907 = vmatpush.msra.mxu0 0.0
  %908 = vmatpush.msra.mxu0 0.0
  %909 = vmatpush.msra.mxu0 0.0
  %910 = vmatpush.msra.mxu0 0.0
  %911 = vmatpush.msra.mxu0 0.0
  %912 = vmatpush.msra.mxu0 0.0
  %913 = vmatpush.msra.mxu0 0.0
  %914 = vmatpush.msra.mxu0 0.0
  %915 = vmatpush.msra.mxu0 0.0
  %916 = vmatpush.msra.mxu0 0.0
  %917 = vmatpush.msra.mxu0 %v900
  %918 = vmatmul.f32.gmra.mxu0 %v136
  %v919 = vpop.f32.mrf.mxu0
  %v920 = vadd.f32 0.0, %v919
  %921 = vmatmul.f32.gmra.mxu0 %v139
  %v922 = vpop.f32.mrf.mxu0
  %v923 = vadd.f32 0.0, %v922
  %924 = vmatmul.f32.gmra.mxu0 %v142
  %v925 = vpop.f32.mrf.mxu0
  %v926 = vadd.f32 0.0, %v925
  %927 = vmatmul.f32.gmra.mxu0 %v145
  %v928 = vpop.f32.mrf.mxu0
  %v929 = vadd.f32 0.0, %v928
  %930 = vdwg.mxu0
  %v931 = vsub.f32 0.0, %v920
  %v932 = vsub.f32 0.0, %v923
  %v933 = vsub.f32 0.0, %v926
  %v934 = vsub.f32 0.0, %v929
  %v935 = vmul.f32 %v931, 1.442695
  %v936 = vpow.pop %v935
  %v937 = vmul.f32 %v932, 1.442695
  %v938 = vpow.pop %v937
  %v939 = vmul.f32 %v933, 1.442695
  %v940 = vpow.pop %v939
  %v941 = vmul.f32 %v934, 1.442695
  %v942 = vpow.pop %v941
  %v943 = vadd.f32 %v936, 1.0
  %v944 = vadd.f32 %v938, 1.0
  %v945 = vadd.f32 %v940, 1.0
  %v946 = vadd.f32 %v942, 1.0
  %v947 = vrcp.pop %v943
  %v948 = vmul.f32 %v943, %v947
  %v949 = vsub.f32 1.0, %v948
  %v950 = vmul.f32 %v947, %v949
  %v951 = vadd.f32 %v947, %v950
  %vm952 = vweird.f32 %v943
  %vm953 = vweird.f32 %v947
  %vm954 = vmor %vm952, %vm953
  %v955 = vsel %vm954, %v947, %v951
  %v956 = vand.u32 2147483647, %v943
  %vm957 = vcmp.eq.f32.partialorder %v956, 8.507059e+37
  %v958 = vand.u32 %v943, 2147483648
  %v959 = vor.u32 1.1754944e-38, %v958
  %v960 = vsel %vm957, %v959, %v955
  %v961 = vmul.f32 1.0, %v960
  %v962 = vrcp.pop %v944
  %v963 = vmul.f32 %v944, %v962
  %v964 = vsub.f32 1.0, %v963
  %v965 = vmul.f32 %v962, %v964
  %v966 = vadd.f32 %v962, %v965
  %vm967 = vweird.f32 %v944
  %vm968 = vweird.f32 %v962
  %vm969 = vmor %vm967, %vm968
  %v970 = vsel %vm969, %v962, %v966
  %v971 = vand.u32 2147483647, %v944
  %vm972 = vcmp.eq.f32.partialorder %v971, 8.507059e+37
  %v973 = vand.u32 %v944, 2147483648
  %v974 = vor.u32 1.1754944e-38, %v973
  %v975 = vsel %vm972, %v974, %v970
  %v976 = vmul.f32 1.0, %v975
  %v977 = vrcp.pop %v945
  %v978 = vmul.f32 %v945, %v977
  %v979 = vsub.f32 1.0, %v978
  %v980 = vmul.f32 %v977, %v979
  %v981 = vadd.f32 %v977, %v980
  %vm982 = vweird.f32 %v945
  %vm983 = vweird.f32 %v977
  %vm984 = vmor %vm982, %vm983
  %v985 = vsel %vm984, %v977, %v981
  %v986 = vand.u32 2147483647, %v945
  %vm987 = vcmp.eq.f32.partialorder %v986, 8.507059e+37
  %v988 = vand.u32 %v945, 2147483648
  %v989 = vor.u32 1.1754944e-38, %v988
  %v990 = vsel %vm987, %v989, %v985
  %v991 = vmul.f32 1.0, %v990
  %v992 = vrcp.pop %v946
  %v993 = vmul.f32 %v946, %v992
  %v994 = vsub.f32 1.0, %v993
  %v995 = vmul.f32 %v992, %v994
  %v996 = vadd.f32 %v992, %v995
  %vm997 = vweird.f32 %v946
  %vm998 = vweird.f32 %v992
  %vm999 = vmor %vm997, %vm998
  %v1000 = vsel %vm999, %v992, %v996
  %v1001 = vand.u32 2147483647, %v946
  %vm1002 = vcmp.eq.f32.partialorder %v1001, 8.507059e+37
  %v1003 = vand.u32 %v946, 2147483648
  %v1004 = vor.u32 1.1754944e-38, %v1003
  %v1005 = vsel %vm1002, %v1004, %v1000
  %v1006 = vmul.f32 1.0, %v1005
  %1008 = vset.pattern.permute.xlu0 0
  %1009 = vperm.xlu0 %1008, %v961
  %v1010 = vpop.permute.xlu0 %1009
  %1013 = vset.pattern.permute.xlu0 0
  %1014 = vperm.xlu0 %1013, %v976
  %v1015 = vpop.permute.xlu0 %1014
  %1018 = vset.pattern.permute.xlu0 0
  %1019 = vperm.xlu0 %1018, %v991
  %v1020 = vpop.permute.xlu0 %1019
  %1023 = vset.pattern.permute.xlu0 0
  %1024 = vperm.xlu0 %1023, %v1006
  %v1025 = vpop.permute.xlu0 %1024
  %v1027 = vmul.f32 %v858, %v1010
  %v1028 = vmul.f32 %v859, %v1015
  %v1029 = vmul.f32 %v860, %v1020
  %v1030 = vmul.f32 %v861, %v1025
  %1031 = vmatpush.msra.mxu0 0.0
  %1032 = vmatpush.msra.mxu0 0.0
  %1033 = vmatpush.msra.mxu0 0.0
  %1034 = vmatpush.msra.mxu0 0.0
  %1035 = vmatpush.msra.mxu0 0.0
  %1036 = vmatpush.msra.mxu0 0.0
  %1037 = vmatpush.msra.mxu0 0.0
  %1038 = vmatpush.msra.mxu0 0.0
  %1039 = vmatpush.msra.mxu0 0.0
  %1040 = vmatpush.msra.mxu0 0.0
  %1041 = vmatpush.msra.mxu0 0.0
  %1042 = vmatpush.msra.mxu0 0.0
  %1043 = vmatpush.msra.mxu0 %v1030
  %1044 = vmatpush.msra.mxu0 %v1029
  %1045 = vmatpush.msra.mxu0 %v1028
  %1046 = vmatpush.msra.mxu0 %v1027
  %1047 = vmatmul.f32.gmra.mxu0 %v281
  %v1048 = vpop.f32.mrf.mxu0
  %v1049 = vadd.f32 0.0, %v1048
  %1050 = vmatmul.f32.gmra.mxu0 %v284
  %v1051 = vpop.f32.mrf.mxu0
  %v1052 = vadd.f32 0.0, %v1051
  %1053 = vmatmul.f32.gmra.mxu0 %v287
  %v1054 = vpop.f32.mrf.mxu0
  %v1055 = vadd.f32 0.0, %v1054
  %1056 = vmatmul.f32.gmra.mxu0 %v290
  %v1057 = vpop.f32.mrf.mxu0
  %v1058 = vadd.f32 0.0, %v1057
  %1059 = vmatmul.f32.gmra.mxu0 %v293
  %v1060 = vpop.f32.mrf.mxu0
  %v1061 = vadd.f32 0.0, %v1060
  %1062 = vmatmul.f32.gmra.mxu0 %v296
  %v1063 = vpop.f32.mrf.mxu0
  %v1064 = vadd.f32 0.0, %v1063
  %1065 = vmatmul.f32.gmra.mxu0 %v299
  %v1066 = vpop.f32.mrf.mxu0
  %v1067 = vadd.f32 0.0, %v1066
  %1068 = vdwg.mxu0
  %1069 = vst.msk [vmem:[#allocation4] sm:$0xff] %vm92, %v1049
  %1070 = vst.msk [vmem:[#allocation4 + $0x8] sm:$0xff] %vm92, %v1052
  %1071 = vst.msk [vmem:[#allocation4 + $0x10] sm:$0xff] %vm92, %v1055
  %1072 = vst.msk [vmem:[#allocation4 + $0x18] sm:$0xff] %vm92, %v1058
  %1073 = vst.msk [vmem:[#allocation4 + $0x20] sm:$0xff] %vm92, %v1061
  %1074 = vst.msk [vmem:[#allocation4 + $0x28] sm:$0xff] %vm92, %v1064
  %1075 = vst.msk [vmem:[#allocation4 + $0x30] sm:$0xff] %vm92, %v1067
  %v1076 = vld [vmem:[#allocation4] sm:$0x1]
  %1078 = vrot.lane.b32.xlu0 %v1076, 27
  %v1079 = vpop.permute.xlu0 %1078
  %v1081 = vsel %vm351, 0.0, %v1079
  %v1082 = vld [vmem:[%s4] sm:$0x1]
  %v1083 = vmul.f32 %v1081, %v1082
  %v1084 = vadd.f32 %v1083, 0.0
  %v1085 = vld [vmem:[#allocation4 + $0x1] sm:$0x1]
  %1087 = vrot.lane.b32.xlu0 %v1085, 26
  %v1088 = vpop.permute.xlu0 %1087
  %v1090 = vsel %vm361, 0.0, %v1088
  %v1091 = vld [vmem:[%s4 + $0x1] sm:$0x1]
  %v1092 = vmul.f32 %v1090, %v1091
  %v1093 = vadd.f32 %v1084, %v1092
  %v1094 = vld [vmem:[#allocation4 + $0x2] sm:$0x1]
  %1096 = vrot.lane.b32.xlu0 %v1094, 25
  %v1097 = vpop.permute.xlu0 %1096
  %v1099 = vsel %vm371, 0.0, %v1097
  %v1100 = vld [vmem:[%s4 + $0x2] sm:$0x1]
  %v1101 = vmul.f32 %v1099, %v1100
  %v1102 = vadd.f32 %v1093, %v1101
  %v1103 = vld [vmem:[#allocation4 + $0x3] sm:$0x1]
  %1105 = vrot.lane.b32.xlu0 %v1103, 24
  %v1106 = vpop.permute.xlu0 %1105
  %v1108 = vsel %vm381, 0.0, %v1106
  %v1109 = vld [vmem:[%s4 + $0x3] sm:$0x1]
  %v1110 = vmul.f32 %v1108, %v1109
  %v1111 = vadd.f32 %v1102, %v1110
  %v1112 = vld [vmem:[#allocation4 + $0x4] sm:$0x1]
  %1114 = vrot.lane.b32.xlu0 %v1112, 23
  %v1115 = vpop.permute.xlu0 %1114
  %v1117 = vsel %vm391, 0.0, %v1115
  %v1118 = vld [vmem:[%s4 + $0x4] sm:$0x1]
  %v1119 = vmul.f32 %v1117, %v1118
  %v1120 = vadd.f32 %v1111, %v1119
  %v1121 = vld [vmem:[#allocation4 + $0x5] sm:$0x1]
  %1123 = vrot.lane.b32.xlu0 %v1121, 22
  %v1124 = vpop.permute.xlu0 %1123
  %v1126 = vsel %vm401, 0.0, %v1124
  %v1127 = vld [vmem:[%s4 + $0x5] sm:$0x1]
  %v1128 = vmul.f32 %v1126, %v1127
  %v1129 = vadd.f32 %v1120, %v1128
  %v1130 = vld [vmem:[#allocation4 + $0x6] sm:$0x1]
  %1132 = vrot.lane.b32.xlu0 %v1130, 21
  %v1133 = vpop.permute.xlu0 %1132
  %v1135 = vsel %vm411, 0.0, %v1133
  %v1136 = vld [vmem:[%s4 + $0x6] sm:$0x1]
  %v1137 = vmul.f32 %v1135, %v1136
  %v1138 = vadd.f32 %v1129, %v1137
  %v1139 = vld [vmem:[#allocation4 + $0x7] sm:$0x1]
  %1141 = vrot.lane.b32.xlu0 %v1139, 19
  %v1142 = vpop.permute.xlu0 %1141
  %v1144 = vsel %vm421, 0.0, %v1142
  %v1145 = vld [vmem:[%s4 + $0x7] sm:$0x1]
  %v1146 = vmul.f32 %v1144, %v1145
  %v1147 = vadd.f32 %v1138, %v1146
  %v1148 = vld [vmem:[#allocation4 + $0x8] sm:$0x1]
  %1150 = vrot.lane.b32.xlu0 %v1148, 18
  %v1151 = vpop.permute.xlu0 %1150
  %v1153 = vsel %vm431, 0.0, %v1151
  %v1154 = vld [vmem:[%s4 + $0x8] sm:$0x1]
  %v1155 = vmul.f32 %v1153, %v1154
  %v1156 = vadd.f32 %v1147, %v1155
  %v1157 = vld [vmem:[#allocation4 + $0x9] sm:$0x1]
  %1159 = vrot.lane.b32.xlu0 %v1157, 17
  %v1160 = vpop.permute.xlu0 %1159
  %v1162 = vsel %vm441, 0.0, %v1160
  %v1163 = vld [vmem:[%s4 + $0x9] sm:$0x1]
  %v1164 = vmul.f32 %v1162, %v1163
  %v1165 = vadd.f32 %v1156, %v1164
  %v1166 = vld [vmem:[#allocation4 + $0xa] sm:$0x1]
  %1168 = vrot.lane.b32.xlu0 %v1166, 16
  %v1169 = vpop.permute.xlu0 %1168
  %v1171 = vsel %vm451, 0.0, %v1169
  %v1172 = vld [vmem:[%s4 + $0xa] sm:$0x1]
  %v1173 = vmul.f32 %v1171, %v1172
  %v1174 = vadd.f32 %v1165, %v1173
  %v1175 = vld [vmem:[#allocation4 + $0xb] sm:$0x1]
  %1177 = vrot.lane.b32.xlu0 %v1175, 15
  %v1178 = vpop.permute.xlu0 %1177
  %v1180 = vsel %vm461, 0.0, %v1178
  %v1181 = vld [vmem:[%s4 + $0xb] sm:$0x1]
  %v1182 = vmul.f32 %v1180, %v1181
  %v1183 = vadd.f32 %v1174, %v1182
  %v1184 = vld [vmem:[#allocation4 + $0xc] sm:$0x1]
  %1186 = vrot.lane.b32.xlu0 %v1184, 14
  %v1187 = vpop.permute.xlu0 %1186
  %v1189 = vsel %vm471, 0.0, %v1187
  %v1190 = vld [vmem:[%s4 + $0xc] sm:$0x1]
  %v1191 = vmul.f32 %v1189, %v1190
  %v1192 = vadd.f32 %v1183, %v1191
  %v1193 = vld [vmem:[#allocation4 + $0xd] sm:$0x1]
  %1195 = vrot.lane.b32.xlu0 %v1193, 13
  %v1196 = vpop.permute.xlu0 %1195
  %v1198 = vsel %vm481, 0.0, %v1196
  %v1199 = vld [vmem:[%s4 + $0xd] sm:$0x1]
  %v1200 = vmul.f32 %v1198, %v1199
  %v1201 = vadd.f32 %v1192, %v1200
  %v1202 = vld [vmem:[#allocation4 + $0xe] sm:$0x1]
  %1204 = vrot.lane.b32.xlu0 %v1202, 11
  %v1205 = vpop.permute.xlu0 %1204
  %v1207 = vsel %vm491, 0.0, %v1205
  %v1208 = vld [vmem:[%s4 + $0xe] sm:$0x1]
  %v1209 = vmul.f32 %v1207, %v1208
  %v1210 = vadd.f32 %v1201, %v1209
  %v1211 = vld [vmem:[#allocation4 + $0xf] sm:$0x1]
  %1213 = vrot.lane.b32.xlu0 %v1211, 10
  %v1214 = vpop.permute.xlu0 %1213
  %v1216 = vsel %vm501, 0.0, %v1214
  %v1217 = vld [vmem:[%s4 + $0xf] sm:$0x1]
  %v1218 = vmul.f32 %v1216, %v1217
  %v1219 = vadd.f32 %v1210, %v1218
  %v1220 = vld [vmem:[#allocation4 + $0x10] sm:$0x1]
  %1222 = vrot.lane.b32.xlu0 %v1220, 9
  %v1223 = vpop.permute.xlu0 %1222
  %v1225 = vsel %vm511, 0.0, %v1223
  %v1226 = vld [vmem:[%s4 + $0x10] sm:$0x1]
  %v1227 = vmul.f32 %v1225, %v1226
  %v1228 = vadd.f32 %v1219, %v1227
  %v1229 = vld [vmem:[#allocation4 + $0x11] sm:$0x1]
  %1231 = vrot.lane.b32.xlu0 %v1229, 8
  %v1232 = vpop.permute.xlu0 %1231
  %v1234 = vsel %vm521, 0.0, %v1232
  %v1235 = vld [vmem:[%s4 + $0x11] sm:$0x1]
  %v1236 = vmul.f32 %v1234, %v1235
  %v1237 = vadd.f32 %v1228, %v1236
  %v1238 = vld [vmem:[#allocation4 + $0x12] sm:$0x1]
  %1240 = vrot.lane.b32.xlu0 %v1238, 7
  %v1241 = vpop.permute.xlu0 %1240
  %v1243 = vsel %vm531, 0.0, %v1241
  %v1244 = vld [vmem:[%s4 + $0x12] sm:$0x1]
  %v1245 = vmul.f32 %v1243, %v1244
  %v1246 = vadd.f32 %v1237, %v1245
  %v1247 = vld [vmem:[#allocation4 + $0x13] sm:$0x1]
  %1249 = vrot.lane.b32.xlu0 %v1247, 6
  %v1250 = vpop.permute.xlu0 %1249
  %v1252 = vsel %vm541, 0.0, %v1250
  %v1253 = vld [vmem:[%s4 + $0x13] sm:$0x1]
  %v1254 = vmul.f32 %v1252, %v1253
  %v1255 = vadd.f32 %v1246, %v1254
  %v1256 = vld [vmem:[#allocation4 + $0x14] sm:$0x1]
  %1258 = vrot.lane.b32.xlu0 %v1256, 5
  %v1259 = vpop.permute.xlu0 %1258
  %v1261 = vsel %vm551, 0.0, %v1259
  %v1262 = vld [vmem:[%s4 + $0x14] sm:$0x1]
  %v1263 = vmul.f32 %v1261, %v1262
  %v1264 = vadd.f32 %v1255, %v1263
  %v1265 = vld [vmem:[#allocation4 + $0x15] sm:$0x1]
  %1267 = vrot.lane.b32.xlu0 %v1265, 3
  %v1268 = vpop.permute.xlu0 %1267
  %v1270 = vsel %vm561, 0.0, %v1268
  %v1271 = vld [vmem:[%s4 + $0x15] sm:$0x1]
  %v1272 = vmul.f32 %v1270, %v1271
  %v1273 = vadd.f32 %v1264, %v1272
  %v1274 = vld [vmem:[#allocation4 + $0x16] sm:$0x1]
  %1276 = vrot.lane.b32.xlu0 %v1274, 2
  %v1277 = vpop.permute.xlu0 %1276
  %v1279 = vsel %vm134, 0.0, %v1277
  %v1280 = vld [vmem:[%s4 + $0x16] sm:$0x1]
  %v1281 = vmul.f32 %v1279, %v1280
  %v1282 = vadd.f32 %v1273, %v1281
  %v1283 = vld [vmem:[#allocation4 + $0x17] sm:$0x1]
  %1285 = vrot.lane.b32.xlu0 %v1283, 1
  %v1286 = vpop.permute.xlu0 %1285
  %v1288 = vsel %vm580, 0.0, %v1286
  %v1289 = vld [vmem:[%s4 + $0x17] sm:$0x1]
  %v1290 = vmul.f32 %v1288, %v1289
  %v1291 = vadd.f32 %v1282, %v1290
  %v1292 = vld [vmem:[#allocation4 + $0x18] sm:$0x1]
  %v1293 = vld [vmem:[%s4 + $0x18] sm:$0x1]
  %v1294 = vmul.f32 %v1292, %v1293
  %v1295 = vadd.f32 %v1291, %v1294
  %v1296 = vld [vmem:[#allocation4 + $0x19] sm:$0x1]
  %1298 = vrot.lane.b32.xlu0 %v1296, 127
  %v1299 = vpop.permute.xlu0 %1298
  %v1301 = vsel %vm594, %v1299, 0.0
  %v1302 = vld [vmem:[%s4 + $0x19] sm:$0x1]
  %v1303 = vmul.f32 %v1301, %v1302
  %v1304 = vadd.f32 %v1295, %v1303
  %v1305 = vld [vmem:[#allocation4 + $0x1a] sm:$0x1]
  %1307 = vrot.lane.b32.xlu0 %v1305, 126
  %v1308 = vpop.permute.xlu0 %1307
  %v1310 = vsel %vm604, %v1308, 0.0
  %v1311 = vld [vmem:[%s4 + $0x1a] sm:$0x1]
  %v1312 = vmul.f32 %v1310, %v1311
  %v1313 = vadd.f32 %v1304, %v1312
  %v1314 = vld [vmem:[#allocation4 + $0x1b] sm:$0x1]
  %1316 = vrot.lane.b32.xlu0 %v1314, 125
  %v1317 = vpop.permute.xlu0 %1316
  %v1319 = vsel %vm614, %v1317, 0.0
  %v1320 = vld [vmem:[%s4 + $0x1b] sm:$0x1]
  %v1321 = vmul.f32 %v1319, %v1320
  %v1322 = vadd.f32 %v1313, %v1321
  %v1323 = vld [vmem:[#allocation4 + $0x1c] sm:$0x1]
  %1325 = vrot.lane.b32.xlu0 %v1323, 123
  %v1326 = vpop.permute.xlu0 %1325
  %v1328 = vsel %vm624, %v1326, 0.0
  %v1329 = vld [vmem:[%s4 + $0x1c] sm:$0x1]
  %v1330 = vmul.f32 %v1328, %v1329
  %v1331 = vadd.f32 %v1322, %v1330
  %v1332 = vld [vmem:[#allocation4 + $0x1d] sm:$0x1]
  %1334 = vrot.lane.b32.xlu0 %v1332, 122
  %v1335 = vpop.permute.xlu0 %1334
  %v1337 = vsel %vm634, %v1335, 0.0
  %v1338 = vld [vmem:[%s4 + $0x1d] sm:$0x1]
  %v1339 = vmul.f32 %v1337, %v1338
  %v1340 = vadd.f32 %v1331, %v1339
  %v1341 = vld [vmem:[#allocation4 + $0x1e] sm:$0x1]
  %1343 = vrot.lane.b32.xlu0 %v1341, 121
  %v1344 = vpop.permute.xlu0 %1343
  %v1346 = vsel %vm644, %v1344, 0.0
  %v1347 = vld [vmem:[%s4 + $0x1e] sm:$0x1]
  %v1348 = vmul.f32 %v1346, %v1347
  %v1349 = vadd.f32 %v1340, %v1348
  %v1350 = vld [vmem:[#allocation4 + $0x1f] sm:$0x1]
  %1352 = vrot.lane.b32.xlu0 %v1350, 120
  %v1353 = vpop.permute.xlu0 %1352
  %v1355 = vsel %vm654, %v1353, 0.0
  %v1356 = vld [vmem:[%s4 + $0x1f] sm:$0x1]
  %v1357 = vmul.f32 %v1355, %v1356
  %v1358 = vadd.f32 %v1349, %v1357
  %v1359 = vld [vmem:[#allocation4 + $0x20] sm:$0x1]
  %1361 = vrot.lane.b32.xlu0 %v1359, 119
  %v1362 = vpop.permute.xlu0 %1361
  %v1364 = vsel %vm664, %v1362, 0.0
  %v1365 = vld [vmem:[%s4 + $0x20] sm:$0x1]
  %v1366 = vmul.f32 %v1364, %v1365
  %v1367 = vadd.f32 %v1358, %v1366
  %v1368 = vld [vmem:[#allocation4 + $0x21] sm:$0x1]
  %1370 = vrot.lane.b32.xlu0 %v1368, 118
  %v1371 = vpop.permute.xlu0 %1370
  %v1373 = vsel %vm674, %v1371, 0.0
  %v1374 = vld [vmem:[%s4 + $0x21] sm:$0x1]
  %v1375 = vmul.f32 %v1373, %v1374
  %v1376 = vadd.f32 %v1367, %v1375
  %v1377 = vld [vmem:[#allocation4 + $0x22] sm:$0x1]
  %1379 = vrot.lane.b32.xlu0 %v1377, 117
  %v1380 = vpop.permute.xlu0 %1379
  %v1382 = vsel %vm684, %v1380, 0.0
  %v1383 = vld [vmem:[%s4 + $0x22] sm:$0x1]
  %v1384 = vmul.f32 %v1382, %v1383
  %v1385 = vadd.f32 %v1376, %v1384
  %v1386 = vld [vmem:[#allocation4 + $0x23] sm:$0x1]
  %1388 = vrot.lane.b32.xlu0 %v1386, 115
  %v1389 = vpop.permute.xlu0 %1388
  %v1391 = vsel %vm694, %v1389, 0.0
  %v1392 = vld [vmem:[%s4 + $0x23] sm:$0x1]
  %v1393 = vmul.f32 %v1391, %v1392
  %v1394 = vadd.f32 %v1385, %v1393
  %v1395 = vld [vmem:[#allocation4 + $0x24] sm:$0x1]
  %1397 = vrot.lane.b32.xlu0 %v1395, 114
  %v1398 = vpop.permute.xlu0 %1397
  %v1400 = vsel %vm704, %v1398, 0.0
  %v1401 = vld [vmem:[%s4 + $0x24] sm:$0x1]
  %v1402 = vmul.f32 %v1400, %v1401
  %v1403 = vadd.f32 %v1394, %v1402
  %v1404 = vld [vmem:[#allocation4 + $0x25] sm:$0x1]
  %1406 = vrot.lane.b32.xlu0 %v1404, 113
  %v1407 = vpop.permute.xlu0 %1406
  %v1409 = vsel %vm714, %v1407, 0.0
  %v1410 = vld [vmem:[%s4 + $0x25] sm:$0x1]
  %v1411 = vmul.f32 %v1409, %v1410
  %v1412 = vadd.f32 %v1403, %v1411
  %v1413 = vld [vmem:[#allocation4 + $0x26] sm:$0x1]
  %1415 = vrot.lane.b32.xlu0 %v1413, 112
  %v1416 = vpop.permute.xlu0 %1415
  %v1418 = vsel %vm724, %v1416, 0.0
  %v1419 = vld [vmem:[%s4 + $0x26] sm:$0x1]
  %v1420 = vmul.f32 %v1418, %v1419
  %v1421 = vadd.f32 %v1412, %v1420
  %v1422 = vld [vmem:[#allocation4 + $0x27] sm:$0x1]
  %1424 = vrot.lane.b32.xlu0 %v1422, 111
  %v1425 = vpop.permute.xlu0 %1424
  %v1427 = vsel %vm734, %v1425, 0.0
  %v1428 = vld [vmem:[%s4 + $0x27] sm:$0x1]
  %v1429 = vmul.f32 %v1427, %v1428
  %v1430 = vadd.f32 %v1421, %v1429
  %v1431 = vld [vmem:[#allocation4 + $0x28] sm:$0x1]
  %1433 = vrot.lane.b32.xlu0 %v1431, 110
  %v1434 = vpop.permute.xlu0 %1433
  %v1436 = vsel %vm744, %v1434, 0.0
  %v1437 = vld [vmem:[%s4 + $0x28] sm:$0x1]
  %v1438 = vmul.f32 %v1436, %v1437
  %v1439 = vadd.f32 %v1430, %v1438
  %v1440 = vld [vmem:[#allocation4 + $0x29] sm:$0x1]
  %1442 = vrot.lane.b32.xlu0 %v1440, 109
  %v1443 = vpop.permute.xlu0 %1442
  %v1445 = vsel %vm754, %v1443, 0.0
  %v1446 = vld [vmem:[%s4 + $0x29] sm:$0x1]
  %v1447 = vmul.f32 %v1445, %v1446
  %v1448 = vadd.f32 %v1439, %v1447
  %v1449 = vld [vmem:[#allocation4 + $0x2a] sm:$0x1]
  %1451 = vrot.lane.b32.xlu0 %v1449, 107
  %v1452 = vpop.permute.xlu0 %1451
  %v1454 = vsel %vm764, %v1452, 0.0
  %v1455 = vld [vmem:[%s4 + $0x2a] sm:$0x1]
  %v1456 = vmul.f32 %v1454, %v1455
  %v1457 = vadd.f32 %v1448, %v1456
  %v1458 = vld [vmem:[#allocation4 + $0x2b] sm:$0x1]
  %1460 = vrot.lane.b32.xlu0 %v1458, 106
  %v1461 = vpop.permute.xlu0 %1460
  %v1463 = vsel %vm774, %v1461, 0.0
  %v1464 = vld [vmem:[%s4 + $0x2b] sm:$0x1]
  %v1465 = vmul.f32 %v1463, %v1464
  %v1466 = vadd.f32 %v1457, %v1465
  %v1467 = vld [vmem:[#allocation4 + $0x2c] sm:$0x1]
  %1469 = vrot.lane.b32.xlu0 %v1467, 105
  %v1470 = vpop.permute.xlu0 %1469
  %v1472 = vsel %vm784, %v1470, 0.0
  %v1473 = vld [vmem:[%s4 + $0x2c] sm:$0x1]
  %v1474 = vmul.f32 %v1472, %v1473
  %v1475 = vadd.f32 %v1466, %v1474
  %v1476 = vld [vmem:[#allocation4 + $0x2d] sm:$0x1]
  %1478 = vrot.lane.b32.xlu0 %v1476, 104
  %v1479 = vpop.permute.xlu0 %1478
  %v1481 = vsel %vm794, %v1479, 0.0
  %v1482 = vld [vmem:[%s4 + $0x2d] sm:$0x1]
  %v1483 = vmul.f32 %v1481, %v1482
  %v1484 = vadd.f32 %v1475, %v1483
  %v1485 = vld [vmem:[#allocation4 + $0x2e] sm:$0x1]
  %1487 = vrot.lane.b32.xlu0 %v1485, 103
  %v1488 = vpop.permute.xlu0 %1487
  %v1490 = vsel %vm804, %v1488, 0.0
  %v1491 = vld [vmem:[%s4 + $0x2e] sm:$0x1]
  %v1492 = vmul.f32 %v1490, %v1491
  %v1493 = vadd.f32 %v1484, %v1492
  %v1494 = vld [vmem:[#allocation4 + $0x2f] sm:$0x1]
  %1496 = vrot.lane.b32.xlu0 %v1494, 102
  %v1497 = vpop.permute.xlu0 %1496
  %v1499 = vsel %vm814, %v1497, 0.0
  %v1500 = vld [vmem:[%s4 + $0x2f] sm:$0x1]
  %v1501 = vmul.f32 %v1499, %v1500
  %v1502 = vadd.f32 %v1493, %v1501
  %v1503 = vld [vmem:[#allocation4 + $0x30] sm:$0x1]
  %1505 = vrot.lane.b32.xlu0 %v1503, 101
  %v1506 = vpop.permute.xlu0 %1505
  %v1508 = vsel %vm824, %v1506, 0.0
  %v1509 = vld [vmem:[%s4 + $0x30] sm:$0x1]
  %v1510 = vmul.f32 %v1508, %v1509
  %v1511 = vadd.f32 %v1502, %v1510
  %v1512 = vsub.f32 0.0, %v1511
  %v1513 = vmul.f32 %v1512, 1.442695
  %v1514 = vpow.pop %v1513
  %v1515 = vadd.f32 %v1514, 1.0
  %v1516 = vrcp.pop %v1515
  %v1517 = vmul.f32 %v1515, %v1516
  %v1518 = vsub.f32 1.0, %v1517
  %v1519 = vmul.f32 %v1516, %v1518
  %v1520 = vadd.f32 %v1516, %v1519
  %vm1521 = vweird.f32 %v1515
  %vm1522 = vweird.f32 %v1516
  %vm1523 = vmor %vm1521, %vm1522
  %v1524 = vsel %vm1523, %v1516, %v1520
  %v1525 = vand.u32 2147483647, %v1515
  %vm1526 = vcmp.eq.f32.partialorder %v1525, 8.507059e+37
  %v1527 = vand.u32 %v1515, 2147483648
  %v1528 = vor.u32 1.1754944e-38, %v1527
  %v1529 = vsel %vm1526, %v1528, %v1524
  %v1530 = vmul.f32 1.0, %v1529
  %v1531 = vperm.slane %v1530, 0
  %v1532 = vmul.f32 %v1027, %v1531
  %v1533 = vmul.f32 %v1028, %v1531
  %v1534 = vmul.f32 %v1029, %v1531
  %v1535 = vmul.f32 %v1030, %v1531
  %s1536 = scalar_lea.vmem [#allocation2], 32
  %1537 = vst.msk [vmem:[%s1536] sm:$0xff] %vm92, %v1532
  %1538 = vst.msk [vmem:[%s1536 + $0x8] sm:$0xff] %vm92, %v1533
  %1539 = vst.msk [vmem:[%s1536 + $0x10] sm:$0xff] %vm92, %v1534
  %1540 = vst.msk [vmem:[%s1536 + $0x18] sm:$0xff] %vm92, %v1535
  %v1541 = vld [vmem:[#allocation2] sm:$0xff]
  %v1542 = vld [vmem:[#allocation2 + $0x8] sm:$0xff]
  %v1543 = vld [vmem:[#allocation2 + $0x10] sm:$0xff]
  %v1544 = vld [vmem:[#allocation2 + $0x18] sm:$0xff]
  %1546 = vset.pattern.permute.xlu0 0
  %1547 = vperm.xlu0 %1546, %v62
  %v1548 = vpop.permute.xlu0 %1547
  %1551 = vset.pattern.permute.xlu0 0
  %1552 = vperm.xlu0 %1551, %v63
  %v1553 = vpop.permute.xlu0 %1552
  %1556 = vset.pattern.permute.xlu0 0
  %1557 = vperm.xlu0 %1556, %v64
  %v1558 = vpop.permute.xlu0 %1557
  %1561 = vset.pattern.permute.xlu0 0
  %1562 = vperm.xlu0 %1561, %v65
  %v1563 = vpop.permute.xlu0 %1562
  %1566 = vset.pattern.permute.xlu0 0
  %1567 = vperm.xlu0 %1566, %v66
  %v1568 = vpop.permute.xlu0 %1567
  %1571 = vset.pattern.permute.xlu0 0
  %1572 = vperm.xlu0 %1571, %v67
  %v1573 = vpop.permute.xlu0 %1572
  %1576 = vset.pattern.permute.xlu0 0
  %1577 = vperm.xlu0 %1576, %v68
  %v1578 = vpop.permute.xlu0 %1577
  %1581 = vset.pattern.permute.xlu0 0
  %1582 = vperm.xlu0 %1581, %v69
  %v1583 = vpop.permute.xlu0 %1582
  %1586 = vset.pattern.permute.xlu0 0
  %1587 = vperm.xlu0 %1586, %v70
  %v1588 = vpop.permute.xlu0 %1587
  %1591 = vset.pattern.permute.xlu0 0
  %1592 = vperm.xlu0 %1591, %v71
  %v1593 = vpop.permute.xlu0 %1592
  %1596 = vset.pattern.permute.xlu0 0
  %1597 = vperm.xlu0 %1596, %v72
  %v1598 = vpop.permute.xlu0 %1597
  %1601 = vset.pattern.permute.xlu0 0
  %1602 = vperm.xlu0 %1601, %v73
  %v1603 = vpop.permute.xlu0 %1602
  %v1606 = vsel %vm109, %v50, 0
  %v1609 = vsel %vm109, %v51, 0
  %v1612 = vsel %vm109, %v52, 0
  %v1615 = vsel %vm109, %v53, 0
  %v1618 = vsel %vm109, %v54, 0
  %v1621 = vsel %vm109, %v55, 0
  %v1624 = vsel %vm109, %v56, 0
  %v1627 = vsel %vm109, %v57, 0
  %v1630 = vsel %vm109, %v58, 0
  %v1633 = vsel %vm109, %v59, 0
  %v1636 = vsel %vm109, %v60, 0
  %v1639 = vsel %vm109, %v61, 0
  %1641 = vmatpush.msra.mxu0 0.0
  %1642 = vmatpush.msra.mxu0 0.0
  %1643 = vmatpush.msra.mxu0 0.0
  %1644 = vmatpush.msra.mxu0 0.0
  %1645 = vmatpush.msra.mxu0 0.0
  %1646 = vmatpush.msra.mxu0 0.0
  %1647 = vmatpush.msra.mxu0 0.0
  %1648 = vmatpush.msra.mxu0 0.0
  %1649 = vmatpush.msra.mxu0 0.0
  %1650 = vmatpush.msra.mxu0 0.0
  %1651 = vmatpush.msra.mxu0 0.0
  %1652 = vmatpush.msra.mxu0 0.0
  %1653 = vmatpush.msra.mxu0 %v1544
  %1654 = vmatpush.msra.mxu0 %v1543
  %1655 = vmatpush.msra.mxu0 %v1542
  %1656 = vmatpush.msra.mxu0 %v1541
  %1657 = vmatmul.f32.gmra.mxu0 %v1606
  %v1658 = vpop.f32.mrf.mxu0
  %v1659 = vadd.f32 %v1548, %v1658
  %1660 = vmatmul.f32.gmra.mxu0 %v1609
  %v1661 = vpop.f32.mrf.mxu0
  %v1662 = vadd.f32 %v1553, %v1661
  %1663 = vmatmul.f32.gmra.mxu0 %v1612
  %v1664 = vpop.f32.mrf.mxu0
  %v1665 = vadd.f32 %v1558, %v1664
  %1666 = vmatmul.f32.gmra.mxu0 %v1615
  %v1667 = vpop.f32.mrf.mxu0
  %v1668 = vadd.f32 %v1563, %v1667
  %1669 = vmatmul.f32.gmra.mxu0 %v1618
  %v1670 = vpop.f32.mrf.mxu0
  %v1671 = vadd.f32 %v1568, %v1670
  %1672 = vmatmul.f32.gmra.mxu0 %v1621
  %v1673 = vpop.f32.mrf.mxu0
  %v1674 = vadd.f32 %v1573, %v1673
  %1675 = vmatmul.f32.gmra.mxu0 %v1624
  %v1676 = vpop.f32.mrf.mxu0
  %v1677 = vadd.f32 %v1578, %v1676
  %1678 = vmatmul.f32.gmra.mxu0 %v1627
  %v1679 = vpop.f32.mrf.mxu0
  %v1680 = vadd.f32 %v1583, %v1679
  %1681 = vmatmul.f32.gmra.mxu0 %v1630
  %v1682 = vpop.f32.mrf.mxu0
  %v1683 = vadd.f32 %v1588, %v1682
  %1684 = vmatmul.f32.gmra.mxu0 %v1633
  %v1685 = vpop.f32.mrf.mxu0
  %v1686 = vadd.f32 %v1593, %v1685
  %1687 = vmatmul.f32.gmra.mxu0 %v1636
  %v1688 = vpop.f32.mrf.mxu0
  %v1689 = vadd.f32 %v1598, %v1688
  %1690 = vmatmul.f32.gmra.mxu0 %v1639
  %v1691 = vpop.f32.mrf.mxu0
  %v1692 = vadd.f32 %v1603, %v1691
  %1693 = vdwg.mxu0
  %1694 = vst.msk [vmem:[#allocation3] sm:$0xff] %vm92, %v1659
  %1695 = vst.msk [vmem:[#allocation3 + $0x8] sm:$0xff] %vm92, %v1662
  %1696 = vst.msk [vmem:[#allocation3 + $0x10] sm:$0xff] %vm92, %v1665
  %1697 = vst.msk [vmem:[#allocation3 + $0x18] sm:$0xff] %vm92, %v1668
  %1698 = vst.msk [vmem:[#allocation3 + $0x20] sm:$0xff] %vm92, %v1671
  %1699 = vst.msk [vmem:[#allocation3 + $0x28] sm:$0xff] %vm92, %v1674
  %1700 = vst.msk [vmem:[#allocation3 + $0x30] sm:$0xff] %vm92, %v1677
  %1701 = vst.msk [vmem:[#allocation3 + $0x38] sm:$0xff] %vm92, %v1680
  %1702 = vst.msk [vmem:[#allocation3 + $0x40] sm:$0xff] %vm92, %v1683
  %1703 = vst.msk [vmem:[#allocation3 + $0x48] sm:$0xff] %vm92, %v1686
  %1704 = vst.msk [vmem:[#allocation3 + $0x50] sm:$0xff] %vm92, %v1689
  %1705 = vst.msk [vmem:[#allocation3 + $0x58] sm:$0xff] %vm92, %v1692
  %v1706 = vld [vmem:[%s1536] sm:$0xff]
  %v1707 = vld [vmem:[%s1536 + $0x8] sm:$0xff]
  %v1708 = vld [vmem:[%s1536 + $0x10] sm:$0xff]
  %v1709 = vld [vmem:[%s1536 + $0x18] sm:$0xff]
  %1710 = vmatpush.msra.mxu0 0.0
  %1711 = vmatpush.msra.mxu0 0.0
  %1712 = vmatpush.msra.mxu0 0.0
  %1713 = vmatpush.msra.mxu0 0.0
  %1714 = vmatpush.msra.mxu0 0.0
  %1715 = vmatpush.msra.mxu0 0.0
  %1716 = vmatpush.msra.mxu0 0.0
  %1717 = vmatpush.msra.mxu0 0.0
  %1718 = vmatpush.msra.mxu0 0.0
  %1719 = vmatpush.msra.mxu0 0.0
  %1720 = vmatpush.msra.mxu0 0.0
  %1721 = vmatpush.msra.mxu0 0.0
  %1722 = vmatpush.msra.mxu0 %v1709
  %1723 = vmatpush.msra.mxu0 %v1708
  %1724 = vmatpush.msra.mxu0 %v1707
  %1725 = vmatpush.msra.mxu0 %v1706
  %1726 = vmatmul.f32.gmra.mxu0 %v1606
  %v1727 = vpop.f32.mrf.mxu0
  %v1728 = vadd.f32 %v1548, %v1727
  %1729 = vmatmul.f32.gmra.mxu0 %v1609
  %v1730 = vpop.f32.mrf.mxu0
  %v1731 = vadd.f32 %v1553, %v1730
  %1732 = vmatmul.f32.gmra.mxu0 %v1612
  %v1733 = vpop.f32.mrf.mxu0
  %v1734 = vadd.f32 %v1558, %v1733
  %1735 = vmatmul.f32.gmra.mxu0 %v1615
  %v1736 = vpop.f32.mrf.mxu0
  %v1737 = vadd.f32 %v1563, %v1736
  %1738 = vmatmul.f32.gmra.mxu0 %v1618
  %v1739 = vpop.f32.mrf.mxu0
  %v1740 = vadd.f32 %v1568, %v1739
  %1741 = vmatmul.f32.gmra.mxu0 %v1621
  %v1742 = vpop.f32.mrf.mxu0
  %v1743 = vadd.f32 %v1573, %v1742
  %1744 = vmatmul.f32.gmra.mxu0 %v1624
  %v1745 = vpop.f32.mrf.mxu0
  %v1746 = vadd.f32 %v1578, %v1745
  %1747 = vmatmul.f32.gmra.mxu0 %v1627
  %v1748 = vpop.f32.mrf.mxu0
  %v1749 = vadd.f32 %v1583, %v1748
  %1750 = vmatmul.f32.gmra.mxu0 %v1630
  %v1751 = vpop.f32.mrf.mxu0
  %v1752 = vadd.f32 %v1588, %v1751
  %1753 = vmatmul.f32.gmra.mxu0 %v1633
  %v1754 = vpop.f32.mrf.mxu0
  %v1755 = vadd.f32 %v1593, %v1754
  %1756 = vmatmul.f32.gmra.mxu0 %v1636
  %v1757 = vpop.f32.mrf.mxu0
  %v1758 = vadd.f32 %v1598, %v1757
  %1759 = vmatmul.f32.gmra.mxu0 %v1639
  %v1760 = vpop.f32.mrf.mxu0
  %v1761 = vadd.f32 %v1603, %v1760
  %1762 = vdwg.mxu0
  %1763 = vst.msk [vmem:[#allocation3 + $0x60] sm:$0xff] %vm92, %v1728
  %1764 = vst.msk [vmem:[#allocation3 + $0x68] sm:$0xff] %vm92, %v1731
  %1765 = vst.msk [vmem:[#allocation3 + $0x70] sm:$0xff] %vm92, %v1734
  %1766 = vst.msk [vmem:[#allocation3 + $0x78] sm:$0xff] %vm92, %v1737
  %1767 = vst.msk [vmem:[#allocation3 + $0x80] sm:$0xff] %vm92, %v1740
  %1768 = vst.msk [vmem:[#allocation3 + $0x88] sm:$0xff] %vm92, %v1743
  %1769 = vst.msk [vmem:[#allocation3 + $0x90] sm:$0xff] %vm92, %v1746
  %1770 = vst.msk [vmem:[#allocation3 + $0x98] sm:$0xff] %vm92, %v1749
  %1771 = vst.msk [vmem:[#allocation3 + $0xa0] sm:$0xff] %vm92, %v1752
  %1772 = vst.msk [vmem:[#allocation3 + $0xa8] sm:$0xff] %vm92, %v1755
  %1773 = vst.msk [vmem:[#allocation3 + $0xb0] sm:$0xff] %vm92, %v1758
  %1774 = vst.msk [vmem:[#allocation3 + $0xb8] sm:$0xff] %vm92, %v1761
  %v1775 = vld [vmem:[#allocation3] sm:$0xff]
  %v1776 = vld [vmem:[#allocation3 + $0x8] sm:$0xff]
  %v1777 = vld [vmem:[#allocation3 + $0x10] sm:$0xff]
  %v1778 = vld [vmem:[#allocation3 + $0x18] sm:$0xff]
  %v1779 = vld [vmem:[#allocation3 + $0x20] sm:$0xff]
  %v1780 = vld [vmem:[#allocation3 + $0x28] sm:$0xff]
  %v1781 = vld [vmem:[#allocation3 + $0x30] sm:$0xff]
  %v1782 = vld [vmem:[#allocation3 + $0x38] sm:$0xff]
  %v1783 = vmul.f32 %v1775, %v1779
  %v1784 = vmul.f32 %v1776, %v1780
  %v1785 = vmul.f32 %v1777, %v1781
  %v1786 = vmul.f32 %v1778, %v1782
  %v1787 = vld [vmem:[#allocation3 + $0x80] sm:$0xff]
  %v1788 = vld [vmem:[#allocation3 + $0x88] sm:$0xff]
  %v1789 = vld [vmem:[#allocation3 + $0x90] sm:$0xff]
  %v1790 = vld [vmem:[#allocation3 + $0x98] sm:$0xff]
  %v1791 = vmul.f32 %v1775, %v1787
  %v1792 = vmul.f32 %v1776, %v1788
  %v1793 = vmul.f32 %v1777, %v1789
  %v1794 = vmul.f32 %v1778, %v1790
  %v1796 = vsel %vm92, %v82, 0
  %v1799 = vsel %vm92, %v83, 0
  %1801 = vmatpush.msra.mxu0 0.0
  %1802 = vmatpush.msra.mxu0 0.0
  %1803 = vmatpush.msra.mxu0 0.0
  %1804 = vmatpush.msra.mxu0 0.0
  %1805 = vmatpush.msra.mxu0 0.0
  %1806 = vmatpush.msra.mxu0 0.0
  %1807 = vmatpush.msra.mxu0 0.0
  %1808 = vmatpush.msra.mxu0 0.0
  %1809 = vmatpush.msra.mxu0 %v1794
  %1810 = vmatpush.msra.mxu0 %v1793
  %1811 = vmatpush.msra.mxu0 %v1792
  %1812 = vmatpush.msra.mxu0 %v1791
  %1813 = vmatpush.msra.mxu0 %v1786
  %1814 = vmatpush.msra.mxu0 %v1785
  %1815 = vmatpush.msra.mxu0 %v1784
  %1816 = vmatpush.msra.mxu0 %v1783
  %1817 = vmatmul.f32.gmra.mxu0 %v1796
  %v1818 = vpop.f32.mrf.mxu0
  %v1819 = vadd.f32 0.0, %v1818
  %1820 = vmatmul.f32.gmra.mxu0 %v1799
  %v1821 = vpop.f32.mrf.mxu0
  %v1822 = vadd.f32 0.0, %v1821
  %1823 = vdwg.mxu0
  %v1824 = vmax.f32 %v1819, %v1822
  %v1825 = vsub.f32 %v1819, %v1824
  %v1826 = vmul.f32 %v1825, 1.442695
  %v1827 = vpow.pop %v1826
  %v1828 = vsub.f32 %v1822, %v1824
  %v1829 = vmul.f32 %v1828, 1.442695
  %v1830 = vpow.pop %v1829
  %v1831 = vadd.f32 %v1827, %v1830
  %v1832 = vrcp.pop %v1831
  %v1833 = vmul.f32 %v1827, %v1832
  %v1835 = vsel %vm521, %v84, 0
  %v1838 = vsel %vm521, %v85, 0
  %v1841 = vsel %vm521, %v86, 0
  %v1844 = vsel %vm521, %v87, 0
  %1846 = vmatpush.msra.mxu0 0.0
  %1847 = vmatpush.msra.mxu0 0.0
  %1848 = vmatpush.msra.mxu0 0.0
  %1849 = vmatpush.msra.mxu0 0.0
  %1850 = vmatpush.msra.mxu0 0.0
  %1851 = vmatpush.msra.mxu0 0.0
  %1852 = vmatpush.msra.mxu0 0.0
  %1853 = vmatpush.msra.mxu0 0.0
  %1854 = vmatpush.msra.mxu0 0.0
  %1855 = vmatpush.msra.mxu0 0.0
  %1856 = vmatpush.msra.mxu0 0.0
  %1857 = vmatpush.msra.mxu0 0.0
  %1858 = vmatpush.msra.mxu0 0.0
  %1859 = vmatpush.msra.mxu0 0.0
  %1860 = vmatpush.msra.mxu0 0.0
  %1861 = vmatpush.msra.mxu0 %v1833
  %1862 = vmatmul.f32.gmra.mxu0 %v1835
  %v1863 = vpop.f32.mrf.mxu0
  %v1864 = vadd.f32 0.0, %v1863
  %1865 = vmatmul.f32.gmra.mxu0 %v1838
  %v1866 = vpop.f32.mrf.mxu0
  %v1867 = vadd.f32 0.0, %v1866
  %1868 = vmatmul.f32.gmra.mxu0 %v1841
  %v1869 = vpop.f32.mrf.mxu0
  %v1870 = vadd.f32 0.0, %v1869
  %1871 = vmatmul.f32.gmra.mxu0 %v1844
  %v1872 = vpop.f32.mrf.mxu0
  %v1873 = vadd.f32 0.0, %v1872
  %1874 = vdwg.mxu0
  %v1875 = vld [vmem:[#allocation3 + $0x40] sm:$0xff]
  %v1876 = vld [vmem:[#allocation3 + $0x48] sm:$0xff]
  %v1877 = vld [vmem:[#allocation3 + $0x50] sm:$0xff]
  %v1878 = vld [vmem:[#allocation3 + $0x58] sm:$0xff]
  %v1879 = vmul.f32 %v1864, %v1875
  %v1880 = vmul.f32 %v1867, %v1876
  %v1881 = vmul.f32 %v1870, %v1877
  %v1882 = vmul.f32 %v1873, %v1878
  %v1883 = vadd.f32 %v1879, 0.0
  %v1884 = vadd.f32 %v1880, 0.0
  %v1885 = vadd.f32 %v1881, 0.0
  %v1886 = vadd.f32 %v1882, 0.0
  %v1887 = vmul.f32 %v1830, %v1832
  %1888 = vmatpush.msra.mxu0 0.0
  %1889 = vmatpush.msra.mxu0 0.0
  %1890 = vmatpush.msra.mxu0 0.0
  %1891 = vmatpush.msra.mxu0 0.0
  %1892 = vmatpush.msra.mxu0 0.0
  %1893 = vmatpush.msra.mxu0 0.0
  %1894 = vmatpush.msra.mxu0 0.0
  %1895 = vmatpush.msra.mxu0 0.0
  %1896 = vmatpush.msra.mxu0 0.0
  %1897 = vmatpush.msra.mxu0 0.0
  %1898 = vmatpush.msra.mxu0 0.0
  %1899 = vmatpush.msra.mxu0 0.0
  %1900 = vmatpush.msra.mxu0 0.0
  %1901 = vmatpush.msra.mxu0 0.0
  %1902 = vmatpush.msra.mxu0 0.0
  %1903 = vmatpush.msra.mxu0 %v1887
  %1904 = vmatmul.f32.gmra.mxu0 %v1835
  %v1905 = vpop.f32.mrf.mxu0
  %v1906 = vadd.f32 0.0, %v1905
  %1907 = vmatmul.f32.gmra.mxu0 %v1838
  %v1908 = vpop.f32.mrf.mxu0
  %v1909 = vadd.f32 0.0, %v1908
  %1910 = vmatmul.f32.gmra.mxu0 %v1841
  %v1911 = vpop.f32.mrf.mxu0
  %v1912 = vadd.f32 0.0, %v1911
  %1913 = vmatmul.f32.gmra.mxu0 %v1844
  %v1914 = vpop.f32.mrf.mxu0
  %v1915 = vadd.f32 0.0, %v1914
  %1916 = vdwg.mxu0
  %v1917 = vld [vmem:[#allocation3 + $0xa0] sm:$0xff]
  %v1918 = vld [vmem:[#allocation3 + $0xa8] sm:$0xff]
  %v1919 = vld [vmem:[#allocation3 + $0xb0] sm:$0xff]
  %v1920 = vld [vmem:[#allocation3 + $0xb8] sm:$0xff]
  %v1921 = vmul.f32 %v1906, %v1917
  %v1922 = vmul.f32 %v1909, %v1918
  %v1923 = vmul.f32 %v1912, %v1919
  %v1924 = vmul.f32 %v1915, %v1920
  %v1925 = vadd.f32 %v1883, %v1921
  %v1926 = vadd.f32 %v1884, %v1922
  %v1927 = vadd.f32 %v1885, %v1923
  %v1928 = vadd.f32 %v1886, %v1924
  %1930 = vset.pattern.permute.xlu0 0
  %1931 = vperm.xlu0 %1930, %v78
  %v1932 = vpop.permute.xlu0 %1931
  %1935 = vset.pattern.permute.xlu0 0
  %1936 = vperm.xlu0 %1935, %v79
  %v1937 = vpop.permute.xlu0 %1936
  %1940 = vset.pattern.permute.xlu0 0
  %1941 = vperm.xlu0 %1940, %v80
  %v1942 = vpop.permute.xlu0 %1941
  %1945 = vset.pattern.permute.xlu0 0
  %1946 = vperm.xlu0 %1945, %v81
  %v1947 = vpop.permute.xlu0 %1946
  %v1950 = vsel %vm109, %v74, 0
  %v1953 = vsel %vm109, %v75, 0
  %v1956 = vsel %vm109, %v76, 0
  %v1959 = vsel %vm109, %v77, 0
  %1961 = vmatpush.msra.mxu0 0.0
  %1962 = vmatpush.msra.mxu0 0.0
  %1963 = vmatpush.msra.mxu0 0.0
  %1964 = vmatpush.msra.mxu0 0.0
  %1965 = vmatpush.msra.mxu0 0.0
  %1966 = vmatpush.msra.mxu0 0.0
  %1967 = vmatpush.msra.mxu0 0.0
  %1968 = vmatpush.msra.mxu0 0.0
  %1969 = vmatpush.msra.mxu0 0.0
  %1970 = vmatpush.msra.mxu0 0.0
  %1971 = vmatpush.msra.mxu0 0.0
  %1972 = vmatpush.msra.mxu0 0.0
  %1973 = vmatpush.msra.mxu0 %v1928
  %1974 = vmatpush.msra.mxu0 %v1927
  %1975 = vmatpush.msra.mxu0 %v1926
  %1976 = vmatpush.msra.mxu0 %v1925
  %1977 = vmatmul.f32.gmra.mxu0 %v1950
  %v1978 = vpop.f32.mrf.mxu0
  %v1979 = vadd.f32 %v1932, %v1978
  %1980 = vmatmul.f32.gmra.mxu0 %v1953
  %v1981 = vpop.f32.mrf.mxu0
  %v1982 = vadd.f32 %v1937, %v1981
  %1983 = vmatmul.f32.gmra.mxu0 %v1956
  %v1984 = vpop.f32.mrf.mxu0
  %v1985 = vadd.f32 %v1942, %v1984
  %1986 = vmatmul.f32.gmra.mxu0 %v1959
  %v1987 = vpop.f32.mrf.mxu0
  %v1988 = vadd.f32 %v1947, %v1987
  %1989 = vdwg.mxu0
  %1990 = vst.msk [vmem:[%s11] sm:$0xff] %vm92, %v1979
  %1991 = vst.msk [vmem:[%s11 + $0x8] sm:$0xff] %vm92, %v1982
  %1992 = vst.msk [vmem:[%s11 + $0x10] sm:$0xff] %vm92, %v1985
  %1993 = vst.msk [vmem:[%s11 + $0x18] sm:$0xff] %vm92, %v1988
  %v1994 = vld [vmem:[#allocation3 + $0x60] sm:$0xff]
  %v1995 = vld [vmem:[#allocation3 + $0x68] sm:$0xff]
  %v1996 = vld [vmem:[#allocation3 + $0x70] sm:$0xff]
  %v1997 = vld [vmem:[#allocation3 + $0x78] sm:$0xff]
  %v1998 = vld [vmem:[#allocation3 + $0x20] sm:$0xff]
  %v1999 = vld [vmem:[#allocation3 + $0x28] sm:$0xff]
  %v2000 = vld [vmem:[#allocation3 + $0x30] sm:$0xff]
  %v2001 = vld [vmem:[#allocation3 + $0x38] sm:$0xff]
  %v2002 = vmul.f32 %v1994, %v1998
  %v2003 = vmul.f32 %v1995, %v1999
  %v2004 = vmul.f32 %v1996, %v2000
  %v2005 = vmul.f32 %v1997, %v2001
  %v2006 = vld [vmem:[#allocation3 + $0x80] sm:$0xff]
  %v2007 = vld [vmem:[#allocation3 + $0x88] sm:$0xff]
  %v2008 = vld [vmem:[#allocation3 + $0x90] sm:$0xff]
  %v2009 = vld [vmem:[#allocation3 + $0x98] sm:$0xff]
  %v2010 = vmul.f32 %v1994, %v2006
  %v2011 = vmul.f32 %v1995, %v2007
  %v2012 = vmul.f32 %v1996, %v2008
  %v2013 = vmul.f32 %v1997, %v2009
  %2014 = vmatpush.msra.mxu0 0.0
  %2015 = vmatpush.msra.mxu0 0.0
  %2016 = vmatpush.msra.mxu0 0.0
  %2017 = vmatpush.msra.mxu0 0.0
  %2018 = vmatpush.msra.mxu0 0.0
  %2019 = vmatpush.msra.mxu0 0.0
  %2020 = vmatpush.msra.mxu0 0.0
  %2021 = vmatpush.msra.mxu0 0.0
  %2022 = vmatpush.msra.mxu0 %v2013
  %2023 = vmatpush.msra.mxu0 %v2012
  %2024 = vmatpush.msra.mxu0 %v2011
  %2025 = vmatpush.msra.mxu0 %v2010
  %2026 = vmatpush.msra.mxu0 %v2005
  %2027 = vmatpush.msra.mxu0 %v2004
  %2028 = vmatpush.msra.mxu0 %v2003
  %2029 = vmatpush.msra.mxu0 %v2002
  %2030 = vmatmul.f32.gmra.mxu0 %v1796
  %v2031 = vpop.f32.mrf.mxu0
  %v2032 = vadd.f32 0.0, %v2031
  %2033 = vmatmul.f32.gmra.mxu0 %v1799
  %v2034 = vpop.f32.mrf.mxu0
  %v2035 = vadd.f32 0.0, %v2034
  %2036 = vdwg.mxu0
  %v2037 = vmax.f32 %v2032, %v2035
  %v2038 = vsub.f32 %v2032, %v2037
  %v2039 = vmul.f32 %v2038, 1.442695
  %v2040 = vpow.pop %v2039
  %v2041 = vsub.f32 %v2035, %v2037
  %v2042 = vmul.f32 %v2041, 1.442695
  %v2043 = vpow.pop %v2042
  %v2044 = vadd.f32 %v2040, %v2043
  %v2045 = vrcp.pop %v2044
  %v2046 = vmul.f32 %v2040, %v2045
  %2047 = vmatpush.msra.mxu0 0.0
  %2048 = vmatpush.msra.mxu0 0.0
  %2049 = vmatpush.msra.mxu0 0.0
  %2050 = vmatpush.msra.mxu0 0.0
  %2051 = vmatpush.msra.mxu0 0.0
  %2052 = vmatpush.msra.mxu0 0.0
  %2053 = vmatpush.msra.mxu0 0.0
  %2054 = vmatpush.msra.mxu0 0.0
  %2055 = vmatpush.msra.mxu0 0.0
  %2056 = vmatpush.msra.mxu0 0.0
  %2057 = vmatpush.msra.mxu0 0.0
  %2058 = vmatpush.msra.mxu0 0.0
  %2059 = vmatpush.msra.mxu0 0.0
  %2060 = vmatpush.msra.mxu0 0.0
  %2061 = vmatpush.msra.mxu0 0.0
  %2062 = vmatpush.msra.mxu0 %v2046
  %2063 = vmatmul.f32.gmra.mxu0 %v1835
  %v2064 = vpop.f32.mrf.mxu0
  %v2065 = vadd.f32 0.0, %v2064
  %2066 = vmatmul.f32.gmra.mxu0 %v1838
  %v2067 = vpop.f32.mrf.mxu0
  %v2068 = vadd.f32 0.0, %v2067
  %2069 = vmatmul.f32.gmra.mxu0 %v1841
  %v2070 = vpop.f32.mrf.mxu0
  %v2071 = vadd.f32 0.0, %v2070
  %2072 = vmatmul.f32.gmra.mxu0 %v1844
  %v2073 = vpop.f32.mrf.mxu0
  %v2074 = vadd.f32 0.0, %v2073
  %2075 = vdwg.mxu0
  %v2076 = vld [vmem:[#allocation3 + $0x40] sm:$0xff]
  %v2077 = vld [vmem:[#allocation3 + $0x48] sm:$0xff]
  %v2078 = vld [vmem:[#allocation3 + $0x50] sm:$0xff]
  %v2079 = vld [vmem:[#allocation3 + $0x58] sm:$0xff]
  %v2080 = vmul.f32 %v2065, %v2076
  %v2081 = vmul.f32 %v2068, %v2077
  %v2082 = vmul.f32 %v2071, %v2078
  %v2083 = vmul.f32 %v2074, %v2079
  %v2084 = vadd.f32 %v2080, 0.0
  %v2085 = vadd.f32 %v2081, 0.0
  %v2086 = vadd.f32 %v2082, 0.0
  %v2087 = vadd.f32 %v2083, 0.0
  %v2088 = vmul.f32 %v2043, %v2045
  %2089 = vmatpush.msra.mxu0 0.0
  %2090 = vmatpush.msra.mxu0 0.0
  %2091 = vmatpush.msra.mxu0 0.0
  %2092 = vmatpush.msra.mxu0 0.0
  %2093 = vmatpush.msra.mxu0 0.0
  %2094 = vmatpush.msra.mxu0 0.0
  %2095 = vmatpush.msra.mxu0 0.0
  %2096 = vmatpush.msra.mxu0 0.0
  %2097 = vmatpush.msra.mxu0 0.0
  %2098 = vmatpush.msra.mxu0 0.0
  %2099 = vmatpush.msra.mxu0 0.0
  %2100 = vmatpush.msra.mxu0 0.0
  %2101 = vmatpush.msra.mxu0 0.0
  %2102 = vmatpush.msra.mxu0 0.0
  %2103 = vmatpush.msra.mxu0 0.0
  %2104 = vmatpush.msra.mxu0 %v2088
  %2105 = vmatmul.f32.gmra.mxu0 %v1835
  %v2106 = vpop.f32.mrf.mxu0
  %v2107 = vadd.f32 0.0, %v2106
  %2108 = vmatmul.f32.gmra.mxu0 %v1838
  %v2109 = vpop.f32.mrf.mxu0
  %v2110 = vadd.f32 0.0, %v2109
  %2111 = vmatmul.f32.gmra.mxu0 %v1841
  %v2112 = vpop.f32.mrf.mxu0
  %v2113 = vadd.f32 0.0, %v2112
  %2114 = vmatmul.f32.gmra.mxu0 %v1844
  %v2115 = vpop.f32.mrf.mxu0
  %v2116 = vadd.f32 0.0, %v2115
  %2117 = vdwg.mxu0
  %v2118 = vld [vmem:[#allocation3 + $0xa0] sm:$0xff]
  %v2119 = vld [vmem:[#allocation3 + $0xa8] sm:$0xff]
  %v2120 = vld [vmem:[#allocation3 + $0xb0] sm:$0xff]
  %v2121 = vld [vmem:[#allocation3 + $0xb8] sm:$0xff]
  %v2122 = vmul.f32 %v2107, %v2118
  %v2123 = vmul.f32 %v2110, %v2119
  %v2124 = vmul.f32 %v2113, %v2120
  %v2125 = vmul.f32 %v2116, %v2121
  %v2126 = vadd.f32 %v2084, %v2122
  %v2127 = vadd.f32 %v2085, %v2123
  %v2128 = vadd.f32 %v2086, %v2124
  %v2129 = vadd.f32 %v2087, %v2125
  %2130 = vmatpush.msra.mxu0 0.0
  %2131 = vmatpush.msra.mxu0 0.0
  %2132 = vmatpush.msra.mxu0 0.0
  %2133 = vmatpush.msra.mxu0 0.0
  %2134 = vmatpush.msra.mxu0 0.0
  %2135 = vmatpush.msra.mxu0 0.0
  %2136 = vmatpush.msra.mxu0 0.0
  %2137 = vmatpush.msra.mxu0 0.0
  %2138 = vmatpush.msra.mxu0 0.0
  %2139 = vmatpush.msra.mxu0 0.0
  %2140 = vmatpush.msra.mxu0 0.0
  %2141 = vmatpush.msra.mxu0 0.0
  %2142 = vmatpush.msra.mxu0 %v2129
  %2143 = vmatpush.msra.mxu0 %v2128
  %2144 = vmatpush.msra.mxu0 %v2127
  %2145 = vmatpush.msra.mxu0 %v2126
  %2146 = vmatmul.f32.gmra.mxu0 %v1950
  %v2147 = vpop.f32.mrf.mxu0
  %v2148 = vadd.f32 %v1932, %v2147
  %2149 = vmatmul.f32.gmra.mxu0 %v1953
  %v2150 = vpop.f32.mrf.mxu0
  %v2151 = vadd.f32 %v1937, %v2150
  %2152 = vmatmul.f32.gmra.mxu0 %v1956
  %v2153 = vpop.f32.mrf.mxu0
  %v2154 = vadd.f32 %v1942, %v2153
  %2155 = vmatmul.f32.gmra.mxu0 %v1959
  %v2156 = vpop.f32.mrf.mxu0
  %v2157 = vadd.f32 %v1947, %v2156
  %2158 = vdwg.mxu0
  %s2159 = scalar_lea.vmem %s11, 32
  %2160 = vst.msk [vmem:[%s2159] sm:$0xff] %vm92, %v2148
  %2161 = vst.msk [vmem:[%s2159 + $0x8] sm:$0xff] %vm92, %v2151
  %2162 = vst.msk [vmem:[%s2159 + $0x10] sm:$0xff] %vm92, %v2154
  %2163 = vst.msk [vmem:[%s2159 + $0x18] sm:$0xff] %vm92, %v2157
  // Predicated region
  $region46: #{triple_attention.1} parent=0 // pred_check
    _
  $region47: #{triple_attention.1} parent=0 // pred_check_branch
    %2165 = sbr.rel (0) target = $region49
  $region48: #{triple_attention.1} parent=0 // pred_region
    _
  $region49: #{triple_attention.1} parent=0 // pred_fallthru
    _
  // Predicated region
  $region50: #{triple_attention.1} parent=0 // pred_check
    _
  $region51: #{triple_attention.1} parent=0 // pred_check_branch
    %2167 = sbr.rel (0) target = $region53
  $region52: #{triple_attention.1} parent=0 // pred_region
    _
  $region53: #{triple_attention.1} parent=0 // pred_fallthru
    _

</llo_original>
